<compile_context>
chip_gen: v6e
topology: v6e:2x2x1
jax: 0.10.0
libtpu: 0.0.40
codegen_flags: <defaults>
</compile_context>

<pallas_src>
import numpy as np
import jax
import jax.numpy as jnp
from jax.experimental import pallas as pl
from jax.experimental.pallas import tpu as pltpu

# ----------------------------- configuration (small shapes) ------------------------------
NUM_H = 4
NUM_W = 4
N = NUM_H * NUM_W                 # 16 nodes
INPUT_DIM = 3
OUTPUT_DIM = 1
HIDDEN = 32
EMB_DIM = 16
CHEB_K = 3
NUM_LAYERS = 3
BATCH = 2
K_TOTAL = 2 * CHEB_K + CHEB_K     # fixed supports (2*cheb_k) + adaptive supports (cheb_k) = 9

# batch-on-lanes packed widths
BH = BATCH * HIDDEN               # 64
BH2 = BATCH * (HIDDEN // 2)       # 32
BO = BATCH * OUTPUT_DIM           # 2
BC = BATCH * INPUT_DIM            # 6


def _ru(x, m):
    return ((x + m - 1) // m) * m


# misc weight/bias slab layout (rows; everything at lane offset 0)
R_WIN = 0                              # w_in block-diag      [BC,  BH]
R_BIN = _ru(R_WIN + BC, 8)             # input-proj bias      [1,   BH]
R_GB = R_BIN + 1                       # gcn biases           [L,   BH]
R_W1 = _ru(R_GB + NUM_LAYERS, 8)       # w1 block-diag        [BH,  BH2]
R_B1 = R_W1 + BH                       # b1                   [1,   BH2]
R_W2 = _ru(R_B1 + 1, 8)                # w2 block-diag        [BH2, BO]
R_B2 = R_W2 + BH2                      # b2                   [1,   BO]
MISC_ROWS = _ru(R_B2 + 1, 8)
MISC_COLS = BH


# ----------------------------- numpy preprocessing (static graph, init-time) -------------
def gen_adj(num_h, num_w):
    adj = np.zeros((num_h, num_w, num_h, num_w))
    for i in range(num_h):
        for j in range(num_w):
            if i - 1 >= 0:
                adj[i - 1, j, i, j] = 1
                adj[i, j, i - 1, j] = 1
            if i + 1 < num_h:
                adj[i + 1, j, i, j] = 1
                adj[i, j, i + 1, j] = 1
            if j - 1 >= 0:
                adj[i, j - 1, i, j] = 1
                adj[i, j, i, j - 1] = 1
            if j + 1 < num_w:
                adj[i, j + 1, i, j] = 1
                adj[i, j, i, j + 1] = 1
    adj = adj.reshape(num_h * num_w, num_h * num_w)
    np.fill_diagonal(adj, 1.0)
    return adj


def asym_adj(adj):
    # D^-1 A  (row-normalized), scipy-free
    rowsum = adj.sum(1)
    d_inv = np.where(rowsum > 0, 1.0 / np.maximum(rowsum, 1e-12), 0.0)
    return (d_inv[:, None] * adj).astype(np.float32)


def compute_cheby_poly(adjs, cheb_k):
    P_k = []
    for p in adjs:
        p = p.astype(np.float32).T
        T_k = [np.eye(p.shape[0], dtype=np.float32), p]
        for _ in range(2, cheb_k):
            T_k.append(2.0 * (p @ T_k[-1]) - T_k[-2])
        P_k += T_k
    return np.stack(P_k, axis=0)          # [2*cheb_k, N, N]


# ----------------------------- fused Pallas kernel ---------------------------------------
def grid_gcn_kernel(x_ref, static_ref, gw_ref, misc_ref, o_ref):
    """Whole GridGCN forward, entirely VMEM-resident; batch folded onto the lane axis.

    x_ref      : [N, B*INPUT_DIM]                input signal, batch on lanes
    static_ref : [2*CHEB_K*N + 2*N, N]           rows 0..95: static Chebyshev supports,
                                                 rows 96..111: E1, rows 112..127: E2^T
    gw_ref     : [L, K_TOTAL, B*H, B*H]          per-k, per-layer block-diagonal GCN weights
    misc_ref   : [MISC_ROWS, B*H]                packed w_in/b_in/gcn_b/w1/b1/w2/b2 slab
    o_ref      : [N, B*OUTPUT_DIM]
    """
    f32 = jnp.float32
    PN = 2 * CHEB_K * N

    # --- unpack static buffer (static slices; lane offset 0, sublane offsets 8-aligned) ---
    p_cat = static_ref[0:PN, :]                      # [6*N, N] static Chebyshev supports
    e1 = static_ref[PN:PN + N, :]                    # [N, EMB_DIM]
    e2t = static_ref[PN + N:PN + 2 * N, :]           # [EMB_DIM, N]

    # --- unpack misc weight/bias slab -------------------------------------------------------
    w_in = misc_ref[R_WIN:R_WIN + BC, 0:BH]          # [B*Cin, B*H]  (block-diag)
    b_in = misc_ref[R_BIN:R_BIN + 1, 0:BH]           # [1, B*H]
    w1 = misc_ref[R_W1:R_W1 + BH, 0:BH2]             # [B*H, B*H/2]  (block-diag)
    b1 = misc_ref[R_B1:R_B1 + 1, 0:BH2]              # [1, B*H/2]
    w2 = misc_ref[R_W2:R_W2 + BH2, 0:BO]             # [B*H/2, B*O]  (block-diag)
    b2 = misc_ref[R_B2:R_B2 + 1, 0:BO]               # [1, B*O]

    # --- adaptive adjacency: softmax(relu(E1 @ E2^T), axis=-1) and its powers --------------
    logits = jnp.maximum(jnp.dot(e1, e2t, preferred_element_type=f32), 0.0)
    m = jnp.max(logits, axis=-1, keepdims=True)
    e = jnp.exp(logits - m)
    s = jnp.sum(e, axis=-1, keepdims=True)
    inv = pl.reciprocal(s, approx=True)              # EUP slot (idle) instead of VALU divide
    inv = inv * (2.0 - s * inv)                      # one Newton step -> ~f32 accuracy
    adp1 = e * inv
    adp2 = jnp.dot(adp1, adp1, preferred_element_type=f32)      # adp^2
    adp4 = jnp.dot(adp2, adp2, preferred_element_type=f32)      # adp^4 (torch: adp = adp@adp, twice)
    adp_cat = jnp.concatenate([adp1, adp2, adp4], axis=0)       # [3*N, N] (adaptive stack only)

    # --- input projection, batch on lanes: [N, B*Cin] @ [B*Cin, B*H] ------------------------
    h = jnp.dot(x_ref[...], w_in, preferred_element_type=f32) + b_in        # [N, B*H]

    # --- GCN layers --------------------------------------------------------------------------
    for layer in range(NUM_LAYERS):                  # static, unrolled
        # (1) graph mixing: two wide matmuls cover all supports and all batches at once
        sb_s = jnp.dot(p_cat, h, preferred_element_type=f32)     # [6*N, B*H]
        sb_a = jnp.dot(adp_cat, h, preferred_element_type=f32)   # [3*N, B*H]
        # (2) per-k accumulated weight matmuls (block-diag over batch) -> no repack stores
        acc = jnp.dot(sb_s[0:N, :], gw_ref[layer, 0], preferred_element_type=f32)
        for k in range(1, 2 * CHEB_K):
            acc = acc + jnp.dot(sb_s[k * N:(k + 1) * N, :], gw_ref[layer, k],
                                preferred_element_type=f32)
        for k in range(CHEB_K):
            acc = acc + jnp.dot(sb_a[k * N:(k + 1) * N, :], gw_ref[layer, 2 * CHEB_K + k],
                                preferred_element_type=f32)
        h = acc + misc_ref[R_GB + layer:R_GB + layer + 1, 0:BH]             # [N, B*H]

    # --- output MLP: Linear -> ReLU -> Linear (batch still on lanes) -------------------------
    hm = jnp.maximum(jnp.dot(h, w1, preferred_element_type=f32) + b1, 0.0)  # [N, B*H/2]
    o_ref[...] = jnp.dot(hm, w2, preferred_element_type=f32) + b2           # [N, B*O]


# ----------------------------- host-side parameter packing --------------------------------
def _block_diag(w, batch):
    w = np.asarray(w, np.float32)
    din, dout = w.shape
    out = np.zeros((batch * din, batch * dout), np.float32)
    for b in range(batch):
        out[b * din:(b + 1) * din, b * dout:(b + 1) * dout] = w
    return out


def pack_params(params):
    """One-time re-layout into 3 lane-dense, kernel-friendly buffers."""
    P = np.asarray(params["P"], np.float32).reshape(2 * CHEB_K * N, N)
    e1 = np.asarray(params["emb1"], np.float32)
    e2t = np.asarray(params["emb2"], np.float32).T
    static_cat = np.concatenate([P, e1, e2t], axis=0)            # [2*CHEB_K*N + 2*N, N]

    gw_bd = np.zeros((NUM_LAYERS, K_TOTAL, BH, BH), np.float32)
    for l in range(NUM_LAYERS):
        W = np.asarray(params["gcn_w"][l], np.float32)           # [K*H, H]
        for k in range(K_TOTAL):
            gw_bd[l, k] = _block_diag(W[k * HIDDEN:(k + 1) * HIDDEN, :], BATCH)

    misc = np.zeros((MISC_ROWS, MISC_COLS), np.float32)
    misc[R_WIN:R_WIN + BC, 0:BH] = _block_diag(params["w_in"], BATCH)
    misc[R_BIN, 0:BH] = np.tile(np.asarray(params["b_in"], np.float32), BATCH)
    for l in range(NUM_LAYERS):
        misc[R_GB + l, 0:BH] = np.tile(np.asarray(params["gcn_b"][l], np.float32), BATCH)
    misc[R_W1:R_W1 + BH, 0:BH2] = _block_diag(params["w1"], BATCH)
    misc[R_B1, 0:BH2] = np.tile(np.asarray(params["b1"], np.float32), BATCH)
    misc[R_W2:R_W2 + BH2, 0:BO] = _block_diag(params["w2"], BATCH)
    misc[R_B2, 0:BO] = np.tile(np.asarray(params["b2"], np.float32), BATCH)

    return {"static_cat": jnp.asarray(static_cat),
            "gw_bd": jnp.asarray(gw_bd),
            "misc": jnp.asarray(misc)}


# ----------------------------- wrapper ------------------------------------------------------
@jax.jit
def grid_gcn_forward(x, pk):
    assert x.shape[0] == BATCH
    # fold batch onto the lane axis: x_bl[n, b*Cin + c] = x[b, n, c]
    x_bl = (x.reshape(BATCH, N, INPUT_DIM).astype(jnp.float32)
             .transpose(1, 0, 2).reshape(N, BATCH * INPUT_DIM))
    vmem = pl.BlockSpec(memory_space=pltpu.MemorySpace.VMEM)     # whole array, VMEM-resident
    # Single fused, gridless launch; total footprint < 1 MiB on every generation.
    out = pl.pallas_call(
        grid_gcn_kernel,
        out_shape=jax.ShapeDtypeStruct((N, BATCH * OUTPUT_DIM), jnp.float32),
        in_specs=[vmem] * 4,
        out_specs=vmem,
    )(x_bl, pk["static_cat"], pk["gw_bd"], pk["misc"])
    # out[n, b*O + d] -> [B, H, W, O]
    return (out.reshape(N, BATCH, OUTPUT_DIM).transpose(1, 0, 2)
               .reshape(BATCH, NUM_H, NUM_W, OUTPUT_DIM))


# ----------------------------- float64 numpy reference --------------------------------------
def reference_forward_np(x, params):
    f64 = np.float64
    P = np.asarray(params["P"], f64)
    e1 = np.asarray(params["emb1"], f64)
    e2 = np.asarray(params["emb2"], f64)
    logits = np.maximum(e1 @ e2.T, 0.0)
    ex = np.exp(logits - logits.max(axis=-1, keepdims=True))
    adp = ex / ex.sum(axis=-1, keepdims=True)
    adps = [adp]
    a = adp
    for _ in range(CHEB_K - 1):
        a = a @ a
        adps.append(a)
    supports = np.concatenate([P, np.stack(adps, axis=0)], axis=0)       # [K_TOTAL, N, N]

    B = x.shape[0]
    h = (np.asarray(x, f64).reshape(B, N, INPUT_DIM) @ np.asarray(params["w_in"], f64)
         + np.asarray(params["b_in"], f64))
    for i in range(NUM_LAYERS):
        sup = np.concatenate(
            [np.einsum("ij,bjc->bic", supports[k], h) for k in range(K_TOTAL)], axis=-1)
        h = sup @ np.asarray(params["gcn_w"][i], f64) + np.asarray(params["gcn_b"][i], f64)
    hm = np.maximum(h @ np.asarray(params["w1"], f64) + np.asarray(params["b1"], f64), 0.0)
    out = hm @ np.asarray(params["w2"], f64) + np.asarray(params["b2"], f64)
    return out.reshape(B, NUM_H, NUM_W, OUTPUT_DIM)


# ----------------------------- main ----------------------------------------------------------
if __name__ == "__main__":
    key = jax.random.PRNGKey(0)
    keys = jax.random.split(key, 16)

    # static supports (Chebyshev polys of forward/backward transition matrices)
    adj = gen_adj(NUM_H, NUM_W)
    P_np = compute_cheby_poly([asym_adj(adj), asym_adj(adj.T)], CHEB_K)   # [2*CHEB_K, N, N]

    def xavier_normal(k, shape):
        std = np.sqrt(2.0 / (shape[0] + shape[1]))
        return jax.random.normal(k, shape, dtype=jnp.float32) * std

    params = {
        "P": jnp.asarray(P_np, dtype=jnp.float32),
        "emb1": jax.random.normal(keys[0], (N, EMB_DIM), dtype=jnp.float32),
        "emb2": jax.random.normal(keys[1], (N, EMB_DIM), dtype=jnp.float32),
        "w_in": xavier_normal(keys[2], (INPUT_DIM, HIDDEN)),
        "b_in": jnp.zeros((HIDDEN,), dtype=jnp.float32),
        "gcn_w": [xavier_normal(keys[3 + i], (K_TOTAL * HIDDEN, HIDDEN))
                  for i in range(NUM_LAYERS)],
        "gcn_b": [jnp.zeros((HIDDEN,), dtype=jnp.float32) for _ in range(NUM_LAYERS)],
        "w1": xavier_normal(keys[8], (HIDDEN, HIDDEN // 2)),
        "b1": jnp.zeros((HIDDEN // 2,), dtype=jnp.float32),
        "w2": xavier_normal(keys[9], (HIDDEN // 2, OUTPUT_DIM)),
        "b2": jnp.zeros((OUTPUT_DIM,), dtype=jnp.float32),
    }
    packed = pack_params(params)

    # example input: [B, Hgrid, Wgrid, input_dim]
    x = jax.random.normal(keys[10], (BATCH, NUM_H, NUM_W, INPUT_DIM), dtype=jnp.float32)

    out = jax.block_until_ready(grid_gcn_forward(x, packed))
    assert out.shape == (BATCH, NUM_H, NUM_W, OUTPUT_DIM)

    ref = reference_forward_np(np.asarray(x), params)
    if not np.allclose(np.asarray(out, dtype=np.float64), ref, rtol=2e-3, atol=2e-3):
        raise AssertionError("Pallas output mismatch vs float64 reference")

    print("KERNEL_OK")
</pallas_src>

<mosaic_0001>
module attributes {stable_mosaic.version = 11 : i64} {
  func.func @grid_gcn_kernel(%arg0: memref<16x6xf32, #tpu.memory_space<vmem>>, %arg1: memref<128x16xf32, #tpu.memory_space<vmem>>, %arg2: memref<3x9x64x64xf32, #tpu.memory_space<vmem>>, %arg3: memref<128x64xf32, #tpu.memory_space<vmem>>, %arg4: memref<16x2xf32, #tpu.memory_space<vmem>>) attributes {dimension_semantics = [], scalar_prefetch = 0 : i64, scratch_operands = 0 : i64, tpu.core_type = #tpu.core_type<tc>} {
    %c0 = arith.constant 0 : index
    %c0_0 = arith.constant 0 : index
    %0 = vector.load %arg1[%c0, %c0_0] : memref<128x16xf32, #tpu.memory_space<vmem>>, vector<96x16xf32>
    %c96 = arith.constant 96 : index
    %c0_1 = arith.constant 0 : index
    %1 = vector.load %arg1[%c96, %c0_1] : memref<128x16xf32, #tpu.memory_space<vmem>>, vector<16x16xf32>
    %c112 = arith.constant 112 : index
    %c0_2 = arith.constant 0 : index
    %2 = vector.load %arg1[%c112, %c0_2] : memref<128x16xf32, #tpu.memory_space<vmem>>, vector<16x16xf32>
    %c0_3 = arith.constant 0 : index
    %c0_4 = arith.constant 0 : index
    %3 = vector.load %arg3[%c0_3, %c0_4] : memref<128x64xf32, #tpu.memory_space<vmem>>, vector<6x64xf32>
    %c8 = arith.constant 8 : index
    %c0_5 = arith.constant 0 : index
    %4 = vector.load %arg3[%c8, %c0_5] : memref<128x64xf32, #tpu.memory_space<vmem>>, vector<1x64xf32>
    %c16 = arith.constant 16 : index
    %c0_6 = arith.constant 0 : index
    %5 = vector.load %arg3[%c16, %c0_6] : memref<128x64xf32, #tpu.memory_space<vmem>>, vector<64x32xf32>
    %c80 = arith.constant 80 : index
    %c0_7 = arith.constant 0 : index
    %6 = vector.load %arg3[%c80, %c0_7] : memref<128x64xf32, #tpu.memory_space<vmem>>, vector<1x32xf32>
    %c88 = arith.constant 88 : index
    %c0_8 = arith.constant 0 : index
    %7 = vector.load %arg3[%c88, %c0_8] : memref<128x64xf32, #tpu.memory_space<vmem>>, vector<32x2xf32>
    %c120 = arith.constant 120 : index
    %c0_9 = arith.constant 0 : index
    %8 = vector.load %arg3[%c120, %c0_9] : memref<128x64xf32, #tpu.memory_space<vmem>>, vector<1x2xf32>
    %cst = arith.constant dense<0.000000e+00> : vector<16x16xf32>
    %9 = tpu.matmul %1, %2, %cst {dimension_numbers = #tpu.dot_dimension_numbers<[1], [0], [0], [1], [0, 0, 1, 1], [], []>} : vector<16x16xf32>, vector<16x16xf32>, vector<16x16xf32> -> vector<16x16xf32>
    %cst_10 = arith.constant 0.000000e+00 : f32
    %10 = vector.broadcast %cst_10 : f32 to vector<16x16xf32>
    %11 = arith.maximumf %9, %10 : vector<16x16xf32>
    %cst_11 = arith.constant dense<0xFF800000> : vector<16xf32>
    %12 = vector.multi_reduction <maximumf>, %11, %cst_11 [1] : vector<16x16xf32> to vector<16xf32>
    %13 = vector.shape_cast %12 : vector<16xf32> to vector<16x1xf32>
    %14 = vector.broadcast %13 : vector<16x1xf32> to vector<16x16xf32>
    %15 = arith.subf %11, %14 : vector<16x16xf32>
    %16 = math.exp %15 : vector<16x16xf32>
    %cst_12 = arith.constant dense<0.000000e+00> : vector<16xf32>
    %17 = vector.multi_reduction <add>, %16, %cst_12 [1] : vector<16x16xf32> to vector<16xf32>
    %18 = vector.shape_cast %17 : vector<16xf32> to vector<16x1xf32>
    %19 = tpu.reciprocal %18 {approx = true} : vector<16x1xf32> -> vector<16x1xf32>
    %20 = arith.mulf %18, %19 : vector<16x1xf32>
    %cst_13 = arith.constant 2.000000e+00 : f32
    %21 = vector.broadcast %cst_13 : f32 to vector<16x1xf32>
    %22 = arith.subf %21, %20 : vector<16x1xf32>
    %23 = arith.mulf %19, %22 : vector<16x1xf32>
    %24 = vector.broadcast %23 : vector<16x1xf32> to vector<16x16xf32>
    %25 = arith.mulf %16, %24 : vector<16x16xf32>
    %cst_14 = arith.constant dense<0.000000e+00> : vector<16x16xf32>
    %26 = tpu.matmul %25, %25, %cst_14 {dimension_numbers = #tpu.dot_dimension_numbers<[1], [0], [0], [1], [0, 0, 1, 1], [], []>} : vector<16x16xf32>, vector<16x16xf32>, vector<16x16xf32> -> vector<16x16xf32>
    %cst_15 = arith.constant dense<0.000000e+00> : vector<16x16xf32>
    %27 = tpu.matmul %26, %26, %cst_15 {dimension_numbers = #tpu.dot_dimension_numbers<[1], [0], [0], [1], [0, 0, 1, 1], [], []>} : vector<16x16xf32>, vector<16x16xf32>, vector<16x16xf32> -> vector<16x16xf32>
    %28 = tpu.concatenate %25, %26, %27 in 0 : vector<16x16xf32>, vector<16x16xf32>, vector<16x16xf32> -> vector<48x16xf32>
    %c0_16 = arith.constant 0 : index
    %c0_17 = arith.constant 0 : index
    %29 = vector.load %arg0[%c0_16, %c0_17] : memref<16x6xf32, #tpu.memory_space<vmem>>, vector<16x6xf32>
    %cst_18 = arith.constant dense<0.000000e+00> : vector<16x64xf32>
    %30 = tpu.matmul %29, %3, %cst_18 {dimension_numbers = #tpu.dot_dimension_numbers<[1], [0], [0], [1], [0, 0, 1, 1], [], []>} : vector<16x6xf32>, vector<6x64xf32>, vector<16x64xf32> -> vector<16x64xf32>
    %31 = vector.broadcast %4 : vector<1x64xf32> to vector<16x64xf32>
    %32 = arith.addf %30, %31 : vector<16x64xf32>
    %cst_19 = arith.constant dense<0.000000e+00> : vector<96x64xf32>
    %33 = tpu.matmul %0, %32, %cst_19 {dimension_numbers = #tpu.dot_dimension_numbers<[1], [0], [0], [1], [0, 0, 1, 1], [], []>} : vector<96x16xf32>, vector<16x64xf32>, vector<96x64xf32> -> vector<96x64xf32>
    %cst_20 = arith.constant dense<0.000000e+00> : vector<48x64xf32>
    %34 = tpu.matmul %28, %32, %cst_20 {dimension_numbers = #tpu.dot_dimension_numbers<[1], [0], [0], [1], [0, 0, 1, 1], [], []>} : vector<48x16xf32>, vector<16x64xf32>, vector<48x64xf32> -> vector<48x64xf32>
    %35 = vector.extract_strided_slice %33 {offsets = [0, 0], sizes = [16, 64], strides = [1, 1]} : vector<96x64xf32> to vector<16x64xf32>
    %c0_21 = arith.constant 0 : index
    %c0_22 = arith.constant 0 : index
    %c0_23 = arith.constant 0 : index
    %c0_24 = arith.constant 0 : index
    %36 = vector.load %arg2[%c0_21, %c0_22, %c0_23, %c0_24] : memref<3x9x64x64xf32, #tpu.memory_space<vmem>>, vector<1x1x64x64xf32>
    %37 = vector.shape_cast %36 : vector<1x1x64x64xf32> to vector<64x64xf32>
    %cst_25 = arith.constant dense<0.000000e+00> : vector<16x64xf32>
    %38 = tpu.matmul %35, %37, %cst_25 {dimension_numbers = #tpu.dot_dimension_numbers<[1], [0], [0], [1], [0, 0, 1, 1], [], []>} : vector<16x64xf32>, vector<64x64xf32>, vector<16x64xf32> -> vector<16x64xf32>
    %39 = vector.extract_strided_slice %33 {offsets = [16, 0], sizes = [16, 64], strides = [1, 1]} : vector<96x64xf32> to vector<16x64xf32>
    %c0_26 = arith.constant 0 : index
    %c1 = arith.constant 1 : index
    %c0_27 = arith.constant 0 : index
    %c0_28 = arith.constant 0 : index
    %40 = vector.load %arg2[%c0_26, %c1, %c0_27, %c0_28] : memref<3x9x64x64xf32, #tpu.memory_space<vmem>>, vector<1x1x64x64xf32>
    %41 = vector.shape_cast %40 : vector<1x1x64x64xf32> to vector<64x64xf32>
    %cst_29 = arith.constant dense<0.000000e+00> : vector<16x64xf32>
    %42 = tpu.matmul %39, %41, %cst_29 {dimension_numbers = #tpu.dot_dimension_numbers<[1], [0], [0], [1], [0, 0, 1, 1], [], []>} : vector<16x64xf32>, vector<64x64xf32>, vector<16x64xf32> -> vector<16x64xf32>
    %43 = arith.addf %38, %42 : vector<16x64xf32>
    %44 = vector.extract_strided_slice %33 {offsets = [32, 0], sizes = [16, 64], strides = [1, 1]} : vector<96x64xf32> to vector<16x64xf32>
    %c0_30 = arith.constant 0 : index
    %c2 = arith.constant 2 : index
    %c0_31 = arith.constant 0 : index
    %c0_32 = arith.constant 0 : index
    %45 = vector.load %arg2[%c0_30, %c2, %c0_31, %c0_32] : memref<3x9x64x64xf32, #tpu.memory_space<vmem>>, vector<1x1x64x64xf32>
    %46 = vector.shape_cast %45 : vector<1x1x64x64xf32> to vector<64x64xf32>
    %cst_33 = arith.constant dense<0.000000e+00> : vector<16x64xf32>
    %47 = tpu.matmul %44, %46, %cst_33 {dimension_numbers = #tpu.dot_dimension_numbers<[1], [0], [0], [1], [0, 0, 1, 1], [], []>} : vector<16x64xf32>, vector<64x64xf32>, vector<16x64xf32> -> vector<16x64xf32>
    %48 = arith.addf %43, %47 : vector<16x64xf32>
    %49 = vector.extract_strided_slice %33 {offsets = [48, 0], sizes = [16, 64], strides = [1, 1]} : vector<96x64xf32> to vector<16x64xf32>
    %c0_34 = arith.constant 0 : index
    %c3 = arith.constant 3 : index
    %c0_35 = arith.constant 0 : index
    %c0_36 = arith.constant 0 : index
    %50 = vector.load %arg2[%c0_34, %c3, %c0_35, %c0_36] : memref<3x9x64x64xf32, #tpu.memory_space<vmem>>, vector<1x1x64x64xf32>
    %51 = vector.shape_cast %50 : vector<1x1x64x64xf32> to vector<64x64xf32>
    %cst_37 = arith.constant dense<0.000000e+00> : vector<16x64xf32>
    %52 = tpu.matmul %49, %51, %cst_37 {dimension_numbers = #tpu.dot_dimension_numbers<[1], [0], [0], [1], [0, 0, 1, 1], [], []>} : vector<16x64xf32>, vector<64x64xf32>, vector<16x64xf32> -> vector<16x64xf32>
    %53 = arith.addf %48, %52 : vector<16x64xf32>
    %54 = vector.extract_strided_slice %33 {offsets = [64, 0], sizes = [16, 64], strides = [1, 1]} : vector<96x64xf32> to vector<16x64xf32>
    %c0_38 = arith.constant 0 : index
    %c4 = arith.constant 4 : index
    %c0_39 = arith.constant 0 : index
    %c0_40 = arith.constant 0 : index
    %55 = vector.load %arg2[%c0_38, %c4, %c0_39, %c0_40] : memref<3x9x64x64xf32, #tpu.memory_space<vmem>>, vector<1x1x64x64xf32>
    %56 = vector.shape_cast %55 : vector<1x1x64x64xf32> to vector<64x64xf32>
    %cst_41 = arith.constant dense<0.000000e+00> : vector<16x64xf32>
    %57 = tpu.matmul %54, %56, %cst_41 {dimension_numbers = #tpu.dot_dimension_numbers<[1], [0], [0], [1], [0, 0, 1, 1], [], []>} : vector<16x64xf32>, vector<64x64xf32>, vector<16x64xf32> -> vector<16x64xf32>
    %58 = arith.addf %53, %57 : vector<16x64xf32>
    %59 = vector.extract_strided_slice %33 {offsets = [80, 0], sizes = [16, 64], strides = [1, 1]} : vector<96x64xf32> to vector<16x64xf32>
    %c0_42 = arith.constant 0 : index
    %c5 = arith.constant 5 : index
    %c0_43 = arith.constant 0 : index
    %c0_44 = arith.constant 0 : index
    %60 = vector.load %arg2[%c0_42, %c5, %c0_43, %c0_44] : memref<3x9x64x64xf32, #tpu.memory_space<vmem>>, vector<1x1x64x64xf32>
    %61 = vector.shape_cast %60 : vector<1x1x64x64xf32> to vector<64x64xf32>
    %cst_45 = arith.constant dense<0.000000e+00> : vector<16x64xf32>
    %62 = tpu.matmul %59, %61, %cst_45 {dimension_numbers = #tpu.dot_dimension_numbers<[1], [0], [0], [1], [0, 0, 1, 1], [], []>} : vector<16x64xf32>, vector<64x64xf32>, vector<16x64xf32> -> vector<16x64xf32>
    %63 = arith.addf %58, %62 : vector<16x64xf32>
    %64 = vector.extract_strided_slice %34 {offsets = [0, 0], sizes = [16, 64], strides = [1, 1]} : vector<48x64xf32> to vector<16x64xf32>
    %c0_46 = arith.constant 0 : index
    %c6 = arith.constant 6 : index
    %c0_47 = arith.constant 0 : index
    %c0_48 = arith.constant 0 : index
    %65 = vector.load %arg2[%c0_46, %c6, %c0_47, %c0_48] : memref<3x9x64x64xf32, #tpu.memory_space<vmem>>, vector<1x1x64x64xf32>
    %66 = vector.shape_cast %65 : vector<1x1x64x64xf32> to vector<64x64xf32>
    %cst_49 = arith.constant dense<0.000000e+00> : vector<16x64xf32>
    %67 = tpu.matmul %64, %66, %cst_49 {dimension_numbers = #tpu.dot_dimension_numbers<[1], [0], [0], [1], [0, 0, 1, 1], [], []>} : vector<16x64xf32>, vector<64x64xf32>, vector<16x64xf32> -> vector<16x64xf32>
    %68 = arith.addf %63, %67 : vector<16x64xf32>
    %69 = vector.extract_strided_slice %34 {offsets = [16, 0], sizes = [16, 64], strides = [1, 1]} : vector<48x64xf32> to vector<16x64xf32>
    %c0_50 = arith.constant 0 : index
    %c7 = arith.constant 7 : index
    %c0_51 = arith.constant 0 : index
    %c0_52 = arith.constant 0 : index
    %70 = vector.load %arg2[%c0_50, %c7, %c0_51, %c0_52] : memref<3x9x64x64xf32, #tpu.memory_space<vmem>>, vector<1x1x64x64xf32>
    %71 = vector.shape_cast %70 : vector<1x1x64x64xf32> to vector<64x64xf32>
    %cst_53 = arith.constant dense<0.000000e+00> : vector<16x64xf32>
    %72 = tpu.matmul %69, %71, %cst_53 {dimension_numbers = #tpu.dot_dimension_numbers<[1], [0], [0], [1], [0, 0, 1, 1], [], []>} : vector<16x64xf32>, vector<64x64xf32>, vector<16x64xf32> -> vector<16x64xf32>
    %73 = arith.addf %68, %72 : vector<16x64xf32>
    %74 = vector.extract_strided_slice %34 {offsets = [32, 0], sizes = [16, 64], strides = [1, 1]} : vector<48x64xf32> to vector<16x64xf32>
    %c0_54 = arith.constant 0 : index
    %c8_55 = arith.constant 8 : index
    %c0_56 = arith.constant 0 : index
    %c0_57 = arith.constant 0 : index
    %75 = vector.load %arg2[%c0_54, %c8_55, %c0_56, %c0_57] : memref<3x9x64x64xf32, #tpu.memory_space<vmem>>, vector<1x1x64x64xf32>
    %76 = vector.shape_cast %75 : vector<1x1x64x64xf32> to vector<64x64xf32>
    %cst_58 = arith.constant dense<0.000000e+00> : vector<16x64xf32>
    %77 = tpu.matmul %74, %76, %cst_58 {dimension_numbers = #tpu.dot_dimension_numbers<[1], [0], [0], [1], [0, 0, 1, 1], [], []>} : vector<16x64xf32>, vector<64x64xf32>, vector<16x64xf32> -> vector<16x64xf32>
    %78 = arith.addf %73, %77 : vector<16x64xf32>
    %c9 = arith.constant 9 : index
    %c0_59 = arith.constant 0 : index
    %79 = vector.load %arg3[%c9, %c0_59] : memref<128x64xf32, #tpu.memory_space<vmem>>, vector<1x64xf32>
    %80 = vector.broadcast %79 : vector<1x64xf32> to vector<16x64xf32>
    %81 = arith.addf %78, %80 : vector<16x64xf32>
    %cst_60 = arith.constant dense<0.000000e+00> : vector<96x64xf32>
    %82 = tpu.matmul %0, %81, %cst_60 {dimension_numbers = #tpu.dot_dimension_numbers<[1], [0], [0], [1], [0, 0, 1, 1], [], []>} : vector<96x16xf32>, vector<16x64xf32>, vector<96x64xf32> -> vector<96x64xf32>
    %cst_61 = arith.constant dense<0.000000e+00> : vector<48x64xf32>
    %83 = tpu.matmul %28, %81, %cst_61 {dimension_numbers = #tpu.dot_dimension_numbers<[1], [0], [0], [1], [0, 0, 1, 1], [], []>} : vector<48x16xf32>, vector<16x64xf32>, vector<48x64xf32> -> vector<48x64xf32>
    %84 = vector.extract_strided_slice %82 {offsets = [0, 0], sizes = [16, 64], strides = [1, 1]} : vector<96x64xf32> to vector<16x64xf32>
    %c1_62 = arith.constant 1 : index
    %c0_63 = arith.constant 0 : index
    %c0_64 = arith.constant 0 : index
    %c0_65 = arith.constant 0 : index
    %85 = vector.load %arg2[%c1_62, %c0_63, %c0_64, %c0_65] : memref<3x9x64x64xf32, #tpu.memory_space<vmem>>, vector<1x1x64x64xf32>
    %86 = vector.shape_cast %85 : vector<1x1x64x64xf32> to vector<64x64xf32>
    %cst_66 = arith.constant dense<0.000000e+00> : vector<16x64xf32>
    %87 = tpu.matmul %84, %86, %cst_66 {dimension_numbers = #tpu.dot_dimension_numbers<[1], [0], [0], [1], [0, 0, 1, 1], [], []>} : vector<16x64xf32>, vector<64x64xf32>, vector<16x64xf32> -> vector<16x64xf32>
    %88 = vector.extract_strided_slice %82 {offsets = [16, 0], sizes = [16, 64], strides = [1, 1]} : vector<96x64xf32> to vector<16x64xf32>
    %c1_67 = arith.constant 1 : index
    %c1_68 = arith.constant 1 : index
    %c0_69 = arith.constant 0 : index
    %c0_70 = arith.constant 0 : index
    %89 = vector.load %arg2[%c1_67, %c1_68, %c0_69, %c0_70] : memref<3x9x64x64xf32, #tpu.memory_space<vmem>>, vector<1x1x64x64xf32>
    %90 = vector.shape_cast %89 : vector<1x1x64x64xf32> to vector<64x64xf32>
    %cst_71 = arith.constant dense<0.000000e+00> : vector<16x64xf32>
    %91 = tpu.matmul %88, %90, %cst_71 {dimension_numbers = #tpu.dot_dimension_numbers<[1], [0], [0], [1], [0, 0, 1, 1], [], []>} : vector<16x64xf32>, vector<64x64xf32>, vector<16x64xf32> -> vector<16x64xf32>
    %92 = arith.addf %87, %91 : vector<16x64xf32>
    %93 = vector.extract_strided_slice %82 {offsets = [32, 0], sizes = [16, 64], strides = [1, 1]} : vector<96x64xf32> to vector<16x64xf32>
    %c1_72 = arith.constant 1 : index
    %c2_73 = arith.constant 2 : index
    %c0_74 = arith.constant 0 : index
    %c0_75 = arith.constant 0 : index
    %94 = vector.load %arg2[%c1_72, %c2_73, %c0_74, %c0_75] : memref<3x9x64x64xf32, #tpu.memory_space<vmem>>, vector<1x1x64x64xf32>
    %95 = vector.shape_cast %94 : vector<1x1x64x64xf32> to vector<64x64xf32>
    %cst_76 = arith.constant dense<0.000000e+00> : vector<16x64xf32>
    %96 = tpu.matmul %93, %95, %cst_76 {dimension_numbers = #tpu.dot_dimension_numbers<[1], [0], [0], [1], [0, 0, 1, 1], [], []>} : vector<16x64xf32>, vector<64x64xf32>, vector<16x64xf32> -> vector<16x64xf32>
    %97 = arith.addf %92, %96 : vector<16x64xf32>
    %98 = vector.extract_strided_slice %82 {offsets = [48, 0], sizes = [16, 64], strides = [1, 1]} : vector<96x64xf32> to vector<16x64xf32>
    %c1_77 = arith.constant 1 : index
    %c3_78 = arith.constant 3 : index
    %c0_79 = arith.constant 0 : index
    %c0_80 = arith.constant 0 : index
    %99 = vector.load %arg2[%c1_77, %c3_78, %c0_79, %c0_80] : memref<3x9x64x64xf32, #tpu.memory_space<vmem>>, vector<1x1x64x64xf32>
    %100 = vector.shape_cast %99 : vector<1x1x64x64xf32> to vector<64x64xf32>
    %cst_81 = arith.constant dense<0.000000e+00> : vector<16x64xf32>
    %101 = tpu.matmul %98, %100, %cst_81 {dimension_numbers = #tpu.dot_dimension_numbers<[1], [0], [0], [1], [0, 0, 1, 1], [], []>} : vector<16x64xf32>, vector<64x64xf32>, vector<16x64xf32> -> vector<16x64xf32>
    %102 = arith.addf %97, %101 : vector<16x64xf32>
    %103 = vector.extract_strided_slice %82 {offsets = [64, 0], sizes = [16, 64], strides = [1, 1]} : vector<96x64xf32> to vector<16x64xf32>
    %c1_82 = arith.constant 1 : index
    %c4_83 = arith.constant 4 : index
    %c0_84 = arith.constant 0 : index
    %c0_85 = arith.constant 0 : index
    %104 = vector.load %arg2[%c1_82, %c4_83, %c0_84, %c0_85] : memref<3x9x64x64xf32, #tpu.memory_space<vmem>>, vector<1x1x64x64xf32>
    %105 = vector.shape_cast %104 : vector<1x1x64x64xf32> to vector<64x64xf32>
    %cst_86 = arith.constant dense<0.000000e+00> : vector<16x64xf32>
    %106 = tpu.matmul %103, %105, %cst_86 {dimension_numbers = #tpu.dot_dimension_numbers<[1], [0], [0], [1], [0, 0, 1, 1], [], []>} : vector<16x64xf32>, vector<64x64xf32>, vector<16x64xf32> -> vector<16x64xf32>
    %107 = arith.addf %102, %106 : vector<16x64xf32>
    %108 = vector.extract_strided_slice %82 {offsets = [80, 0], sizes = [16, 64], strides = [1, 1]} : vector<96x64xf32> to vector<16x64xf32>
    %c1_87 = arith.constant 1 : index
    %c5_88 = arith.constant 5 : index
    %c0_89 = arith.constant 0 : index
    %c0_90 = arith.constant 0 : index
    %109 = vector.load %arg2[%c1_87, %c5_88, %c0_89, %c0_90] : memref<3x9x64x64xf32, #tpu.memory_space<vmem>>, vector<1x1x64x64xf32>
    %110 = vector.shape_cast %109 : vector<1x1x64x64xf32> to vector<64x64xf32>
    %cst_91 = arith.constant dense<0.000000e+00> : vector<16x64xf32>
    %111 = tpu.matmul %108, %110, %cst_91 {dimension_numbers = #tpu.dot_dimension_numbers<[1], [0], [0], [1], [0, 0, 1, 1], [], []>} : vector<16x64xf32>, vector<64x64xf32>, vector<16x64xf32> -> vector<16x64xf32>
    %112 = arith.addf %107, %111 : vector<16x64xf32>
    %113 = vector.extract_strided_slice %83 {offsets = [0, 0], sizes = [16, 64], strides = [1, 1]} : vector<48x64xf32> to vector<16x64xf32>
    %c1_92 = arith.constant 1 : index
    %c6_93 = arith.constant 6 : index
    %c0_94 = arith.constant 0 : index
    %c0_95 = arith.constant 0 : index
    %114 = vector.load %arg2[%c1_92, %c6_93, %c0_94, %c0_95] : memref<3x9x64x64xf32, #tpu.memory_space<vmem>>, vector<1x1x64x64xf32>
    %115 = vector.shape_cast %114 : vector<1x1x64x64xf32> to vector<64x64xf32>
    %cst_96 = arith.constant dense<0.000000e+00> : vector<16x64xf32>
    %116 = tpu.matmul %113, %115, %cst_96 {dimension_numbers = #tpu.dot_dimension_numbers<[1], [0], [0], [1], [0, 0, 1, 1], [], []>} : vector<16x64xf32>, vector<64x64xf32>, vector<16x64xf32> -> vector<16x64xf32>
    %117 = arith.addf %112, %116 : vector<16x64xf32>
    %118 = vector.extract_strided_slice %83 {offsets = [16, 0], sizes = [16, 64], strides = [1, 1]} : vector<48x64xf32> to vector<16x64xf32>
    %c1_97 = arith.constant 1 : index
    %c7_98 = arith.constant 7 : index
    %c0_99 = arith.constant 0 : index
    %c0_100 = arith.constant 0 : index
    %119 = vector.load %arg2[%c1_97, %c7_98, %c0_99, %c0_100] : memref<3x9x64x64xf32, #tpu.memory_space<vmem>>, vector<1x1x64x64xf32>
    %120 = vector.shape_cast %119 : vector<1x1x64x64xf32> to vector<64x64xf32>
    %cst_101 = arith.constant dense<0.000000e+00> : vector<16x64xf32>
    %121 = tpu.matmul %118, %120, %cst_101 {dimension_numbers = #tpu.dot_dimension_numbers<[1], [0], [0], [1], [0, 0, 1, 1], [], []>} : vector<16x64xf32>, vector<64x64xf32>, vector<16x64xf32> -> vector<16x64xf32>
    %122 = arith.addf %117, %121 : vector<16x64xf32>
    %123 = vector.extract_strided_slice %83 {offsets = [32, 0], sizes = [16, 64], strides = [1, 1]} : vector<48x64xf32> to vector<16x64xf32>
    %c1_102 = arith.constant 1 : index
    %c8_103 = arith.constant 8 : index
    %c0_104 = arith.constant 0 : index
    %c0_105 = arith.constant 0 : index
    %124 = vector.load %arg2[%c1_102, %c8_103, %c0_104, %c0_105] : memref<3x9x64x64xf32, #tpu.memory_space<vmem>>, vector<1x1x64x64xf32>
    %125 = vector.shape_cast %124 : vector<1x1x64x64xf32> to vector<64x64xf32>
    %cst_106 = arith.constant dense<0.000000e+00> : vector<16x64xf32>
    %126 = tpu.matmul %123, %125, %cst_106 {dimension_numbers = #tpu.dot_dimension_numbers<[1], [0], [0], [1], [0, 0, 1, 1], [], []>} : vector<16x64xf32>, vector<64x64xf32>, vector<16x64xf32> -> vector<16x64xf32>
    %127 = arith.addf %122, %126 : vector<16x64xf32>
    %c10 = arith.constant 10 : index
    %c0_107 = arith.constant 0 : index
    %128 = vector.load %arg3[%c10, %c0_107] : memref<128x64xf32, #tpu.memory_space<vmem>>, vector<1x64xf32>
    %129 = vector.broadcast %128 : vector<1x64xf32> to vector<16x64xf32>
    %130 = arith.addf %127, %129 : vector<16x64xf32>
    %cst_108 = arith.constant dense<0.000000e+00> : vector<96x64xf32>
    %131 = tpu.matmul %0, %130, %cst_108 {dimension_numbers = #tpu.dot_dimension_numbers<[1], [0], [0], [1], [0, 0, 1, 1], [], []>} : vector<96x16xf32>, vector<16x64xf32>, vector<96x64xf32> -> vector<96x64xf32>
    %cst_109 = arith.constant dense<0.000000e+00> : vector<48x64xf32>
    %132 = tpu.matmul %28, %130, %cst_109 {dimension_numbers = #tpu.dot_dimension_numbers<[1], [0], [0], [1], [0, 0, 1, 1], [], []>} : vector<48x16xf32>, vector<16x64xf32>, vector<48x64xf32> -> vector<48x64xf32>
    %133 = vector.extract_strided_slice %131 {offsets = [0, 0], sizes = [16, 64], strides = [1, 1]} : vector<96x64xf32> to vector<16x64xf32>
    %c2_110 = arith.constant 2 : index
    %c0_111 = arith.constant 0 : index
    %c0_112 = arith.constant 0 : index
    %c0_113 = arith.constant 0 : index
    %134 = vector.load %arg2[%c2_110, %c0_111, %c0_112, %c0_113] : memref<3x9x64x64xf32, #tpu.memory_space<vmem>>, vector<1x1x64x64xf32>
    %135 = vector.shape_cast %134 : vector<1x1x64x64xf32> to vector<64x64xf32>
    %cst_114 = arith.constant dense<0.000000e+00> : vector<16x64xf32>
    %136 = tpu.matmul %133, %135, %cst_114 {dimension_numbers = #tpu.dot_dimension_numbers<[1], [0], [0], [1], [0, 0, 1, 1], [], []>} : vector<16x64xf32>, vector<64x64xf32>, vector<16x64xf32> -> vector<16x64xf32>
    %137 = vector.extract_strided_slice %131 {offsets = [16, 0], sizes = [16, 64], strides = [1, 1]} : vector<96x64xf32> to vector<16x64xf32>
    %c2_115 = arith.constant 2 : index
    %c1_116 = arith.constant 1 : index
    %c0_117 = arith.constant 0 : index
    %c0_118 = arith.constant 0 : index
    %138 = vector.load %arg2[%c2_115, %c1_116, %c0_117, %c0_118] : memref<3x9x64x64xf32, #tpu.memory_space<vmem>>, vector<1x1x64x64xf32>
    %139 = vector.shape_cast %138 : vector<1x1x64x64xf32> to vector<64x64xf32>
    %cst_119 = arith.constant dense<0.000000e+00> : vector<16x64xf32>
    %140 = tpu.matmul %137, %139, %cst_119 {dimension_numbers = #tpu.dot_dimension_numbers<[1], [0], [0], [1], [0, 0, 1, 1], [], []>} : vector<16x64xf32>, vector<64x64xf32>, vector<16x64xf32> -> vector<16x64xf32>
    %141 = arith.addf %136, %140 : vector<16x64xf32>
    %142 = vector.extract_strided_slice %131 {offsets = [32, 0], sizes = [16, 64], strides = [1, 1]} : vector<96x64xf32> to vector<16x64xf32>
    %c2_120 = arith.constant 2 : index
    %c2_121 = arith.constant 2 : index
    %c0_122 = arith.constant 0 : index
    %c0_123 = arith.constant 0 : index
    %143 = vector.load %arg2[%c2_120, %c2_121, %c0_122, %c0_123] : memref<3x9x64x64xf32, #tpu.memory_space<vmem>>, vector<1x1x64x64xf32>
    %144 = vector.shape_cast %143 : vector<1x1x64x64xf32> to vector<64x64xf32>
    %cst_124 = arith.constant dense<0.000000e+00> : vector<16x64xf32>
    %145 = tpu.matmul %142, %144, %cst_124 {dimension_numbers = #tpu.dot_dimension_numbers<[1], [0], [0], [1], [0, 0, 1, 1], [], []>} : vector<16x64xf32>, vector<64x64xf32>, vector<16x64xf32> -> vector<16x64xf32>
    %146 = arith.addf %141, %145 : vector<16x64xf32>
    %147 = vector.extract_strided_slice %131 {offsets = [48, 0], sizes = [16, 64], strides = [1, 1]} : vector<96x64xf32> to vector<16x64xf32>
    %c2_125 = arith.constant 2 : index
    %c3_126 = arith.constant 3 : index
    %c0_127 = arith.constant 0 : index
    %c0_128 = arith.constant 0 : index
    %148 = vector.load %arg2[%c2_125, %c3_126, %c0_127, %c0_128] : memref<3x9x64x64xf32, #tpu.memory_space<vmem>>, vector<1x1x64x64xf32>
    %149 = vector.shape_cast %148 : vector<1x1x64x64xf32> to vector<64x64xf32>
    %cst_129 = arith.constant dense<0.000000e+00> : vector<16x64xf32>
    %150 = tpu.matmul %147, %149, %cst_129 {dimension_numbers = #tpu.dot_dimension_numbers<[1], [0], [0], [1], [0, 0, 1, 1], [], []>} : vector<16x64xf32>, vector<64x64xf32>, vector<16x64xf32> -> vector<16x64xf32>
    %151 = arith.addf %146, %150 : vector<16x64xf32>
    %152 = vector.extract_strided_slice %131 {offsets = [64, 0], sizes = [16, 64], strides = [1, 1]} : vector<96x64xf32> to vector<16x64xf32>
    %c2_130 = arith.constant 2 : index
    %c4_131 = arith.constant 4 : index
    %c0_132 = arith.constant 0 : index
    %c0_133 = arith.constant 0 : index
    %153 = vector.load %arg2[%c2_130, %c4_131, %c0_132, %c0_133] : memref<3x9x64x64xf32, #tpu.memory_space<vmem>>, vector<1x1x64x64xf32>
    %154 = vector.shape_cast %153 : vector<1x1x64x64xf32> to vector<64x64xf32>
    %cst_134 = arith.constant dense<0.000000e+00> : vector<16x64xf32>
    %155 = tpu.matmul %152, %154, %cst_134 {dimension_numbers = #tpu.dot_dimension_numbers<[1], [0], [0], [1], [0, 0, 1, 1], [], []>} : vector<16x64xf32>, vector<64x64xf32>, vector<16x64xf32> -> vector<16x64xf32>
    %156 = arith.addf %151, %155 : vector<16x64xf32>
    %157 = vector.extract_strided_slice %131 {offsets = [80, 0], sizes = [16, 64], strides = [1, 1]} : vector<96x64xf32> to vector<16x64xf32>
    %c2_135 = arith.constant 2 : index
    %c5_136 = arith.constant 5 : index
    %c0_137 = arith.constant 0 : index
    %c0_138 = arith.constant 0 : index
    %158 = vector.load %arg2[%c2_135, %c5_136, %c0_137, %c0_138] : memref<3x9x64x64xf32, #tpu.memory_space<vmem>>, vector<1x1x64x64xf32>
    %159 = vector.shape_cast %158 : vector<1x1x64x64xf32> to vector<64x64xf32>
    %cst_139 = arith.constant dense<0.000000e+00> : vector<16x64xf32>
    %160 = tpu.matmul %157, %159, %cst_139 {dimension_numbers = #tpu.dot_dimension_numbers<[1], [0], [0], [1], [0, 0, 1, 1], [], []>} : vector<16x64xf32>, vector<64x64xf32>, vector<16x64xf32> -> vector<16x64xf32>
    %161 = arith.addf %156, %160 : vector<16x64xf32>
    %162 = vector.extract_strided_slice %132 {offsets = [0, 0], sizes = [16, 64], strides = [1, 1]} : vector<48x64xf32> to vector<16x64xf32>
    %c2_140 = arith.constant 2 : index
    %c6_141 = arith.constant 6 : index
    %c0_142 = arith.constant 0 : index
    %c0_143 = arith.constant 0 : index
    %163 = vector.load %arg2[%c2_140, %c6_141, %c0_142, %c0_143] : memref<3x9x64x64xf32, #tpu.memory_space<vmem>>, vector<1x1x64x64xf32>
    %164 = vector.shape_cast %163 : vector<1x1x64x64xf32> to vector<64x64xf32>
    %cst_144 = arith.constant dense<0.000000e+00> : vector<16x64xf32>
    %165 = tpu.matmul %162, %164, %cst_144 {dimension_numbers = #tpu.dot_dimension_numbers<[1], [0], [0], [1], [0, 0, 1, 1], [], []>} : vector<16x64xf32>, vector<64x64xf32>, vector<16x64xf32> -> vector<16x64xf32>
    %166 = arith.addf %161, %165 : vector<16x64xf32>
    %167 = vector.extract_strided_slice %132 {offsets = [16, 0], sizes = [16, 64], strides = [1, 1]} : vector<48x64xf32> to vector<16x64xf32>
    %c2_145 = arith.constant 2 : index
    %c7_146 = arith.constant 7 : index
    %c0_147 = arith.constant 0 : index
    %c0_148 = arith.constant 0 : index
    %168 = vector.load %arg2[%c2_145, %c7_146, %c0_147, %c0_148] : memref<3x9x64x64xf32, #tpu.memory_space<vmem>>, vector<1x1x64x64xf32>
    %169 = vector.shape_cast %168 : vector<1x1x64x64xf32> to vector<64x64xf32>
    %cst_149 = arith.constant dense<0.000000e+00> : vector<16x64xf32>
    %170 = tpu.matmul %167, %169, %cst_149 {dimension_numbers = #tpu.dot_dimension_numbers<[1], [0], [0], [1], [0, 0, 1, 1], [], []>} : vector<16x64xf32>, vector<64x64xf32>, vector<16x64xf32> -> vector<16x64xf32>
    %171 = arith.addf %166, %170 : vector<16x64xf32>
    %172 = vector.extract_strided_slice %132 {offsets = [32, 0], sizes = [16, 64], strides = [1, 1]} : vector<48x64xf32> to vector<16x64xf32>
    %c2_150 = arith.constant 2 : index
    %c8_151 = arith.constant 8 : index
    %c0_152 = arith.constant 0 : index
    %c0_153 = arith.constant 0 : index
    %173 = vector.load %arg2[%c2_150, %c8_151, %c0_152, %c0_153] : memref<3x9x64x64xf32, #tpu.memory_space<vmem>>, vector<1x1x64x64xf32>
    %174 = vector.shape_cast %173 : vector<1x1x64x64xf32> to vector<64x64xf32>
    %cst_154 = arith.constant dense<0.000000e+00> : vector<16x64xf32>
    %175 = tpu.matmul %172, %174, %cst_154 {dimension_numbers = #tpu.dot_dimension_numbers<[1], [0], [0], [1], [0, 0, 1, 1], [], []>} : vector<16x64xf32>, vector<64x64xf32>, vector<16x64xf32> -> vector<16x64xf32>
    %176 = arith.addf %171, %175 : vector<16x64xf32>
    %c11 = arith.constant 11 : index
    %c0_155 = arith.constant 0 : index
    %177 = vector.load %arg3[%c11, %c0_155] : memref<128x64xf32, #tpu.memory_space<vmem>>, vector<1x64xf32>
    %178 = vector.broadcast %177 : vector<1x64xf32> to vector<16x64xf32>
    %179 = arith.addf %176, %178 : vector<16x64xf32>
    %cst_156 = arith.constant dense<0.000000e+00> : vector<16x32xf32>
    %180 = tpu.matmul %179, %5, %cst_156 {dimension_numbers = #tpu.dot_dimension_numbers<[1], [0], [0], [1], [0, 0, 1, 1], [], []>} : vector<16x64xf32>, vector<64x32xf32>, vector<16x32xf32> -> vector<16x32xf32>
    %181 = vector.broadcast %6 : vector<1x32xf32> to vector<16x32xf32>
    %182 = arith.addf %180, %181 : vector<16x32xf32>
    %cst_157 = arith.constant 0.000000e+00 : f32
    %183 = vector.broadcast %cst_157 : f32 to vector<16x32xf32>
    %184 = arith.maximumf %182, %183 : vector<16x32xf32>
    %cst_158 = arith.constant dense<0.000000e+00> : vector<16x2xf32>
    %185 = tpu.matmul %184, %7, %cst_158 {dimension_numbers = #tpu.dot_dimension_numbers<[1], [0], [0], [1], [0, 0, 1, 1], [], []>} : vector<16x32xf32>, vector<32x2xf32>, vector<16x2xf32> -> vector<16x2xf32>
    %186 = vector.broadcast %8 : vector<1x2xf32> to vector<16x2xf32>
    %187 = arith.addf %185, %186 : vector<16x2xf32>
    %c0_159 = arith.constant 0 : index
    %c0_160 = arith.constant 0 : index
    %188 = vector.load %arg4[%c0_159, %c0_160] : memref<16x2xf32, #tpu.memory_space<vmem>>, vector<16x2xf32>
    tpu.vector_store %arg4[%c0_159, %c0_160], %187 {strides = array<i32>} : memref<16x2xf32, #tpu.memory_space<vmem>>, vector<16x2xf32>,
    return
  }
}

</mosaic_0001>

<llo_original>
// kernel: grid_gcn_forward.1
$region0: #{grid_gcn_forward.1}
  #allocation0 [shape = 'u32[]', space=smem, size = 0x4, offset = 0x4, fixed_abs, tag = 'smem constant byte address 0x4 - core index']
  #allocation1 [shape = 'u32[144,128]{1,0:T(1,128)}', space=vmem, size = 0x12000, scoped, tag = 'internal scratch']
  %s0 = inlined_call_operand.vmem [shape: f32[16,6], index: 0, kind: input, shape index: {}]
  %s1 = inlined_call_operand.vmem [shape: f32[128,16], index: 1, kind: input, shape index: {}]
  %s2 = inlined_call_operand.hbm [shape: f32[3,9,64,64], index: 2, kind: input, shape index: {}]
  %s3 = inlined_call_operand.vmem [shape: f32[128,64], index: 3, kind: input, shape index: {}]
  %s4 = inlined_call_operand.vmem [shape: f32[16,2], index: 4, kind: output, shape index: {}]
  %s5 = sld [smem:[#allocation0]]
  $region30: #{grid_gcn_forward.1} parent=0
    _
  %s7 = ssub.s32 1, %s5
  %s8 = scalar_select 0, %s7, %s5
  $region1: #{grid_gcn_forward.1} parent=0
    #allocation2 [shape = 'u8[884736]{0}', space=vmem, size = 0xd8000, scoped, tag = 'input window, operand 2, single buffered']
    #allocation3 [shape = 's32[1]{0}', space=sflag, size = 0x4, scoped, tag = 'scoped memory for grid_gcn_forward.1']
    %9 = vsyncpa [#allocation3], 0
    // Predicated region
    $region2: #{grid_gcn_forward.1} parent=1 // pred_check
      _
    $region3: #{grid_gcn_forward.1} parent=1 // pred_check_branch
      %11 = sbr.rel (0) target = $region5
    $region4: #{grid_gcn_forward.1} parent=1 // pred_region
      _
    $region5: #{grid_gcn_forward.1} parent=1 // pred_fallthru
      _
    // Predicated region
    $region6: #{grid_gcn_forward.1} parent=1 // pred_check
      _
    $region7: #{grid_gcn_forward.1} parent=1 // pred_check_branch
      %13 = sbr.rel (0) target = $region9
    $region8: #{grid_gcn_forward.1} parent=1 // pred_region
      _
    $region9: #{grid_gcn_forward.1} parent=1 // pred_fallthru
      _
    // Predicated region
    $region10: #{grid_gcn_forward.1} parent=1 // pred_check
      _
    $region11: #{grid_gcn_forward.1} parent=1 // pred_check_branch
      %15 = sbr.rel (0) target = $region13
    $region12: #{grid_gcn_forward.1} parent=1 // pred_region
      %s17 = ssub.s32 27648, 27648
      %18 = vsyncadd [#allocation3], %s17
      %s19 = sshll.u32 [#allocation2], 4
      %s20 = int_to_ptr.vmem [resolvable:$true] %s19
      %25 = dma.hbm_to_vmem [thread:$0]  %s2, 27648, %s20, [#allocation3], 128, 128, 8
    $region13: #{grid_gcn_forward.1} parent=1 // pred_fallthru
      _
    // Predicated region
    $region14: #{grid_gcn_forward.1} parent=1 // pred_check
      _
    $region15: #{grid_gcn_forward.1} parent=1 // pred_check_branch
      %27 = sbr.rel (0) target = $region17
    $region16: #{grid_gcn_forward.1} parent=1 // pred_region
      _
    $region17: #{grid_gcn_forward.1} parent=1 // pred_fallthru
      _
    // Predicated region
    $region18: #{grid_gcn_forward.1} parent=1 // pred_check
      _
    $region19: #{grid_gcn_forward.1} parent=1 // pred_check_branch
      %29 = sbr.rel (0) target = $region21
    $region20: #{grid_gcn_forward.1} parent=1 // pred_region
      %30 = dma.done [#allocation3], 27648
    $region21: #{grid_gcn_forward.1} parent=1 // pred_fallthru
      _
    %v31 = vld [vmem:[%s1] sm:$0xff]
    %v32 = vld [vmem:[%s1 + $0x8] sm:$0xff]
    %v33 = vld [vmem:[%s1 + $0x10] sm:$0xff]
    %v34 = vld [vmem:[%s1 + $0x18] sm:$0xff]
    %v35 = vld [vmem:[%s1 + $0x20] sm:$0xff]
    %v36 = vld [vmem:[%s1 + $0x28] sm:$0xff]
    %v37 = vld [vmem:[%s1 + $0x30] sm:$0xff]
    %v38 = vld [vmem:[%s1 + $0x38] sm:$0xff]
    %v39 = vld [vmem:[%s1 + $0x40] sm:$0xff]
    %v40 = vld [vmem:[%s1 + $0x48] sm:$0xff]
    %v41 = vld [vmem:[%s1 + $0x50] sm:$0xff]
    %v42 = vld [vmem:[%s1 + $0x58] sm:$0xff]
    %v43 = vld [vmem:[%s1 + $0x60] sm:$0xff]
    %v44 = vld [vmem:[%s1 + $0x68] sm:$0xff]
    %v45 = vld [vmem:[%s1 + $0x70] sm:$0xff]
    %v46 = vld [vmem:[%s1 + $0x78] sm:$0xff]
    %v47 = vld [vmem:[%s3] sm:$0x3f]
    %v48 = vld [vmem:[%s3 + $0x8] sm:$0x1]
    %v49 = vld [vmem:[%s3 + $0x10] sm:$0xff]
    %v50 = vld [vmem:[%s3 + $0x18] sm:$0xff]
    %v51 = vld [vmem:[%s3 + $0x20] sm:$0xff]
    %v52 = vld [vmem:[%s3 + $0x28] sm:$0xff]
    %v53 = vld [vmem:[%s3 + $0x30] sm:$0xff]
    %v54 = vld [vmem:[%s3 + $0x38] sm:$0xff]
    %v55 = vld [vmem:[%s3 + $0x40] sm:$0xff]
    %v56 = vld [vmem:[%s3 + $0x48] sm:$0xff]
    %v57 = vld [vmem:[%s3 + $0x50] sm:$0x1]
    %v58 = vld [vmem:[%s3 + $0x58] sm:$0xff]
    %v59 = vld [vmem:[%s3 + $0x60] sm:$0xff]
    %v60 = vld [vmem:[%s3 + $0x68] sm:$0xff]
    %v61 = vld [vmem:[%s3 + $0x70] sm:$0xff]
    %v62 = vld [vmem:[%s3 + $0x78] sm:$0x1]
    %vm63 = vcmask 130048
    %v65 = vsel %vm63, %v43, 0
    %v68 = vsel %vm63, %v44, 0
    %70 = vmatprep.subr.mxu0 0.0
    %71 = vmatpush1.msra.mxu0 0.0
    %72 = vmatprep.subr.mxu0 0.0
    %73 = vmatpush1.msra.mxu0 0.0
    %74 = vmatprep.subr.mxu0 0.0
    %75 = vmatpush1.msra.mxu0 0.0
    %76 = vmatprep.subr.mxu0 0.0
    %77 = vmatpush1.msra.mxu0 0.0
    %78 = vmatprep.subr.mxu0 0.0
    %79 = vmatpush1.msra.mxu0 0.0
    %80 = vmatprep.subr.mxu0 0.0
    %81 = vmatpush1.msra.mxu0 0.0
    %82 = vmatprep.subr.mxu0 0.0
    %83 = vmatpush1.msra.mxu0 0.0
    %84 = vmatprep.subr.mxu0 0.0
    %85 = vmatpush1.msra.mxu0 0.0
    %86 = vmatprep.subr.mxu0 0.0
    %87 = vmatpush1.msra.mxu0 0.0
    %88 = vmatprep.subr.mxu0 0.0
    %89 = vmatpush1.msra.mxu0 0.0
    %90 = vmatprep.subr.mxu0 0.0
    %91 = vmatpush1.msra.mxu0 0.0
    %92 = vmatprep.subr.mxu0 0.0
    %93 = vmatpush1.msra.mxu0 0.0
    %94 = vmatprep.subr.mxu0 0.0
    %95 = vmatpush1.msra.mxu0 0.0
    %96 = vmatprep.subr.mxu0 0.0
    %97 = vmatpush1.msra.mxu0 0.0
    %98 = vmatprep.subr.mxu0 0.0
    %99 = vmatpush1.msra.mxu0 %v46
    %100 = vmatprep.subr.mxu0 0.0
    %101 = vmatpush1.msra.mxu0 %v45
    %102 = vmatprep.subr.mxu0 0.0
    %103 = vmatpush2.msra.mxu0 0.0
    %104 = vmatprep.subr.mxu0 0.0
    %105 = vmatpush2.msra.mxu0 0.0
    %106 = vmatprep.subr.mxu0 0.0
    %107 = vmatpush2.msra.mxu0 0.0
    %108 = vmatprep.subr.mxu0 0.0
    %109 = vmatpush2.msra.mxu0 0.0
    %110 = vmatprep.subr.mxu0 0.0
    %111 = vmatpush2.msra.mxu0 0.0
    %112 = vmatprep.subr.mxu0 0.0
    %113 = vmatpush2.msra.mxu0 0.0
    %114 = vmatprep.subr.mxu0 0.0
    %115 = vmatpush2.msra.mxu0 0.0
    %116 = vmatprep.subr.mxu0 0.0
    %117 = vmatpush2.msra.mxu0 0.0
    %118 = vmatprep.subr.mxu0 0.0
    %119 = vmatpush2.msra.mxu0 0.0
    %120 = vmatprep.subr.mxu0 0.0
    %121 = vmatpush2.msra.mxu0 0.0
    %122 = vmatprep.subr.mxu0 0.0
    %123 = vmatpush2.msra.mxu0 0.0
    %124 = vmatprep.subr.mxu0 0.0
    %125 = vmatpush2.msra.mxu0 0.0
    %126 = vmatprep.subr.mxu0 0.0
    %127 = vmatpush2.msra.mxu0 0.0
    %128 = vmatprep.subr.mxu0 0.0
    %129 = vmatpush2.msra.mxu0 0.0
    %130 = vmatprep.subr.mxu0 0.0
    %131 = vmatpush2.msra.mxu0 0.0
    %132 = vmatprep.subr.mxu0 0.0
    %133 = vmatpush2.msra.mxu0 0.0
    %134 = vmatprep.mubr.f32.mxu0 0.0
    %135 = vmatmul.mubr.f32.gmra.mxu0 %v65
    %v136 = vpop.f32.mrf.mxu0
    %v137 = vadd.f32 0.0, %v136
    %v138 = vpop.f32.mrf.mxu0
    %139 = vmatprep.mubr.f32.mxu0 0.0
    %140 = vmatmul.mubr.f32.gmra.mxu0 %v68
    %v141 = vpop.f32.mrf.mxu0
    %v142 = vadd.f32 0.0, %v141
    %v143 = vpop.f32.mrf.mxu0
    %144 = vdwg.mxu0
    %v145 = vmax.f32 %v137, 0.0
    %v146 = vmax.f32 %v142, 0.0
    %v147 = vsel %vm63, %v145, -inf
    %148 = vmax.xlane.f32.xlu0 %v147
    %v149 = vpop.xlane.xlu0 %148
    %v150 = vsel %vm63, %v146, -inf
    %151 = vmax.xlane.f32.xlu0 %v150
    %v152 = vpop.xlane.xlu0 %151
    %v153 = vsub.f32 %v145, %v149
    %v154 = vsub.f32 %v146, %v152
    %v155 = vmul.f32 %v153, 1.442695
    %v156 = vpow.pop %v155
    %v157 = vmul.f32 %v154, 1.442695
    %v158 = vpow.pop %v157
    %v159 = vsel %vm63, %v156, 0.0
    %160 = vadd.xlane.f32.xlu0 %v159
    %v161 = vpop.xlane.xlu0 %160
    %v162 = vsel %vm63, %v158, 0.0
    %163 = vadd.xlane.f32.xlu0 %v162
    %v164 = vpop.xlane.xlu0 %163
    %v165 = vrcp.pop %v161
    %v166 = vrcp.pop %v164
    %v167 = vmul.f32 %v161, %v165
    %v168 = vmul.f32 %v164, %v166
    %v169 = vsub.f32 2.0, %v167
    %v170 = vsub.f32 2.0, %v168
    %v171 = vmul.f32 %v165, %v169
    %v172 = vmul.f32 %v166, %v170
    %v173 = vmul.f32 %v156, %v171
    %v174 = vmul.f32 %v158, %v172
    %v176 = vsel %vm63, %v173, 0
    %v179 = vsel %vm63, %v174, 0
    %181 = vmatprep.subr.mxu0 0.0
    %182 = vmatpush1.msra.mxu0 0.0
    %183 = vmatprep.subr.mxu0 0.0
    %184 = vmatpush1.msra.mxu0 0.0
    %185 = vmatprep.subr.mxu0 0.0
    %186 = vmatpush1.msra.mxu0 0.0
    %187 = vmatprep.subr.mxu0 0.0
    %188 = vmatpush1.msra.mxu0 0.0
    %189 = vmatprep.subr.mxu0 0.0
    %190 = vmatpush1.msra.mxu0 0.0
    %191 = vmatprep.subr.mxu0 0.0
    %192 = vmatpush1.msra.mxu0 0.0
    %193 = vmatprep.subr.mxu0 0.0
    %194 = vmatpush1.msra.mxu0 0.0
    %195 = vmatprep.subr.mxu0 0.0
    %196 = vmatpush1.msra.mxu0 0.0
    %197 = vmatprep.subr.mxu0 0.0
    %198 = vmatpush1.msra.mxu0 0.0
    %199 = vmatprep.subr.mxu0 0.0
    %200 = vmatpush1.msra.mxu0 0.0
    %201 = vmatprep.subr.mxu0 0.0
    %202 = vmatpush1.msra.mxu0 0.0
    %203 = vmatprep.subr.mxu0 0.0
    %204 = vmatpush1.msra.mxu0 0.0
    %205 = vmatprep.subr.mxu0 0.0
    %206 = vmatpush1.msra.mxu0 0.0
    %207 = vmatprep.subr.mxu0 0.0
    %208 = vmatpush1.msra.mxu0 0.0
    %209 = vmatprep.subr.mxu0 0.0
    %210 = vmatpush1.msra.mxu0 %v174
    %211 = vmatprep.subr.mxu0 0.0
    %212 = vmatpush1.msra.mxu0 %v173
    %213 = vmatprep.subr.mxu0 0.0
    %214 = vmatpush2.msra.mxu0 0.0
    %215 = vmatprep.subr.mxu0 0.0
    %216 = vmatpush2.msra.mxu0 0.0
    %217 = vmatprep.subr.mxu0 0.0
    %218 = vmatpush2.msra.mxu0 0.0
    %219 = vmatprep.subr.mxu0 0.0
    %220 = vmatpush2.msra.mxu0 0.0
    %221 = vmatprep.subr.mxu0 0.0
    %222 = vmatpush2.msra.mxu0 0.0
    %223 = vmatprep.subr.mxu0 0.0
    %224 = vmatpush2.msra.mxu0 0.0
    %225 = vmatprep.subr.mxu0 0.0
    %226 = vmatpush2.msra.mxu0 0.0
    %227 = vmatprep.subr.mxu0 0.0
    %228 = vmatpush2.msra.mxu0 0.0
    %229 = vmatprep.subr.mxu0 0.0
    %230 = vmatpush2.msra.mxu0 0.0
    %231 = vmatprep.subr.mxu0 0.0
    %232 = vmatpush2.msra.mxu0 0.0
    %233 = vmatprep.subr.mxu0 0.0
    %234 = vmatpush2.msra.mxu0 0.0
    %235 = vmatprep.subr.mxu0 0.0
    %236 = vmatpush2.msra.mxu0 0.0
    %237 = vmatprep.subr.mxu0 0.0
    %238 = vmatpush2.msra.mxu0 0.0
    %239 = vmatprep.subr.mxu0 0.0
    %240 = vmatpush2.msra.mxu0 0.0
    %241 = vmatprep.subr.mxu0 0.0
    %242 = vmatpush2.msra.mxu0 0.0
    %243 = vmatprep.subr.mxu0 0.0
    %244 = vmatpush2.msra.mxu0 0.0
    %245 = vmatprep.mubr.f32.mxu0 0.0
    %246 = vmatmul.mubr.f32.gmra.mxu0 %v176
    %v247 = vpop.f32.mrf.mxu0
    %v248 = vadd.f32 0.0, %v247
    %v249 = vpop.f32.mrf.mxu0
    %250 = vmatprep.mubr.f32.mxu0 0.0
    %251 = vmatmul.mubr.f32.gmra.mxu0 %v179
    %v252 = vpop.f32.mrf.mxu0
    %v253 = vadd.f32 0.0, %v252
    %v254 = vpop.f32.mrf.mxu0
    %255 = vdwg.mxu0
    %v257 = vsel %vm63, %v248, 0
    %v260 = vsel %vm63, %v253, 0
    %262 = vmatprep.subr.mxu0 0.0
    %263 = vmatpush1.msra.mxu0 0.0
    %264 = vmatprep.subr.mxu0 0.0
    %265 = vmatpush1.msra.mxu0 0.0
    %266 = vmatprep.subr.mxu0 0.0
    %267 = vmatpush1.msra.mxu0 0.0
    %268 = vmatprep.subr.mxu0 0.0
    %269 = vmatpush1.msra.mxu0 0.0
    %270 = vmatprep.subr.mxu0 0.0
    %271 = vmatpush1.msra.mxu0 0.0
    %272 = vmatprep.subr.mxu0 0.0
    %273 = vmatpush1.msra.mxu0 0.0
    %274 = vmatprep.subr.mxu0 0.0
    %275 = vmatpush1.msra.mxu0 0.0
    %276 = vmatprep.subr.mxu0 0.0
    %277 = vmatpush1.msra.mxu0 0.0
    %278 = vmatprep.subr.mxu0 0.0
    %279 = vmatpush1.msra.mxu0 0.0
    %280 = vmatprep.subr.mxu0 0.0
    %281 = vmatpush1.msra.mxu0 0.0
    %282 = vmatprep.subr.mxu0 0.0
    %283 = vmatpush1.msra.mxu0 0.0
    %284 = vmatprep.subr.mxu0 0.0
    %285 = vmatpush1.msra.mxu0 0.0
    %286 = vmatprep.subr.mxu0 0.0
    %287 = vmatpush1.msra.mxu0 0.0
    %288 = vmatprep.subr.mxu0 0.0
    %289 = vmatpush1.msra.mxu0 0.0
    %290 = vmatprep.subr.mxu0 0.0
    %291 = vmatpush1.msra.mxu0 %v253
    %292 = vmatprep.subr.mxu0 0.0
    %293 = vmatpush1.msra.mxu0 %v248
    %294 = vmatprep.subr.mxu0 0.0
    %295 = vmatpush2.msra.mxu0 0.0
    %296 = vmatprep.subr.mxu0 0.0
    %297 = vmatpush2.msra.mxu0 0.0
    %298 = vmatprep.subr.mxu0 0.0
    %299 = vmatpush2.msra.mxu0 0.0
    %300 = vmatprep.subr.mxu0 0.0
    %301 = vmatpush2.msra.mxu0 0.0
    %302 = vmatprep.subr.mxu0 0.0
    %303 = vmatpush2.msra.mxu0 0.0
    %304 = vmatprep.subr.mxu0 0.0
    %305 = vmatpush2.msra.mxu0 0.0
    %306 = vmatprep.subr.mxu0 0.0
    %307 = vmatpush2.msra.mxu0 0.0
    %308 = vmatprep.subr.mxu0 0.0
    %309 = vmatpush2.msra.mxu0 0.0
    %310 = vmatprep.subr.mxu0 0.0
    %311 = vmatpush2.msra.mxu0 0.0
    %312 = vmatprep.subr.mxu0 0.0
    %313 = vmatpush2.msra.mxu0 0.0
    %314 = vmatprep.subr.mxu0 0.0
    %315 = vmatpush2.msra.mxu0 0.0
    %316 = vmatprep.subr.mxu0 0.0
    %317 = vmatpush2.msra.mxu0 0.0
    %318 = vmatprep.subr.mxu0 0.0
    %319 = vmatpush2.msra.mxu0 0.0
    %320 = vmatprep.subr.mxu0 0.0
    %321 = vmatpush2.msra.mxu0 0.0
    %322 = vmatprep.subr.mxu0 0.0
    %323 = vmatpush2.msra.mxu0 0.0
    %324 = vmatprep.subr.mxu0 0.0
    %325 = vmatpush2.msra.mxu0 0.0
    %326 = vmatprep.mubr.f32.mxu0 0.0
    %327 = vmatmul.mubr.f32.gmra.mxu0 %v257
    %v328 = vpop.f32.mrf.mxu0
    %v329 = vadd.f32 0.0, %v328
    %v330 = vpop.f32.mrf.mxu0
    %331 = vmatprep.mubr.f32.mxu0 0.0
    %332 = vmatmul.mubr.f32.gmra.mxu0 %v260
    %v333 = vpop.f32.mrf.mxu0
    %v334 = vadd.f32 0.0, %v333
    %v335 = vpop.f32.mrf.mxu0
    %336 = vdwg.mxu0
    %v337 = vld [vmem:[%s0] sm:$0xff]
    %v338 = vld [vmem:[%s0 + $0x8] sm:$0xff]
    %v339 = vlaneseq
    %v340 = vshrl.u32 %v339, 7
    %v341 = vsub.s32 0, %v340
    %v342 = vrot.slane %v48, %v341
    %vm343 = vcmask 48128
    %v345 = vsel %vm343, %v337, 0
    %v348 = vsel %vm343, %v338, 0
    %vm350 = vcmask 1045504
    %v352 = vsel %vm350, %v47, 0
    %354 = vmatprep.subr.mxu0 0.0
    %355 = vmatpush1.msra.mxu0 0.0
    %356 = vmatprep.subr.mxu0 0.0
    %357 = vmatpush1.msra.mxu0 0.0
    %358 = vmatprep.subr.mxu0 0.0
    %359 = vmatpush1.msra.mxu0 0.0
    %360 = vmatprep.subr.mxu0 0.0
    %361 = vmatpush1.msra.mxu0 0.0
    %362 = vmatprep.subr.mxu0 0.0
    %363 = vmatpush1.msra.mxu0 0.0
    %364 = vmatprep.subr.mxu0 0.0
    %365 = vmatpush1.msra.mxu0 0.0
    %366 = vmatprep.subr.mxu0 0.0
    %367 = vmatpush1.msra.mxu0 0.0
    %368 = vmatprep.subr.mxu0 0.0
    %369 = vmatpush1.msra.mxu0 0.0
    %370 = vmatprep.subr.mxu0 0.0
    %371 = vmatpush1.msra.mxu0 0.0
    %372 = vmatprep.subr.mxu0 0.0
    %373 = vmatpush1.msra.mxu0 0.0
    %374 = vmatprep.subr.mxu0 0.0
    %375 = vmatpush1.msra.mxu0 0.0
    %376 = vmatprep.subr.mxu0 0.0
    %377 = vmatpush1.msra.mxu0 0.0
    %378 = vmatprep.subr.mxu0 0.0
    %379 = vmatpush1.msra.mxu0 0.0
    %380 = vmatprep.subr.mxu0 0.0
    %381 = vmatpush1.msra.mxu0 0.0
    %382 = vmatprep.subr.mxu0 0.0
    %383 = vmatpush1.msra.mxu0 0.0
    %384 = vmatprep.subr.mxu0 0.0
    %385 = vmatpush1.msra.mxu0 %v352
    %386 = vmatprep.subr.mxu0 0.0
    %387 = vmatpush2.msra.mxu0 0.0
    %388 = vmatprep.subr.mxu0 0.0
    %389 = vmatpush2.msra.mxu0 0.0
    %390 = vmatprep.subr.mxu0 0.0
    %391 = vmatpush2.msra.mxu0 0.0
    %392 = vmatprep.subr.mxu0 0.0
    %393 = vmatpush2.msra.mxu0 0.0
    %394 = vmatprep.subr.mxu0 0.0
    %395 = vmatpush2.msra.mxu0 0.0
    %396 = vmatprep.subr.mxu0 0.0
    %397 = vmatpush2.msra.mxu0 0.0
    %398 = vmatprep.subr.mxu0 0.0
    %399 = vmatpush2.msra.mxu0 0.0
    %400 = vmatprep.subr.mxu0 0.0
    %401 = vmatpush2.msra.mxu0 0.0
    %402 = vmatprep.subr.mxu0 0.0
    %403 = vmatpush2.msra.mxu0 0.0
    %404 = vmatprep.subr.mxu0 0.0
    %405 = vmatpush2.msra.mxu0 0.0
    %406 = vmatprep.subr.mxu0 0.0
    %407 = vmatpush2.msra.mxu0 0.0
    %408 = vmatprep.subr.mxu0 0.0
    %409 = vmatpush2.msra.mxu0 0.0
    %410 = vmatprep.subr.mxu0 0.0
    %411 = vmatpush2.msra.mxu0 0.0
    %412 = vmatprep.subr.mxu0 0.0
    %413 = vmatpush2.msra.mxu0 0.0
    %414 = vmatprep.subr.mxu0 0.0
    %415 = vmatpush2.msra.mxu0 0.0
    %416 = vmatprep.subr.mxu0 0.0
    %417 = vmatpush2.msra.mxu0 0.0
    %418 = vmatprep.mubr.f32.mxu0 0.0
    %419 = vmatmul.mubr.f32.gmra.mxu0 %v345
    %v420 = vpop.f32.mrf.mxu0
    %v421 = vadd.f32 %v342, %v420
    %v422 = vpop.f32.mrf.mxu0
    %423 = vmatprep.mubr.f32.mxu0 0.0
    %424 = vmatmul.mubr.f32.gmra.mxu0 %v348
    %v425 = vpop.f32.mrf.mxu0
    %v426 = vadd.f32 %v342, %v425
    %v427 = vpop.f32.mrf.mxu0
    %428 = vdwg.mxu0
    %v430 = vsel %vm63, %v31, 0
    %v433 = vsel %vm63, %v32, 0
    %v436 = vsel %vm63, %v33, 0
    %v439 = vsel %vm63, %v34, 0
    %v442 = vsel %vm63, %v35, 0
    %v445 = vsel %vm63, %v36, 0
    %v448 = vsel %vm63, %v37, 0
    %v451 = vsel %vm63, %v38, 0
    %v454 = vsel %vm63, %v39, 0
    %v457 = vsel %vm63, %v40, 0
    %v460 = vsel %vm63, %v41, 0
    %v463 = vsel %vm63, %v42, 0
    %465 = vmatprep.subr.mxu0 0.0
    %466 = vmatpush1.msra.mxu0 0.0
    %467 = vmatprep.subr.mxu0 0.0
    %468 = vmatpush1.msra.mxu0 0.0
    %469 = vmatprep.subr.mxu0 0.0
    %470 = vmatpush1.msra.mxu0 0.0
    %471 = vmatprep.subr.mxu0 0.0
    %472 = vmatpush1.msra.mxu0 0.0
    %473 = vmatprep.subr.mxu0 0.0
    %474 = vmatpush1.msra.mxu0 0.0
    %475 = vmatprep.subr.mxu0 0.0
    %476 = vmatpush1.msra.mxu0 0.0
    %477 = vmatprep.subr.mxu0 0.0
    %478 = vmatpush1.msra.mxu0 0.0
    %479 = vmatprep.subr.mxu0 0.0
    %480 = vmatpush1.msra.mxu0 0.0
    %481 = vmatprep.subr.mxu0 0.0
    %482 = vmatpush1.msra.mxu0 0.0
    %483 = vmatprep.subr.mxu0 0.0
    %484 = vmatpush1.msra.mxu0 0.0
    %485 = vmatprep.subr.mxu0 0.0
    %486 = vmatpush1.msra.mxu0 0.0
    %487 = vmatprep.subr.mxu0 0.0
    %488 = vmatpush1.msra.mxu0 0.0
    %489 = vmatprep.subr.mxu0 0.0
    %490 = vmatpush1.msra.mxu0 0.0
    %491 = vmatprep.subr.mxu0 0.0
    %492 = vmatpush1.msra.mxu0 0.0
    %493 = vmatprep.subr.mxu0 0.0
    %494 = vmatpush1.msra.mxu0 %v426
    %495 = vmatprep.subr.mxu0 0.0
    %496 = vmatpush1.msra.mxu0 %v421
    %497 = vmatprep.subr.mxu0 0.0
    %498 = vmatpush2.msra.mxu0 0.0
    %499 = vmatprep.subr.mxu0 0.0
    %500 = vmatpush2.msra.mxu0 0.0
    %501 = vmatprep.subr.mxu0 0.0
    %502 = vmatpush2.msra.mxu0 0.0
    %503 = vmatprep.subr.mxu0 0.0
    %504 = vmatpush2.msra.mxu0 0.0
    %505 = vmatprep.subr.mxu0 0.0
    %506 = vmatpush2.msra.mxu0 0.0
    %507 = vmatprep.subr.mxu0 0.0
    %508 = vmatpush2.msra.mxu0 0.0
    %509 = vmatprep.subr.mxu0 0.0
    %510 = vmatpush2.msra.mxu0 0.0
    %511 = vmatprep.subr.mxu0 0.0
    %512 = vmatpush2.msra.mxu0 0.0
    %513 = vmatprep.subr.mxu0 0.0
    %514 = vmatpush2.msra.mxu0 0.0
    %515 = vmatprep.subr.mxu0 0.0
    %516 = vmatpush2.msra.mxu0 0.0
    %517 = vmatprep.subr.mxu0 0.0
    %518 = vmatpush2.msra.mxu0 0.0
    %519 = vmatprep.subr.mxu0 0.0
    %520 = vmatpush2.msra.mxu0 0.0
    %521 = vmatprep.subr.mxu0 0.0
    %522 = vmatpush2.msra.mxu0 0.0
    %523 = vmatprep.subr.mxu0 0.0
    %524 = vmatpush2.msra.mxu0 0.0
    %525 = vmatprep.subr.mxu0 0.0
    %526 = vmatpush2.msra.mxu0 0.0
    %527 = vmatprep.subr.mxu0 0.0
    %528 = vmatpush2.msra.mxu0 0.0
    %529 = vmatprep.mubr.f32.mxu0 0.0
    %530 = vmatmul.mubr.f32.gmra.mxu0 %v430
    %v531 = vpop.f32.mrf.mxu0
    %v532 = vadd.f32 0.0, %v531
    %v533 = vpop.f32.mrf.mxu0
    %534 = vmatprep.mubr.f32.mxu0 0.0
    %535 = vmatmul.mubr.f32.gmra.mxu0 %v433
    %v536 = vpop.f32.mrf.mxu0
    %v537 = vadd.f32 0.0, %v536
    %v538 = vpop.f32.mrf.mxu0
    %539 = vmatprep.mubr.f32.mxu0 0.0
    %540 = vmatmul.mubr.f32.gmra.mxu0 %v436
    %v541 = vpop.f32.mrf.mxu0
    %v542 = vadd.f32 0.0, %v541
    %v543 = vpop.f32.mrf.mxu0
    %544 = vmatprep.mubr.f32.mxu0 0.0
    %545 = vmatmul.mubr.f32.gmra.mxu0 %v439
    %v546 = vpop.f32.mrf.mxu0
    %v547 = vadd.f32 0.0, %v546
    %v548 = vpop.f32.mrf.mxu0
    %549 = vmatprep.mubr.f32.mxu0 0.0
    %550 = vmatmul.mubr.f32.gmra.mxu0 %v442
    %v551 = vpop.f32.mrf.mxu0
    %v552 = vadd.f32 0.0, %v551
    %v553 = vpop.f32.mrf.mxu0
    %554 = vmatprep.mubr.f32.mxu0 0.0
    %555 = vmatmul.mubr.f32.gmra.mxu0 %v445
    %v556 = vpop.f32.mrf.mxu0
    %v557 = vadd.f32 0.0, %v556
    %v558 = vpop.f32.mrf.mxu0
    %559 = vmatprep.mubr.f32.mxu0 0.0
    %560 = vmatmul.mubr.f32.gmra.mxu0 %v448
    %v561 = vpop.f32.mrf.mxu0
    %v562 = vadd.f32 0.0, %v561
    %v563 = vpop.f32.mrf.mxu0
    %564 = vmatprep.mubr.f32.mxu0 0.0
    %565 = vmatmul.mubr.f32.gmra.mxu0 %v451
    %v566 = vpop.f32.mrf.mxu0
    %v567 = vadd.f32 0.0, %v566
    %v568 = vpop.f32.mrf.mxu0
    %569 = vmatprep.mubr.f32.mxu0 0.0
    %570 = vmatmul.mubr.f32.gmra.mxu0 %v454
    %v571 = vpop.f32.mrf.mxu0
    %v572 = vadd.f32 0.0, %v571
    %v573 = vpop.f32.mrf.mxu0
    %574 = vmatprep.mubr.f32.mxu0 0.0
    %575 = vmatmul.mubr.f32.gmra.mxu0 %v457
    %v576 = vpop.f32.mrf.mxu0
    %v577 = vadd.f32 0.0, %v576
    %v578 = vpop.f32.mrf.mxu0
    %579 = vmatprep.mubr.f32.mxu0 0.0
    %580 = vmatmul.mubr.f32.gmra.mxu0 %v460
    %v581 = vpop.f32.mrf.mxu0
    %v582 = vadd.f32 0.0, %v581
    %v583 = vpop.f32.mrf.mxu0
    %584 = vmatprep.mubr.f32.mxu0 0.0
    %585 = vmatmul.mubr.f32.gmra.mxu0 %v463
    %v586 = vpop.f32.mrf.mxu0
    %v587 = vadd.f32 0.0, %v586
    %v588 = vpop.f32.mrf.mxu0
    %589 = vdwg.mxu0
    %v591 = vsel %vm63, %v329, 0
    %v594 = vsel %vm63, %v334, 0
    %596 = vmatprep.subr.mxu0 0.0
    %597 = vmatpush1.msra.mxu0 0.0
    %598 = vmatprep.subr.mxu0 0.0
    %599 = vmatpush1.msra.mxu0 0.0
    %600 = vmatprep.subr.mxu0 0.0
    %601 = vmatpush1.msra.mxu0 0.0
    %602 = vmatprep.subr.mxu0 0.0
    %603 = vmatpush1.msra.mxu0 0.0
    %604 = vmatprep.subr.mxu0 0.0
    %605 = vmatpush1.msra.mxu0 0.0
    %606 = vmatprep.subr.mxu0 0.0
    %607 = vmatpush1.msra.mxu0 0.0
    %608 = vmatprep.subr.mxu0 0.0
    %609 = vmatpush1.msra.mxu0 0.0
    %610 = vmatprep.subr.mxu0 0.0
    %611 = vmatpush1.msra.mxu0 0.0
    %612 = vmatprep.subr.mxu0 0.0
    %613 = vmatpush1.msra.mxu0 0.0
    %614 = vmatprep.subr.mxu0 0.0
    %615 = vmatpush1.msra.mxu0 0.0
    %616 = vmatprep.subr.mxu0 0.0
    %617 = vmatpush1.msra.mxu0 0.0
    %618 = vmatprep.subr.mxu0 0.0
    %619 = vmatpush1.msra.mxu0 0.0
    %620 = vmatprep.subr.mxu0 0.0
    %621 = vmatpush1.msra.mxu0 0.0
    %622 = vmatprep.subr.mxu0 0.0
    %623 = vmatpush1.msra.mxu0 0.0
    %624 = vmatprep.subr.mxu0 0.0
    %625 = vmatpush1.msra.mxu0 %v426
    %626 = vmatprep.subr.mxu0 0.0
    %627 = vmatpush1.msra.mxu0 %v421
    %628 = vmatprep.subr.mxu0 0.0
    %629 = vmatpush2.msra.mxu0 0.0
    %630 = vmatprep.subr.mxu0 0.0
    %631 = vmatpush2.msra.mxu0 0.0
    %632 = vmatprep.subr.mxu0 0.0
    %633 = vmatpush2.msra.mxu0 0.0
    %634 = vmatprep.subr.mxu0 0.0
    %635 = vmatpush2.msra.mxu0 0.0
    %636 = vmatprep.subr.mxu0 0.0
    %637 = vmatpush2.msra.mxu0 0.0
    %638 = vmatprep.subr.mxu0 0.0
    %639 = vmatpush2.msra.mxu0 0.0
    %640 = vmatprep.subr.mxu0 0.0
    %641 = vmatpush2.msra.mxu0 0.0
    %642 = vmatprep.subr.mxu0 0.0
    %643 = vmatpush2.msra.mxu0 0.0
    %644 = vmatprep.subr.mxu0 0.0
    %645 = vmatpush2.msra.mxu0 0.0
    %646 = vmatprep.subr.mxu0 0.0
    %647 = vmatpush2.msra.mxu0 0.0
    %648 = vmatprep.subr.mxu0 0.0
    %649 = vmatpush2.msra.mxu0 0.0
    %650 = vmatprep.subr.mxu0 0.0
    %651 = vmatpush2.msra.mxu0 0.0
    %652 = vmatprep.subr.mxu0 0.0
    %653 = vmatpush2.msra.mxu0 0.0
    %654 = vmatprep.subr.mxu0 0.0
    %655 = vmatpush2.msra.mxu0 0.0
    %656 = vmatprep.subr.mxu0 0.0
    %657 = vmatpush2.msra.mxu0 0.0
    %658 = vmatprep.subr.mxu0 0.0
    %659 = vmatpush2.msra.mxu0 0.0
    %660 = vmatprep.mubr.f32.mxu0 0.0
    %661 = vmatmul.mubr.f32.gmra.mxu0 %v176
    %v662 = vpop.f32.mrf.mxu0
    %v663 = vadd.f32 0.0, %v662
    %v664 = vpop.f32.mrf.mxu0
    %665 = vmatprep.mubr.f32.mxu0 0.0
    %666 = vmatmul.mubr.f32.gmra.mxu0 %v179
    %v667 = vpop.f32.mrf.mxu0
    %v668 = vadd.f32 0.0, %v667
    %v669 = vpop.f32.mrf.mxu0
    %670 = vmatprep.mubr.f32.mxu0 0.0
    %671 = vmatmul.mubr.f32.gmra.mxu0 %v257
    %v672 = vpop.f32.mrf.mxu0
    %v673 = vadd.f32 0.0, %v672
    %v674 = vpop.f32.mrf.mxu0
    %675 = vmatprep.mubr.f32.mxu0 0.0
    %676 = vmatmul.mubr.f32.gmra.mxu0 %v260
    %v677 = vpop.f32.mrf.mxu0
    %v678 = vadd.f32 0.0, %v677
    %v679 = vpop.f32.mrf.mxu0
    %680 = vmatprep.mubr.f32.mxu0 0.0
    %681 = vmatmul.mubr.f32.gmra.mxu0 %v591
    %v682 = vpop.f32.mrf.mxu0
    %v683 = vadd.f32 0.0, %v682
    %v684 = vpop.f32.mrf.mxu0
    %685 = vmatprep.mubr.f32.mxu0 0.0
    %686 = vmatmul.mubr.f32.gmra.mxu0 %v594
    %v687 = vpop.f32.mrf.mxu0
    %v688 = vadd.f32 0.0, %v687
    %v689 = vpop.f32.mrf.mxu0
    %690 = vdwg.mxu0
    %v691 = vld [vmem:[#allocation2] sm:$0xff]
    %v692 = vld [vmem:[#allocation2 + $0x8] sm:$0xff]
    %v693 = vld [vmem:[#allocation2 + $0x10] sm:$0xff]
    %v694 = vld [vmem:[#allocation2 + $0x18] sm:$0xff]
    %v695 = vld [vmem:[#allocation2 + $0x20] sm:$0xff]
    %v696 = vld [vmem:[#allocation2 + $0x28] sm:$0xff]
    %v697 = vld [vmem:[#allocation2 + $0x30] sm:$0xff]
    %v698 = vld [vmem:[#allocation2 + $0x38] sm:$0xff]
    %s699 = scalar_lea.vmem [#allocation2], 64
    %v700 = vld [vmem:[%s699] sm:$0xff]
    %v701 = vld [vmem:[%s699 + $0x8] sm:$0xff]
    %v702 = vld [vmem:[%s699 + $0x10] sm:$0xff]
    %v703 = vld [vmem:[%s699 + $0x18] sm:$0xff]
    %v704 = vld [vmem:[%s699 + $0x20] sm:$0xff]
    %v705 = vld [vmem:[%s699 + $0x28] sm:$0xff]
    %v706 = vld [vmem:[%s699 + $0x30] sm:$0xff]
    %v707 = vld [vmem:[%s699 + $0x38] sm:$0xff]
    %vm708 = vcmask 523264
    %v710 = vsel %vm708, %v542, 0
    %v713 = vsel %vm708, %v547, 0
    %715 = vmatprep.subr.mxu0 0.0
    %716 = vmatpush1.msra.mxu0 0.0
    %717 = vmatprep.subr.mxu0 0.0
    %718 = vmatpush1.msra.mxu0 0.0
    %719 = vmatprep.subr.mxu0 0.0
    %720 = vmatpush1.msra.mxu0 0.0
    %721 = vmatprep.subr.mxu0 0.0
    %722 = vmatpush1.msra.mxu0 0.0
    %723 = vmatprep.subr.mxu0 0.0
    %724 = vmatpush1.msra.mxu0 0.0
    %725 = vmatprep.subr.mxu0 0.0
    %726 = vmatpush1.msra.mxu0 0.0
    %727 = vmatprep.subr.mxu0 0.0
    %728 = vmatpush1.msra.mxu0 0.0
    %729 = vmatprep.subr.mxu0 0.0
    %730 = vmatpush1.msra.mxu0 0.0
    %731 = vmatprep.subr.mxu0 0.0
    %732 = vmatpush1.msra.mxu0 %v707
    %733 = vmatprep.subr.mxu0 0.0
    %734 = vmatpush1.msra.mxu0 %v706
    %735 = vmatprep.subr.mxu0 0.0
    %736 = vmatpush1.msra.mxu0 %v705
    %737 = vmatprep.subr.mxu0 0.0
    %738 = vmatpush1.msra.mxu0 %v704
    %739 = vmatprep.subr.mxu0 0.0
    %740 = vmatpush1.msra.mxu0 %v703
    %741 = vmatprep.subr.mxu0 0.0
    %742 = vmatpush1.msra.mxu0 %v702
    %743 = vmatprep.subr.mxu0 0.0
    %744 = vmatpush1.msra.mxu0 %v701
    %745 = vmatprep.subr.mxu0 0.0
    %746 = vmatpush1.msra.mxu0 %v700
    %747 = vmatprep.subr.mxu0 0.0
    %748 = vmatpush2.msra.mxu0 0.0
    %749 = vmatprep.subr.mxu0 0.0
    %750 = vmatpush2.msra.mxu0 0.0
    %751 = vmatprep.subr.mxu0 0.0
    %752 = vmatpush2.msra.mxu0 0.0
    %753 = vmatprep.subr.mxu0 0.0
    %754 = vmatpush2.msra.mxu0 0.0
    %755 = vmatprep.subr.mxu0 0.0
    %756 = vmatpush2.msra.mxu0 0.0
    %757 = vmatprep.subr.mxu0 0.0
    %758 = vmatpush2.msra.mxu0 0.0
    %759 = vmatprep.subr.mxu0 0.0
    %760 = vmatpush2.msra.mxu0 0.0
    %761 = vmatprep.subr.mxu0 0.0
    %762 = vmatpush2.msra.mxu0 0.0
    %763 = vmatprep.subr.mxu0 0.0
    %764 = vmatpush2.msra.mxu0 0.0
    %765 = vmatprep.subr.mxu0 0.0
    %766 = vmatpush2.msra.mxu0 0.0
    %767 = vmatprep.subr.mxu0 0.0
    %768 = vmatpush2.msra.mxu0 0.0
    %769 = vmatprep.subr.mxu0 0.0
    %770 = vmatpush2.msra.mxu0 0.0
    %771 = vmatprep.subr.mxu0 0.0
    %772 = vmatpush2.msra.mxu0 0.0
    %773 = vmatprep.subr.mxu0 0.0
    %774 = vmatpush2.msra.mxu0 0.0
    %775 = vmatprep.subr.mxu0 0.0
    %776 = vmatpush2.msra.mxu0 0.0
    %777 = vmatprep.subr.mxu0 0.0
    %778 = vmatpush2.msra.mxu0 0.0
    %779 = vmatprep.mubr.f32.mxu0 0.0
    %780 = vmatmul.mubr.f32.gmra.mxu0 %v710
    %v781 = vpop.f32.mrf.mxu0
    %v782 = vadd.f32 0.0, %v781
    %v783 = vpop.f32.mrf.mxu0
    %784 = vmatprep.mubr.f32.mxu0 0.0
    %785 = vmatmul.mubr.f32.gmra.mxu0 %v713
    %v786 = vpop.f32.mrf.mxu0
    %v787 = vadd.f32 0.0, %v786
    %v788 = vpop.f32.mrf.mxu0
    %789 = vdwg.mxu0
    %v791 = vsel %vm708, %v532, 0
    %v794 = vsel %vm708, %v537, 0
    %796 = vmatprep.subr.mxu0 0.0
    %797 = vmatpush1.msra.mxu0 0.0
    %798 = vmatprep.subr.mxu0 0.0
    %799 = vmatpush1.msra.mxu0 0.0
    %800 = vmatprep.subr.mxu0 0.0
    %801 = vmatpush1.msra.mxu0 0.0
    %802 = vmatprep.subr.mxu0 0.0
    %803 = vmatpush1.msra.mxu0 0.0
    %804 = vmatprep.subr.mxu0 0.0
    %805 = vmatpush1.msra.mxu0 0.0
    %806 = vmatprep.subr.mxu0 0.0
    %807 = vmatpush1.msra.mxu0 0.0
    %808 = vmatprep.subr.mxu0 0.0
    %809 = vmatpush1.msra.mxu0 0.0
    %810 = vmatprep.subr.mxu0 0.0
    %811 = vmatpush1.msra.mxu0 0.0
    %812 = vmatprep.subr.mxu0 0.0
    %813 = vmatpush1.msra.mxu0 %v698
    %814 = vmatprep.subr.mxu0 0.0
    %815 = vmatpush1.msra.mxu0 %v697
    %816 = vmatprep.subr.mxu0 0.0
    %817 = vmatpush1.msra.mxu0 %v696
    %818 = vmatprep.subr.mxu0 0.0
    %819 = vmatpush1.msra.mxu0 %v695
    %820 = vmatprep.subr.mxu0 0.0
    %821 = vmatpush1.msra.mxu0 %v694
    %822 = vmatprep.subr.mxu0 0.0
    %823 = vmatpush1.msra.mxu0 %v693
    %824 = vmatprep.subr.mxu0 0.0
    %825 = vmatpush1.msra.mxu0 %v692
    %826 = vmatprep.subr.mxu0 0.0
    %827 = vmatpush1.msra.mxu0 %v691
    %828 = vmatprep.subr.mxu0 0.0
    %829 = vmatpush2.msra.mxu0 0.0
    %830 = vmatprep.subr.mxu0 0.0
    %831 = vmatpush2.msra.mxu0 0.0
    %832 = vmatprep.subr.mxu0 0.0
    %833 = vmatpush2.msra.mxu0 0.0
    %834 = vmatprep.subr.mxu0 0.0
    %835 = vmatpush2.msra.mxu0 0.0
    %836 = vmatprep.subr.mxu0 0.0
    %837 = vmatpush2.msra.mxu0 0.0
    %838 = vmatprep.subr.mxu0 0.0
    %839 = vmatpush2.msra.mxu0 0.0
    %840 = vmatprep.subr.mxu0 0.0
    %841 = vmatpush2.msra.mxu0 0.0
    %842 = vmatprep.subr.mxu0 0.0
    %843 = vmatpush2.msra.mxu0 0.0
    %844 = vmatprep.subr.mxu0 0.0
    %845 = vmatpush2.msra.mxu0 0.0
    %846 = vmatprep.subr.mxu0 0.0
    %847 = vmatpush2.msra.mxu0 0.0
    %848 = vmatprep.subr.mxu0 0.0
    %849 = vmatpush2.msra.mxu0 0.0
    %850 = vmatprep.subr.mxu0 0.0
    %851 = vmatpush2.msra.mxu0 0.0
    %852 = vmatprep.subr.mxu0 0.0
    %853 = vmatpush2.msra.mxu0 0.0
    %854 = vmatprep.subr.mxu0 0.0
    %855 = vmatpush2.msra.mxu0 0.0
    %856 = vmatprep.subr.mxu0 0.0
    %857 = vmatpush2.msra.mxu0 0.0
    %858 = vmatprep.subr.mxu0 0.0
    %859 = vmatpush2.msra.mxu0 0.0
    %860 = vmatprep.mubr.f32.mxu0 0.0
    %861 = vmatmul.mubr.f32.gmra.mxu0 %v791
    %v862 = vpop.f32.mrf.mxu0
    %v863 = vadd.f32 %v782, %v862
    %v864 = vpop.f32.mrf.mxu0
    %865 = vmatprep.mubr.f32.mxu0 0.0
    %866 = vmatmul.mubr.f32.gmra.mxu0 %v794
    %v867 = vpop.f32.mrf.mxu0
    %v868 = vadd.f32 %v787, %v867
    %v869 = vpop.f32.mrf.mxu0
    %870 = vdwg.mxu0
    %s871 = scalar_lea.vmem [#allocation2], 128
    %v872 = vld [vmem:[%s871] sm:$0xff]
    %v873 = vld [vmem:[%s871 + $0x8] sm:$0xff]
    %v874 = vld [vmem:[%s871 + $0x10] sm:$0xff]
    %v875 = vld [vmem:[%s871 + $0x18] sm:$0xff]
    %v876 = vld [vmem:[%s871 + $0x20] sm:$0xff]
    %v877 = vld [vmem:[%s871 + $0x28] sm:$0xff]
    %v878 = vld [vmem:[%s871 + $0x30] sm:$0xff]
    %v879 = vld [vmem:[%s871 + $0x38] sm:$0xff]
    %v881 = vsel %vm708, %v552, 0
    %v884 = vsel %vm708, %v557, 0
    %886 = vmatprep.subr.mxu0 0.0
    %887 = vmatpush1.msra.mxu0 0.0
    %888 = vmatprep.subr.mxu0 0.0
    %889 = vmatpush1.msra.mxu0 0.0
    %890 = vmatprep.subr.mxu0 0.0
    %891 = vmatpush1.msra.mxu0 0.0
    %892 = vmatprep.subr.mxu0 0.0
    %893 = vmatpush1.msra.mxu0 0.0
    %894 = vmatprep.subr.mxu0 0.0
    %895 = vmatpush1.msra.mxu0 0.0
    %896 = vmatprep.subr.mxu0 0.0
    %897 = vmatpush1.msra.mxu0 0.0
    %898 = vmatprep.subr.mxu0 0.0
    %899 = vmatpush1.msra.mxu0 0.0
    %900 = vmatprep.subr.mxu0 0.0
    %901 = vmatpush1.msra.mxu0 0.0
    %902 = vmatprep.subr.mxu0 0.0
    %903 = vmatpush1.msra.mxu0 %v879
    %904 = vmatprep.subr.mxu0 0.0
    %905 = vmatpush1.msra.mxu0 %v878
    %906 = vmatprep.subr.mxu0 0.0
    %907 = vmatpush1.msra.mxu0 %v877
    %908 = vmatprep.subr.mxu0 0.0
    %909 = vmatpush1.msra.mxu0 %v876
    %910 = vmatprep.subr.mxu0 0.0
    %911 = vmatpush1.msra.mxu0 %v875
    %912 = vmatprep.subr.mxu0 0.0
    %913 = vmatpush1.msra.mxu0 %v874
    %914 = vmatprep.subr.mxu0 0.0
    %915 = vmatpush1.msra.mxu0 %v873
    %916 = vmatprep.subr.mxu0 0.0
    %917 = vmatpush1.msra.mxu0 %v872
    %918 = vmatprep.subr.mxu0 0.0
    %919 = vmatpush2.msra.mxu0 0.0
    %920 = vmatprep.subr.mxu0 0.0
    %921 = vmatpush2.msra.mxu0 0.0
    %922 = vmatprep.subr.mxu0 0.0
    %923 = vmatpush2.msra.mxu0 0.0
    %924 = vmatprep.subr.mxu0 0.0
    %925 = vmatpush2.msra.mxu0 0.0
    %926 = vmatprep.subr.mxu0 0.0
    %927 = vmatpush2.msra.mxu0 0.0
    %928 = vmatprep.subr.mxu0 0.0
    %929 = vmatpush2.msra.mxu0 0.0
    %930 = vmatprep.subr.mxu0 0.0
    %931 = vmatpush2.msra.mxu0 0.0
    %932 = vmatprep.subr.mxu0 0.0
    %933 = vmatpush2.msra.mxu0 0.0
    %934 = vmatprep.subr.mxu0 0.0
    %935 = vmatpush2.msra.mxu0 0.0
    %936 = vmatprep.subr.mxu0 0.0
    %937 = vmatpush2.msra.mxu0 0.0
    %938 = vmatprep.subr.mxu0 0.0
    %939 = vmatpush2.msra.mxu0 0.0
    %940 = vmatprep.subr.mxu0 0.0
    %941 = vmatpush2.msra.mxu0 0.0
    %942 = vmatprep.subr.mxu0 0.0
    %943 = vmatpush2.msra.mxu0 0.0
    %944 = vmatprep.subr.mxu0 0.0
    %945 = vmatpush2.msra.mxu0 0.0
    %946 = vmatprep.subr.mxu0 0.0
    %947 = vmatpush2.msra.mxu0 0.0
    %948 = vmatprep.subr.mxu0 0.0
    %949 = vmatpush2.msra.mxu0 0.0
    %950 = vmatprep.mubr.f32.mxu0 0.0
    %951 = vmatmul.mubr.f32.gmra.mxu0 %v881
    %v952 = vpop.f32.mrf.mxu0
    %v953 = vadd.f32 0.0, %v952
    %v954 = vpop.f32.mrf.mxu0
    %955 = vmatprep.mubr.f32.mxu0 0.0
    %956 = vmatmul.mubr.f32.gmra.mxu0 %v884
    %v957 = vpop.f32.mrf.mxu0
    %v958 = vadd.f32 0.0, %v957
    %v959 = vpop.f32.mrf.mxu0
    %960 = vdwg.mxu0
    %v961 = vadd.f32 %v863, %v953
    %v962 = vadd.f32 %v868, %v958
    %s963 = scalar_lea.vmem [#allocation2], 192
    %v964 = vld [vmem:[%s963] sm:$0xff]
    %v965 = vld [vmem:[%s963 + $0x8] sm:$0xff]
    %v966 = vld [vmem:[%s963 + $0x10] sm:$0xff]
    %v967 = vld [vmem:[%s963 + $0x18] sm:$0xff]
    %v968 = vld [vmem:[%s963 + $0x20] sm:$0xff]
    %v969 = vld [vmem:[%s963 + $0x28] sm:$0xff]
    %v970 = vld [vmem:[%s963 + $0x30] sm:$0xff]
    %v971 = vld [vmem:[%s963 + $0x38] sm:$0xff]
    %v973 = vsel %vm708, %v562, 0
    %v976 = vsel %vm708, %v567, 0
    %978 = vmatprep.subr.mxu0 0.0
    %979 = vmatpush1.msra.mxu0 0.0
    %980 = vmatprep.subr.mxu0 0.0
    %981 = vmatpush1.msra.mxu0 0.0
    %982 = vmatprep.subr.mxu0 0.0
    %983 = vmatpush1.msra.mxu0 0.0
    %984 = vmatprep.subr.mxu0 0.0
    %985 = vmatpush1.msra.mxu0 0.0
    %986 = vmatprep.subr.mxu0 0.0
    %987 = vmatpush1.msra.mxu0 0.0
    %988 = vmatprep.subr.mxu0 0.0
    %989 = vmatpush1.msra.mxu0 0.0
    %990 = vmatprep.subr.mxu0 0.0
    %991 = vmatpush1.msra.mxu0 0.0
    %992 = vmatprep.subr.mxu0 0.0
    %993 = vmatpush1.msra.mxu0 0.0
    %994 = vmatprep.subr.mxu0 0.0
    %995 = vmatpush1.msra.mxu0 %v971
    %996 = vmatprep.subr.mxu0 0.0
    %997 = vmatpush1.msra.mxu0 %v970
    %998 = vmatprep.subr.mxu0 0.0
    %999 = vmatpush1.msra.mxu0 %v969
    %1000 = vmatprep.subr.mxu0 0.0
    %1001 = vmatpush1.msra.mxu0 %v968
    %1002 = vmatprep.subr.mxu0 0.0
    %1003 = vmatpush1.msra.mxu0 %v967
    %1004 = vmatprep.subr.mxu0 0.0
    %1005 = vmatpush1.msra.mxu0 %v966
    %1006 = vmatprep.subr.mxu0 0.0
    %1007 = vmatpush1.msra.mxu0 %v965
    %1008 = vmatprep.subr.mxu0 0.0
    %1009 = vmatpush1.msra.mxu0 %v964
    %1010 = vmatprep.subr.mxu0 0.0
    %1011 = vmatpush2.msra.mxu0 0.0
    %1012 = vmatprep.subr.mxu0 0.0
    %1013 = vmatpush2.msra.mxu0 0.0
    %1014 = vmatprep.subr.mxu0 0.0
    %1015 = vmatpush2.msra.mxu0 0.0
    %1016 = vmatprep.subr.mxu0 0.0
    %1017 = vmatpush2.msra.mxu0 0.0
    %1018 = vmatprep.subr.mxu0 0.0
    %1019 = vmatpush2.msra.mxu0 0.0
    %1020 = vmatprep.subr.mxu0 0.0
    %1021 = vmatpush2.msra.mxu0 0.0
    %1022 = vmatprep.subr.mxu0 0.0
    %1023 = vmatpush2.msra.mxu0 0.0
    %1024 = vmatprep.subr.mxu0 0.0
    %1025 = vmatpush2.msra.mxu0 0.0
    %1026 = vmatprep.subr.mxu0 0.0
    %1027 = vmatpush2.msra.mxu0 0.0
    %1028 = vmatprep.subr.mxu0 0.0
    %1029 = vmatpush2.msra.mxu0 0.0
    %1030 = vmatprep.subr.mxu0 0.0
    %1031 = vmatpush2.msra.mxu0 0.0
    %1032 = vmatprep.subr.mxu0 0.0
    %1033 = vmatpush2.msra.mxu0 0.0
    %1034 = vmatprep.subr.mxu0 0.0
    %1035 = vmatpush2.msra.mxu0 0.0
    %1036 = vmatprep.subr.mxu0 0.0
    %1037 = vmatpush2.msra.mxu0 0.0
    %1038 = vmatprep.subr.mxu0 0.0
    %1039 = vmatpush2.msra.mxu0 0.0
    %1040 = vmatprep.subr.mxu0 0.0
    %1041 = vmatpush2.msra.mxu0 0.0
    %1042 = vmatprep.mubr.f32.mxu0 0.0
    %1043 = vmatmul.mubr.f32.gmra.mxu0 %v973
    %v1044 = vpop.f32.mrf.mxu0
    %v1045 = vadd.f32 0.0, %v1044
    %v1046 = vpop.f32.mrf.mxu0
    %1047 = vmatprep.mubr.f32.mxu0 0.0
    %1048 = vmatmul.mubr.f32.gmra.mxu0 %v976
    %v1049 = vpop.f32.mrf.mxu0
    %v1050 = vadd.f32 0.0, %v1049
    %v1051 = vpop.f32.mrf.mxu0
    %1052 = vdwg.mxu0
    %v1053 = vadd.f32 %v961, %v1045
    %v1054 = vadd.f32 %v962, %v1050
    %s1055 = scalar_lea.vmem [#allocation2], 256
    %v1056 = vld [vmem:[%s1055] sm:$0xff]
    %v1057 = vld [vmem:[%s1055 + $0x8] sm:$0xff]
    %v1058 = vld [vmem:[%s1055 + $0x10] sm:$0xff]
    %v1059 = vld [vmem:[%s1055 + $0x18] sm:$0xff]
    %v1060 = vld [vmem:[%s1055 + $0x20] sm:$0xff]
    %v1061 = vld [vmem:[%s1055 + $0x28] sm:$0xff]
    %v1062 = vld [vmem:[%s1055 + $0x30] sm:$0xff]
    %v1063 = vld [vmem:[%s1055 + $0x38] sm:$0xff]
    %v1065 = vsel %vm708, %v572, 0
    %v1068 = vsel %vm708, %v577, 0
    %1070 = vmatprep.subr.mxu0 0.0
    %1071 = vmatpush1.msra.mxu0 0.0
    %1072 = vmatprep.subr.mxu0 0.0
    %1073 = vmatpush1.msra.mxu0 0.0
    %1074 = vmatprep.subr.mxu0 0.0
    %1075 = vmatpush1.msra.mxu0 0.0
    %1076 = vmatprep.subr.mxu0 0.0
    %1077 = vmatpush1.msra.mxu0 0.0
    %1078 = vmatprep.subr.mxu0 0.0
    %1079 = vmatpush1.msra.mxu0 0.0
    %1080 = vmatprep.subr.mxu0 0.0
    %1081 = vmatpush1.msra.mxu0 0.0
    %1082 = vmatprep.subr.mxu0 0.0
    %1083 = vmatpush1.msra.mxu0 0.0
    %1084 = vmatprep.subr.mxu0 0.0
    %1085 = vmatpush1.msra.mxu0 0.0
    %1086 = vmatprep.subr.mxu0 0.0
    %1087 = vmatpush1.msra.mxu0 %v1063
    %1088 = vmatprep.subr.mxu0 0.0
    %1089 = vmatpush1.msra.mxu0 %v1062
    %1090 = vmatprep.subr.mxu0 0.0
    %1091 = vmatpush1.msra.mxu0 %v1061
    %1092 = vmatprep.subr.mxu0 0.0
    %1093 = vmatpush1.msra.mxu0 %v1060
    %1094 = vmatprep.subr.mxu0 0.0
    %1095 = vmatpush1.msra.mxu0 %v1059
    %1096 = vmatprep.subr.mxu0 0.0
    %1097 = vmatpush1.msra.mxu0 %v1058
    %1098 = vmatprep.subr.mxu0 0.0
    %1099 = vmatpush1.msra.mxu0 %v1057
    %1100 = vmatprep.subr.mxu0 0.0
    %1101 = vmatpush1.msra.mxu0 %v1056
    %1102 = vmatprep.subr.mxu0 0.0
    %1103 = vmatpush2.msra.mxu0 0.0
    %1104 = vmatprep.subr.mxu0 0.0
    %1105 = vmatpush2.msra.mxu0 0.0
    %1106 = vmatprep.subr.mxu0 0.0
    %1107 = vmatpush2.msra.mxu0 0.0
    %1108 = vmatprep.subr.mxu0 0.0
    %1109 = vmatpush2.msra.mxu0 0.0
    %1110 = vmatprep.subr.mxu0 0.0
    %1111 = vmatpush2.msra.mxu0 0.0
    %1112 = vmatprep.subr.mxu0 0.0
    %1113 = vmatpush2.msra.mxu0 0.0
    %1114 = vmatprep.subr.mxu0 0.0
    %1115 = vmatpush2.msra.mxu0 0.0
    %1116 = vmatprep.subr.mxu0 0.0
    %1117 = vmatpush2.msra.mxu0 0.0
    %1118 = vmatprep.subr.mxu0 0.0
    %1119 = vmatpush2.msra.mxu0 0.0
    %1120 = vmatprep.subr.mxu0 0.0
    %1121 = vmatpush2.msra.mxu0 0.0
    %1122 = vmatprep.subr.mxu0 0.0
    %1123 = vmatpush2.msra.mxu0 0.0
    %1124 = vmatprep.subr.mxu0 0.0
    %1125 = vmatpush2.msra.mxu0 0.0
    %1126 = vmatprep.subr.mxu0 0.0
    %1127 = vmatpush2.msra.mxu0 0.0
    %1128 = vmatprep.subr.mxu0 0.0
    %1129 = vmatpush2.msra.mxu0 0.0
    %1130 = vmatprep.subr.mxu0 0.0
    %1131 = vmatpush2.msra.mxu0 0.0
    %1132 = vmatprep.subr.mxu0 0.0
    %1133 = vmatpush2.msra.mxu0 0.0
    %1134 = vmatprep.mubr.f32.mxu0 0.0
    %1135 = vmatmul.mubr.f32.gmra.mxu0 %v1065
    %v1136 = vpop.f32.mrf.mxu0
    %v1137 = vadd.f32 0.0, %v1136
    %v1138 = vpop.f32.mrf.mxu0
    %1139 = vmatprep.mubr.f32.mxu0 0.0
    %1140 = vmatmul.mubr.f32.gmra.mxu0 %v1068
    %v1141 = vpop.f32.mrf.mxu0
    %v1142 = vadd.f32 0.0, %v1141
    %v1143 = vpop.f32.mrf.mxu0
    %1144 = vdwg.mxu0
    %v1145 = vadd.f32 %v1053, %v1137
    %v1146 = vadd.f32 %v1054, %v1142
    %s1147 = scalar_lea.vmem [#allocation2], 320
    %v1148 = vld [vmem:[%s1147] sm:$0xff]
    %v1149 = vld [vmem:[%s1147 + $0x8] sm:$0xff]
    %v1150 = vld [vmem:[%s1147 + $0x10] sm:$0xff]
    %v1151 = vld [vmem:[%s1147 + $0x18] sm:$0xff]
    %v1152 = vld [vmem:[%s1147 + $0x20] sm:$0xff]
    %v1153 = vld [vmem:[%s1147 + $0x28] sm:$0xff]
    %v1154 = vld [vmem:[%s1147 + $0x30] sm:$0xff]
    %v1155 = vld [vmem:[%s1147 + $0x38] sm:$0xff]
    %v1157 = vsel %vm708, %v582, 0
    %v1160 = vsel %vm708, %v587, 0
    %1162 = vmatprep.subr.mxu0 0.0
    %1163 = vmatpush1.msra.mxu0 0.0
    %1164 = vmatprep.subr.mxu0 0.0
    %1165 = vmatpush1.msra.mxu0 0.0
    %1166 = vmatprep.subr.mxu0 0.0
    %1167 = vmatpush1.msra.mxu0 0.0
    %1168 = vmatprep.subr.mxu0 0.0
    %1169 = vmatpush1.msra.mxu0 0.0
    %1170 = vmatprep.subr.mxu0 0.0
    %1171 = vmatpush1.msra.mxu0 0.0
    %1172 = vmatprep.subr.mxu0 0.0
    %1173 = vmatpush1.msra.mxu0 0.0
    %1174 = vmatprep.subr.mxu0 0.0
    %1175 = vmatpush1.msra.mxu0 0.0
    %1176 = vmatprep.subr.mxu0 0.0
    %1177 = vmatpush1.msra.mxu0 0.0
    %1178 = vmatprep.subr.mxu0 0.0
    %1179 = vmatpush1.msra.mxu0 %v1155
    %1180 = vmatprep.subr.mxu0 0.0
    %1181 = vmatpush1.msra.mxu0 %v1154
    %1182 = vmatprep.subr.mxu0 0.0
    %1183 = vmatpush1.msra.mxu0 %v1153
    %1184 = vmatprep.subr.mxu0 0.0
    %1185 = vmatpush1.msra.mxu0 %v1152
    %1186 = vmatprep.subr.mxu0 0.0
    %1187 = vmatpush1.msra.mxu0 %v1151
    %1188 = vmatprep.subr.mxu0 0.0
    %1189 = vmatpush1.msra.mxu0 %v1150
    %1190 = vmatprep.subr.mxu0 0.0
    %1191 = vmatpush1.msra.mxu0 %v1149
    %1192 = vmatprep.subr.mxu0 0.0
    %1193 = vmatpush1.msra.mxu0 %v1148
    %1194 = vmatprep.subr.mxu0 0.0
    %1195 = vmatpush2.msra.mxu0 0.0
    %1196 = vmatprep.subr.mxu0 0.0
    %1197 = vmatpush2.msra.mxu0 0.0
    %1198 = vmatprep.subr.mxu0 0.0
    %1199 = vmatpush2.msra.mxu0 0.0
    %1200 = vmatprep.subr.mxu0 0.0
    %1201 = vmatpush2.msra.mxu0 0.0
    %1202 = vmatprep.subr.mxu0 0.0
    %1203 = vmatpush2.msra.mxu0 0.0
    %1204 = vmatprep.subr.mxu0 0.0
    %1205 = vmatpush2.msra.mxu0 0.0
    %1206 = vmatprep.subr.mxu0 0.0
    %1207 = vmatpush2.msra.mxu0 0.0
    %1208 = vmatprep.subr.mxu0 0.0
    %1209 = vmatpush2.msra.mxu0 0.0
    %1210 = vmatprep.subr.mxu0 0.0
    %1211 = vmatpush2.msra.mxu0 0.0
    %1212 = vmatprep.subr.mxu0 0.0
    %1213 = vmatpush2.msra.mxu0 0.0
    %1214 = vmatprep.subr.mxu0 0.0
    %1215 = vmatpush2.msra.mxu0 0.0
    %1216 = vmatprep.subr.mxu0 0.0
    %1217 = vmatpush2.msra.mxu0 0.0
    %1218 = vmatprep.subr.mxu0 0.0
    %1219 = vmatpush2.msra.mxu0 0.0
    %1220 = vmatprep.subr.mxu0 0.0
    %1221 = vmatpush2.msra.mxu0 0.0
    %1222 = vmatprep.subr.mxu0 0.0
    %1223 = vmatpush2.msra.mxu0 0.0
    %1224 = vmatprep.subr.mxu0 0.0
    %1225 = vmatpush2.msra.mxu0 0.0
    %1226 = vmatprep.mubr.f32.mxu0 0.0
    %1227 = vmatmul.mubr.f32.gmra.mxu0 %v1157
    %v1228 = vpop.f32.mrf.mxu0
    %v1229 = vadd.f32 0.0, %v1228
    %v1230 = vpop.f32.mrf.mxu0
    %1231 = vmatprep.mubr.f32.mxu0 0.0
    %1232 = vmatmul.mubr.f32.gmra.mxu0 %v1160
    %v1233 = vpop.f32.mrf.mxu0
    %v1234 = vadd.f32 0.0, %v1233
    %v1235 = vpop.f32.mrf.mxu0
    %1236 = vdwg.mxu0
    %v1237 = vadd.f32 %v1145, %v1229
    %v1238 = vadd.f32 %v1146, %v1234
    %s1239 = scalar_lea.vmem [#allocation2], 384
    %v1240 = vld [vmem:[%s1239] sm:$0xff]
    %v1241 = vld [vmem:[%s1239 + $0x8] sm:$0xff]
    %v1242 = vld [vmem:[%s1239 + $0x10] sm:$0xff]
    %v1243 = vld [vmem:[%s1239 + $0x18] sm:$0xff]
    %v1244 = vld [vmem:[%s1239 + $0x20] sm:$0xff]
    %v1245 = vld [vmem:[%s1239 + $0x28] sm:$0xff]
    %v1246 = vld [vmem:[%s1239 + $0x30] sm:$0xff]
    %v1247 = vld [vmem:[%s1239 + $0x38] sm:$0xff]
    %v1249 = vsel %vm708, %v663, 0
    %v1252 = vsel %vm708, %v668, 0
    %1254 = vmatprep.subr.mxu0 0.0
    %1255 = vmatpush1.msra.mxu0 0.0
    %1256 = vmatprep.subr.mxu0 0.0
    %1257 = vmatpush1.msra.mxu0 0.0
    %1258 = vmatprep.subr.mxu0 0.0
    %1259 = vmatpush1.msra.mxu0 0.0
    %1260 = vmatprep.subr.mxu0 0.0
    %1261 = vmatpush1.msra.mxu0 0.0
    %1262 = vmatprep.subr.mxu0 0.0
    %1263 = vmatpush1.msra.mxu0 0.0
    %1264 = vmatprep.subr.mxu0 0.0
    %1265 = vmatpush1.msra.mxu0 0.0
    %1266 = vmatprep.subr.mxu0 0.0
    %1267 = vmatpush1.msra.mxu0 0.0
    %1268 = vmatprep.subr.mxu0 0.0
    %1269 = vmatpush1.msra.mxu0 0.0
    %1270 = vmatprep.subr.mxu0 0.0
    %1271 = vmatpush1.msra.mxu0 %v1247
    %1272 = vmatprep.subr.mxu0 0.0
    %1273 = vmatpush1.msra.mxu0 %v1246
    %1274 = vmatprep.subr.mxu0 0.0
    %1275 = vmatpush1.msra.mxu0 %v1245
    %1276 = vmatprep.subr.mxu0 0.0
    %1277 = vmatpush1.msra.mxu0 %v1244
    %1278 = vmatprep.subr.mxu0 0.0
    %1279 = vmatpush1.msra.mxu0 %v1243
    %1280 = vmatprep.subr.mxu0 0.0
    %1281 = vmatpush1.msra.mxu0 %v1242
    %1282 = vmatprep.subr.mxu0 0.0
    %1283 = vmatpush1.msra.mxu0 %v1241
    %1284 = vmatprep.subr.mxu0 0.0
    %1285 = vmatpush1.msra.mxu0 %v1240
    %1286 = vmatprep.subr.mxu0 0.0
    %1287 = vmatpush2.msra.mxu0 0.0
    %1288 = vmatprep.subr.mxu0 0.0
    %1289 = vmatpush2.msra.mxu0 0.0
    %1290 = vmatprep.subr.mxu0 0.0
    %1291 = vmatpush2.msra.mxu0 0.0
    %1292 = vmatprep.subr.mxu0 0.0
    %1293 = vmatpush2.msra.mxu0 0.0
    %1294 = vmatprep.subr.mxu0 0.0
    %1295 = vmatpush2.msra.mxu0 0.0
    %1296 = vmatprep.subr.mxu0 0.0
    %1297 = vmatpush2.msra.mxu0 0.0
    %1298 = vmatprep.subr.mxu0 0.0
    %1299 = vmatpush2.msra.mxu0 0.0
    %1300 = vmatprep.subr.mxu0 0.0
    %1301 = vmatpush2.msra.mxu0 0.0
    %1302 = vmatprep.subr.mxu0 0.0
    %1303 = vmatpush2.msra.mxu0 0.0
    %1304 = vmatprep.subr.mxu0 0.0
    %1305 = vmatpush2.msra.mxu0 0.0
    %1306 = vmatprep.subr.mxu0 0.0
    %1307 = vmatpush2.msra.mxu0 0.0
    %1308 = vmatprep.subr.mxu0 0.0
    %1309 = vmatpush2.msra.mxu0 0.0
    %1310 = vmatprep.subr.mxu0 0.0
    %1311 = vmatpush2.msra.mxu0 0.0
    %1312 = vmatprep.subr.mxu0 0.0
    %1313 = vmatpush2.msra.mxu0 0.0
    %1314 = vmatprep.subr.mxu0 0.0
    %1315 = vmatpush2.msra.mxu0 0.0
    %1316 = vmatprep.subr.mxu0 0.0
    %1317 = vmatpush2.msra.mxu0 0.0
    %1318 = vmatprep.mubr.f32.mxu0 0.0
    %1319 = vmatmul.mubr.f32.gmra.mxu0 %v1249
    %v1320 = vpop.f32.mrf.mxu0
    %v1321 = vadd.f32 0.0, %v1320
    %v1322 = vpop.f32.mrf.mxu0
    %1323 = vmatprep.mubr.f32.mxu0 0.0
    %1324 = vmatmul.mubr.f32.gmra.mxu0 %v1252
    %v1325 = vpop.f32.mrf.mxu0
    %v1326 = vadd.f32 0.0, %v1325
    %v1327 = vpop.f32.mrf.mxu0
    %1328 = vdwg.mxu0
    %v1329 = vadd.f32 %v1237, %v1321
    %v1330 = vadd.f32 %v1238, %v1326
    %s1331 = scalar_lea.vmem [#allocation2], 448
    %v1332 = vld [vmem:[%s1331] sm:$0xff]
    %v1333 = vld [vmem:[%s1331 + $0x8] sm:$0xff]
    %v1334 = vld [vmem:[%s1331 + $0x10] sm:$0xff]
    %v1335 = vld [vmem:[%s1331 + $0x18] sm:$0xff]
    %v1336 = vld [vmem:[%s1331 + $0x20] sm:$0xff]
    %v1337 = vld [vmem:[%s1331 + $0x28] sm:$0xff]
    %v1338 = vld [vmem:[%s1331 + $0x30] sm:$0xff]
    %v1339 = vld [vmem:[%s1331 + $0x38] sm:$0xff]
    %v1341 = vsel %vm708, %v673, 0
    %v1344 = vsel %vm708, %v678, 0
    %1346 = vmatprep.subr.mxu0 0.0
    %1347 = vmatpush1.msra.mxu0 0.0
    %1348 = vmatprep.subr.mxu0 0.0
    %1349 = vmatpush1.msra.mxu0 0.0
    %1350 = vmatprep.subr.mxu0 0.0
    %1351 = vmatpush1.msra.mxu0 0.0
    %1352 = vmatprep.subr.mxu0 0.0
    %1353 = vmatpush1.msra.mxu0 0.0
    %1354 = vmatprep.subr.mxu0 0.0
    %1355 = vmatpush1.msra.mxu0 0.0
    %1356 = vmatprep.subr.mxu0 0.0
    %1357 = vmatpush1.msra.mxu0 0.0
    %1358 = vmatprep.subr.mxu0 0.0
    %1359 = vmatpush1.msra.mxu0 0.0
    %1360 = vmatprep.subr.mxu0 0.0
    %1361 = vmatpush1.msra.mxu0 0.0
    %1362 = vmatprep.subr.mxu0 0.0
    %1363 = vmatpush1.msra.mxu0 %v1339
    %1364 = vmatprep.subr.mxu0 0.0
    %1365 = vmatpush1.msra.mxu0 %v1338
    %1366 = vmatprep.subr.mxu0 0.0
    %1367 = vmatpush1.msra.mxu0 %v1337
    %1368 = vmatprep.subr.mxu0 0.0
    %1369 = vmatpush1.msra.mxu0 %v1336
    %1370 = vmatprep.subr.mxu0 0.0
    %1371 = vmatpush1.msra.mxu0 %v1335
    %1372 = vmatprep.subr.mxu0 0.0
    %1373 = vmatpush1.msra.mxu0 %v1334
    %1374 = vmatprep.subr.mxu0 0.0
    %1375 = vmatpush1.msra.mxu0 %v1333
    %1376 = vmatprep.subr.mxu0 0.0
    %1377 = vmatpush1.msra.mxu0 %v1332
    %1378 = vmatprep.subr.mxu0 0.0
    %1379 = vmatpush2.msra.mxu0 0.0
    %1380 = vmatprep.subr.mxu0 0.0
    %1381 = vmatpush2.msra.mxu0 0.0
    %1382 = vmatprep.subr.mxu0 0.0
    %1383 = vmatpush2.msra.mxu0 0.0
    %1384 = vmatprep.subr.mxu0 0.0
    %1385 = vmatpush2.msra.mxu0 0.0
    %1386 = vmatprep.subr.mxu0 0.0
    %1387 = vmatpush2.msra.mxu0 0.0
    %1388 = vmatprep.subr.mxu0 0.0
    %1389 = vmatpush2.msra.mxu0 0.0
    %1390 = vmatprep.subr.mxu0 0.0
    %1391 = vmatpush2.msra.mxu0 0.0
    %1392 = vmatprep.subr.mxu0 0.0
    %1393 = vmatpush2.msra.mxu0 0.0
    %1394 = vmatprep.subr.mxu0 0.0
    %1395 = vmatpush2.msra.mxu0 0.0
    %1396 = vmatprep.subr.mxu0 0.0
    %1397 = vmatpush2.msra.mxu0 0.0
    %1398 = vmatprep.subr.mxu0 0.0
    %1399 = vmatpush2.msra.mxu0 0.0
    %1400 = vmatprep.subr.mxu0 0.0
    %1401 = vmatpush2.msra.mxu0 0.0
    %1402 = vmatprep.subr.mxu0 0.0
    %1403 = vmatpush2.msra.mxu0 0.0
    %1404 = vmatprep.subr.mxu0 0.0
    %1405 = vmatpush2.msra.mxu0 0.0
    %1406 = vmatprep.subr.mxu0 0.0
    %1407 = vmatpush2.msra.mxu0 0.0
    %1408 = vmatprep.subr.mxu0 0.0
    %1409 = vmatpush2.msra.mxu0 0.0
    %1410 = vmatprep.mubr.f32.mxu0 0.0
    %1411 = vmatmul.mubr.f32.gmra.mxu0 %v1341
    %v1412 = vpop.f32.mrf.mxu0
    %v1413 = vadd.f32 0.0, %v1412
    %v1414 = vpop.f32.mrf.mxu0
    %1415 = vmatprep.mubr.f32.mxu0 0.0
    %1416 = vmatmul.mubr.f32.gmra.mxu0 %v1344
    %v1417 = vpop.f32.mrf.mxu0
    %v1418 = vadd.f32 0.0, %v1417
    %v1419 = vpop.f32.mrf.mxu0
    %1420 = vdwg.mxu0
    %v1421 = vadd.f32 %v1329, %v1413
    %v1422 = vadd.f32 %v1330, %v1418
    %s1423 = scalar_lea.vmem [#allocation2], 512
    %v1424 = vld [vmem:[%s1423] sm:$0xff]
    %v1425 = vld [vmem:[%s1423 + $0x8] sm:$0xff]
    %v1426 = vld [vmem:[%s1423 + $0x10] sm:$0xff]
    %v1427 = vld [vmem:[%s1423 + $0x18] sm:$0xff]
    %v1428 = vld [vmem:[%s1423 + $0x20] sm:$0xff]
    %v1429 = vld [vmem:[%s1423 + $0x28] sm:$0xff]
    %v1430 = vld [vmem:[%s1423 + $0x30] sm:$0xff]
    %v1431 = vld [vmem:[%s1423 + $0x38] sm:$0xff]
    %v1433 = vsel %vm708, %v683, 0
    %v1436 = vsel %vm708, %v688, 0
    %1438 = vmatprep.subr.mxu0 0.0
    %1439 = vmatpush1.msra.mxu0 0.0
    %1440 = vmatprep.subr.mxu0 0.0
    %1441 = vmatpush1.msra.mxu0 0.0
    %1442 = vmatprep.subr.mxu0 0.0
    %1443 = vmatpush1.msra.mxu0 0.0
    %1444 = vmatprep.subr.mxu0 0.0
    %1445 = vmatpush1.msra.mxu0 0.0
    %1446 = vmatprep.subr.mxu0 0.0
    %1447 = vmatpush1.msra.mxu0 0.0
    %1448 = vmatprep.subr.mxu0 0.0
    %1449 = vmatpush1.msra.mxu0 0.0
    %1450 = vmatprep.subr.mxu0 0.0
    %1451 = vmatpush1.msra.mxu0 0.0
    %1452 = vmatprep.subr.mxu0 0.0
    %1453 = vmatpush1.msra.mxu0 0.0
    %1454 = vmatprep.subr.mxu0 0.0
    %1455 = vmatpush1.msra.mxu0 %v1431
    %1456 = vmatprep.subr.mxu0 0.0
    %1457 = vmatpush1.msra.mxu0 %v1430
    %1458 = vmatprep.subr.mxu0 0.0
    %1459 = vmatpush1.msra.mxu0 %v1429
    %1460 = vmatprep.subr.mxu0 0.0
    %1461 = vmatpush1.msra.mxu0 %v1428
    %1462 = vmatprep.subr.mxu0 0.0
    %1463 = vmatpush1.msra.mxu0 %v1427
    %1464 = vmatprep.subr.mxu0 0.0
    %1465 = vmatpush1.msra.mxu0 %v1426
    %1466 = vmatprep.subr.mxu0 0.0
    %1467 = vmatpush1.msra.mxu0 %v1425
    %1468 = vmatprep.subr.mxu0 0.0
    %1469 = vmatpush1.msra.mxu0 %v1424
    %1470 = vmatprep.subr.mxu0 0.0
    %1471 = vmatpush2.msra.mxu0 0.0
    %1472 = vmatprep.subr.mxu0 0.0
    %1473 = vmatpush2.msra.mxu0 0.0
    %1474 = vmatprep.subr.mxu0 0.0
    %1475 = vmatpush2.msra.mxu0 0.0
    %1476 = vmatprep.subr.mxu0 0.0
    %1477 = vmatpush2.msra.mxu0 0.0
    %1478 = vmatprep.subr.mxu0 0.0
    %1479 = vmatpush2.msra.mxu0 0.0
    %1480 = vmatprep.subr.mxu0 0.0
    %1481 = vmatpush2.msra.mxu0 0.0
    %1482 = vmatprep.subr.mxu0 0.0
    %1483 = vmatpush2.msra.mxu0 0.0
    %1484 = vmatprep.subr.mxu0 0.0
    %1485 = vmatpush2.msra.mxu0 0.0
    %1486 = vmatprep.subr.mxu0 0.0
    %1487 = vmatpush2.msra.mxu0 0.0
    %1488 = vmatprep.subr.mxu0 0.0
    %1489 = vmatpush2.msra.mxu0 0.0
    %1490 = vmatprep.subr.mxu0 0.0
    %1491 = vmatpush2.msra.mxu0 0.0
    %1492 = vmatprep.subr.mxu0 0.0
    %1493 = vmatpush2.msra.mxu0 0.0
    %1494 = vmatprep.subr.mxu0 0.0
    %1495 = vmatpush2.msra.mxu0 0.0
    %1496 = vmatprep.subr.mxu0 0.0
    %1497 = vmatpush2.msra.mxu0 0.0
    %1498 = vmatprep.subr.mxu0 0.0
    %1499 = vmatpush2.msra.mxu0 0.0
    %1500 = vmatprep.subr.mxu0 0.0
    %1501 = vmatpush2.msra.mxu0 0.0
    %1502 = vmatprep.mubr.f32.mxu0 0.0
    %1503 = vmatmul.mubr.f32.gmra.mxu0 %v1433
    %v1504 = vpop.f32.mrf.mxu0
    %v1505 = vadd.f32 0.0, %v1504
    %v1506 = vpop.f32.mrf.mxu0
    %1507 = vmatprep.mubr.f32.mxu0 0.0
    %1508 = vmatmul.mubr.f32.gmra.mxu0 %v1436
    %v1509 = vpop.f32.mrf.mxu0
    %v1510 = vadd.f32 0.0, %v1509
    %v1511 = vpop.f32.mrf.mxu0
    %1512 = vdwg.mxu0
    %v1513 = vadd.f32 %v1421, %v1505
    %v1514 = vadd.f32 %v1422, %v1510
    %v1515 = vld [vmem:[%s3 + $0x9] sm:$0x1]
    %v1516 = vlaneseq
    %v1517 = vshrl.u32 %v1516, 7
    %v1518 = vsub.s32 0, %v1517
    %v1519 = vrot.slane %v1515, %v1518
    %v1520 = vadd.f32 %v1513, %v1519
    %v1521 = vadd.f32 %v1514, %v1519
    %1522 = vmatprep.subr.mxu0 0.0
    %1523 = vmatpush1.msra.mxu0 0.0
    %1524 = vmatprep.subr.mxu0 0.0
    %1525 = vmatpush1.msra.mxu0 0.0
    %1526 = vmatprep.subr.mxu0 0.0
    %1527 = vmatpush1.msra.mxu0 0.0
    %1528 = vmatprep.subr.mxu0 0.0
    %1529 = vmatpush1.msra.mxu0 0.0
    %1530 = vmatprep.subr.mxu0 0.0
    %1531 = vmatpush1.msra.mxu0 0.0
    %1532 = vmatprep.subr.mxu0 0.0
    %1533 = vmatpush1.msra.mxu0 0.0
    %1534 = vmatprep.subr.mxu0 0.0
    %1535 = vmatpush1.msra.mxu0 0.0
    %1536 = vmatprep.subr.mxu0 0.0
    %1537 = vmatpush1.msra.mxu0 0.0
    %1538 = vmatprep.subr.mxu0 0.0
    %1539 = vmatpush1.msra.mxu0 0.0
    %1540 = vmatprep.subr.mxu0 0.0
    %1541 = vmatpush1.msra.mxu0 0.0
    %1542 = vmatprep.subr.mxu0 0.0
    %1543 = vmatpush1.msra.mxu0 0.0
    %1544 = vmatprep.subr.mxu0 0.0
    %1545 = vmatpush1.msra.mxu0 0.0
    %1546 = vmatprep.subr.mxu0 0.0
    %1547 = vmatpush1.msra.mxu0 0.0
    %1548 = vmatprep.subr.mxu0 0.0
    %1549 = vmatpush1.msra.mxu0 0.0
    %1550 = vmatprep.subr.mxu0 0.0
    %1551 = vmatpush1.msra.mxu0 %v1521
    %1552 = vmatprep.subr.mxu0 0.0
    %1553 = vmatpush1.msra.mxu0 %v1520
    %1554 = vmatprep.subr.mxu0 0.0
    %1555 = vmatpush2.msra.mxu0 0.0
    %1556 = vmatprep.subr.mxu0 0.0
    %1557 = vmatpush2.msra.mxu0 0.0
    %1558 = vmatprep.subr.mxu0 0.0
    %1559 = vmatpush2.msra.mxu0 0.0
    %1560 = vmatprep.subr.mxu0 0.0
    %1561 = vmatpush2.msra.mxu0 0.0
    %1562 = vmatprep.subr.mxu0 0.0
    %1563 = vmatpush2.msra.mxu0 0.0
    %1564 = vmatprep.subr.mxu0 0.0
    %1565 = vmatpush2.msra.mxu0 0.0
    %1566 = vmatprep.subr.mxu0 0.0
    %1567 = vmatpush2.msra.mxu0 0.0
    %1568 = vmatprep.subr.mxu0 0.0
    %1569 = vmatpush2.msra.mxu0 0.0
    %1570 = vmatprep.subr.mxu0 0.0
    %1571 = vmatpush2.msra.mxu0 0.0
    %1572 = vmatprep.subr.mxu0 0.0
    %1573 = vmatpush2.msra.mxu0 0.0
    %1574 = vmatprep.subr.mxu0 0.0
    %1575 = vmatpush2.msra.mxu0 0.0
    %1576 = vmatprep.subr.mxu0 0.0
    %1577 = vmatpush2.msra.mxu0 0.0
    %1578 = vmatprep.subr.mxu0 0.0
    %1579 = vmatpush2.msra.mxu0 0.0
    %1580 = vmatprep.subr.mxu0 0.0
    %1581 = vmatpush2.msra.mxu0 0.0
    %1582 = vmatprep.subr.mxu0 0.0
    %1583 = vmatpush2.msra.mxu0 0.0
    %1584 = vmatprep.subr.mxu0 0.0
    %1585 = vmatpush2.msra.mxu0 0.0
    %1586 = vmatprep.mubr.f32.mxu0 0.0
    %1587 = vmatmul.mubr.f32.gmra.mxu0 %v430
    %v1588 = vpop.f32.mrf.mxu0
    %v1589 = vadd.f32 0.0, %v1588
    %v1590 = vpop.f32.mrf.mxu0
    %1591 = vmatprep.mubr.f32.mxu0 0.0
    %1592 = vmatmul.mubr.f32.gmra.mxu0 %v433
    %v1593 = vpop.f32.mrf.mxu0
    %v1594 = vadd.f32 0.0, %v1593
    %v1595 = vpop.f32.mrf.mxu0
    %1596 = vmatprep.mubr.f32.mxu0 0.0
    %1597 = vmatmul.mubr.f32.gmra.mxu0 %v436
    %v1598 = vpop.f32.mrf.mxu0
    %v1599 = vadd.f32 0.0, %v1598
    %v1600 = vpop.f32.mrf.mxu0
    %1601 = vmatprep.mubr.f32.mxu0 0.0
    %1602 = vmatmul.mubr.f32.gmra.mxu0 %v439
    %v1603 = vpop.f32.mrf.mxu0
    %v1604 = vadd.f32 0.0, %v1603
    %v1605 = vpop.f32.mrf.mxu0
    %1606 = vmatprep.mubr.f32.mxu0 0.0
    %1607 = vmatmul.mubr.f32.gmra.mxu0 %v442
    %v1608 = vpop.f32.mrf.mxu0
    %v1609 = vadd.f32 0.0, %v1608
    %v1610 = vpop.f32.mrf.mxu0
    %1611 = vmatprep.mubr.f32.mxu0 0.0
    %1612 = vmatmul.mubr.f32.gmra.mxu0 %v445
    %v1613 = vpop.f32.mrf.mxu0
    %v1614 = vadd.f32 0.0, %v1613
    %v1615 = vpop.f32.mrf.mxu0
    %1616 = vmatprep.mubr.f32.mxu0 0.0
    %1617 = vmatmul.mubr.f32.gmra.mxu0 %v448
    %v1618 = vpop.f32.mrf.mxu0
    %v1619 = vadd.f32 0.0, %v1618
    %v1620 = vpop.f32.mrf.mxu0
    %1621 = vmatprep.mubr.f32.mxu0 0.0
    %1622 = vmatmul.mubr.f32.gmra.mxu0 %v451
    %v1623 = vpop.f32.mrf.mxu0
    %v1624 = vadd.f32 0.0, %v1623
    %v1625 = vpop.f32.mrf.mxu0
    %1626 = vmatprep.mubr.f32.mxu0 0.0
    %1627 = vmatmul.mubr.f32.gmra.mxu0 %v454
    %v1628 = vpop.f32.mrf.mxu0
    %v1629 = vadd.f32 0.0, %v1628
    %v1630 = vpop.f32.mrf.mxu0
    %1631 = vmatprep.mubr.f32.mxu0 0.0
    %1632 = vmatmul.mubr.f32.gmra.mxu0 %v457
    %v1633 = vpop.f32.mrf.mxu0
    %v1634 = vadd.f32 0.0, %v1633
    %v1635 = vpop.f32.mrf.mxu0
    %1636 = vmatprep.mubr.f32.mxu0 0.0
    %1637 = vmatmul.mubr.f32.gmra.mxu0 %v460
    %v1638 = vpop.f32.mrf.mxu0
    %v1639 = vadd.f32 0.0, %v1638
    %v1640 = vpop.f32.mrf.mxu0
    %1641 = vmatprep.mubr.f32.mxu0 0.0
    %1642 = vmatmul.mubr.f32.gmra.mxu0 %v463
    %v1643 = vpop.f32.mrf.mxu0
    %v1644 = vadd.f32 0.0, %v1643
    %v1645 = vpop.f32.mrf.mxu0
    %1646 = vdwg.mxu0
    %1647 = vmatprep.subr.mxu0 0.0
    %1648 = vmatpush1.msra.mxu0 0.0
    %1649 = vmatprep.subr.mxu0 0.0
    %1650 = vmatpush1.msra.mxu0 0.0
    %1651 = vmatprep.subr.mxu0 0.0
    %1652 = vmatpush1.msra.mxu0 0.0
    %1653 = vmatprep.subr.mxu0 0.0
    %1654 = vmatpush1.msra.mxu0 0.0
    %1655 = vmatprep.subr.mxu0 0.0
    %1656 = vmatpush1.msra.mxu0 0.0
    %1657 = vmatprep.subr.mxu0 0.0
    %1658 = vmatpush1.msra.mxu0 0.0
    %1659 = vmatprep.subr.mxu0 0.0
    %1660 = vmatpush1.msra.mxu0 0.0
    %1661 = vmatprep.subr.mxu0 0.0
    %1662 = vmatpush1.msra.mxu0 0.0
    %1663 = vmatprep.subr.mxu0 0.0
    %1664 = vmatpush1.msra.mxu0 0.0
    %1665 = vmatprep.subr.mxu0 0.0
    %1666 = vmatpush1.msra.mxu0 0.0
    %1667 = vmatprep.subr.mxu0 0.0
    %1668 = vmatpush1.msra.mxu0 0.0
    %1669 = vmatprep.subr.mxu0 0.0
    %1670 = vmatpush1.msra.mxu0 0.0
    %1671 = vmatprep.subr.mxu0 0.0
    %1672 = vmatpush1.msra.mxu0 0.0
    %1673 = vmatprep.subr.mxu0 0.0
    %1674 = vmatpush1.msra.mxu0 0.0
    %1675 = vmatprep.subr.mxu0 0.0
    %1676 = vmatpush1.msra.mxu0 %v1521
    %1677 = vmatprep.subr.mxu0 0.0
    %1678 = vmatpush1.msra.mxu0 %v1520
    %1679 = vmatprep.subr.mxu0 0.0
    %1680 = vmatpush2.msra.mxu0 0.0
    %1681 = vmatprep.subr.mxu0 0.0
    %1682 = vmatpush2.msra.mxu0 0.0
    %1683 = vmatprep.subr.mxu0 0.0
    %1684 = vmatpush2.msra.mxu0 0.0
    %1685 = vmatprep.subr.mxu0 0.0
    %1686 = vmatpush2.msra.mxu0 0.0
    %1687 = vmatprep.subr.mxu0 0.0
    %1688 = vmatpush2.msra.mxu0 0.0
    %1689 = vmatprep.subr.mxu0 0.0
    %1690 = vmatpush2.msra.mxu0 0.0
    %1691 = vmatprep.subr.mxu0 0.0
    %1692 = vmatpush2.msra.mxu0 0.0
    %1693 = vmatprep.subr.mxu0 0.0
    %1694 = vmatpush2.msra.mxu0 0.0
    %1695 = vmatprep.subr.mxu0 0.0
    %1696 = vmatpush2.msra.mxu0 0.0
    %1697 = vmatprep.subr.mxu0 0.0
    %1698 = vmatpush2.msra.mxu0 0.0
    %1699 = vmatprep.subr.mxu0 0.0
    %1700 = vmatpush2.msra.mxu0 0.0
    %1701 = vmatprep.subr.mxu0 0.0
    %1702 = vmatpush2.msra.mxu0 0.0
    %1703 = vmatprep.subr.mxu0 0.0
    %1704 = vmatpush2.msra.mxu0 0.0
    %1705 = vmatprep.subr.mxu0 0.0
    %1706 = vmatpush2.msra.mxu0 0.0
    %1707 = vmatprep.subr.mxu0 0.0
    %1708 = vmatpush2.msra.mxu0 0.0
    %1709 = vmatprep.subr.mxu0 0.0
    %1710 = vmatpush2.msra.mxu0 0.0
    %1711 = vmatprep.mubr.f32.mxu0 0.0
    %1712 = vmatmul.mubr.f32.gmra.mxu0 %v176
    %v1713 = vpop.f32.mrf.mxu0
    %v1714 = vadd.f32 0.0, %v1713
    %v1715 = vpop.f32.mrf.mxu0
    %1716 = vmatprep.mubr.f32.mxu0 0.0
    %1717 = vmatmul.mubr.f32.gmra.mxu0 %v179
    %v1718 = vpop.f32.mrf.mxu0
    %v1719 = vadd.f32 0.0, %v1718
    %v1720 = vpop.f32.mrf.mxu0
    %1721 = vmatprep.mubr.f32.mxu0 0.0
    %1722 = vmatmul.mubr.f32.gmra.mxu0 %v257
    %v1723 = vpop.f32.mrf.mxu0
    %v1724 = vadd.f32 0.0, %v1723
    %v1725 = vpop.f32.mrf.mxu0
    %1726 = vmatprep.mubr.f32.mxu0 0.0
    %1727 = vmatmul.mubr.f32.gmra.mxu0 %v260
    %v1728 = vpop.f32.mrf.mxu0
    %v1729 = vadd.f32 0.0, %v1728
    %v1730 = vpop.f32.mrf.mxu0
    %1731 = vmatprep.mubr.f32.mxu0 0.0
    %1732 = vmatmul.mubr.f32.gmra.mxu0 %v591
    %v1733 = vpop.f32.mrf.mxu0
    %v1734 = vadd.f32 0.0, %v1733
    %v1735 = vpop.f32.mrf.mxu0
    %1736 = vmatprep.mubr.f32.mxu0 0.0
    %1737 = vmatmul.mubr.f32.gmra.mxu0 %v594
    %v1738 = vpop.f32.mrf.mxu0
    %v1739 = vadd.f32 0.0, %v1738
    %v1740 = vpop.f32.mrf.mxu0
    %1741 = vdwg.mxu0
    %s1742 = scalar_lea.vmem [#allocation2], 576
    %v1743 = vld [vmem:[%s1742] sm:$0xff]
    %v1744 = vld [vmem:[%s1742 + $0x8] sm:$0xff]
    %v1745 = vld [vmem:[%s1742 + $0x10] sm:$0xff]
    %v1746 = vld [vmem:[%s1742 + $0x18] sm:$0xff]
    %v1747 = vld [vmem:[%s1742 + $0x20] sm:$0xff]
    %v1748 = vld [vmem:[%s1742 + $0x28] sm:$0xff]
    %v1749 = vld [vmem:[%s1742 + $0x30] sm:$0xff]
    %v1750 = vld [vmem:[%s1742 + $0x38] sm:$0xff]
    %s1751 = scalar_lea.vmem [#allocation2], 640
    %v1752 = vld [vmem:[%s1751] sm:$0xff]
    %v1753 = vld [vmem:[%s1751 + $0x8] sm:$0xff]
    %v1754 = vld [vmem:[%s1751 + $0x10] sm:$0xff]
    %v1755 = vld [vmem:[%s1751 + $0x18] sm:$0xff]
    %v1756 = vld [vmem:[%s1751 + $0x20] sm:$0xff]
    %v1757 = vld [vmem:[%s1751 + $0x28] sm:$0xff]
    %v1758 = vld [vmem:[%s1751 + $0x30] sm:$0xff]
    %v1759 = vld [vmem:[%s1751 + $0x38] sm:$0xff]
    %v1761 = vsel %vm708, %v1599, 0
    %v1764 = vsel %vm708, %v1604, 0
    %1766 = vmatprep.subr.mxu0 0.0
    %1767 = vmatpush1.msra.mxu0 0.0
    %1768 = vmatprep.subr.mxu0 0.0
    %1769 = vmatpush1.msra.mxu0 0.0
    %1770 = vmatprep.subr.mxu0 0.0
    %1771 = vmatpush1.msra.mxu0 0.0
    %1772 = vmatprep.subr.mxu0 0.0
    %1773 = vmatpush1.msra.mxu0 0.0
    %1774 = vmatprep.subr.mxu0 0.0
    %1775 = vmatpush1.msra.mxu0 0.0
    %1776 = vmatprep.subr.mxu0 0.0
    %1777 = vmatpush1.msra.mxu0 0.0
    %1778 = vmatprep.subr.mxu0 0.0
    %1779 = vmatpush1.msra.mxu0 0.0
    %1780 = vmatprep.subr.mxu0 0.0
    %1781 = vmatpush1.msra.mxu0 0.0
    %1782 = vmatprep.subr.mxu0 0.0
    %1783 = vmatpush1.msra.mxu0 %v1759
    %1784 = vmatprep.subr.mxu0 0.0
    %1785 = vmatpush1.msra.mxu0 %v1758
    %1786 = vmatprep.subr.mxu0 0.0
    %1787 = vmatpush1.msra.mxu0 %v1757
    %1788 = vmatprep.subr.mxu0 0.0
    %1789 = vmatpush1.msra.mxu0 %v1756
    %1790 = vmatprep.subr.mxu0 0.0
    %1791 = vmatpush1.msra.mxu0 %v1755
    %1792 = vmatprep.subr.mxu0 0.0
    %1793 = vmatpush1.msra.mxu0 %v1754
    %1794 = vmatprep.subr.mxu0 0.0
    %1795 = vmatpush1.msra.mxu0 %v1753
    %1796 = vmatprep.subr.mxu0 0.0
    %1797 = vmatpush1.msra.mxu0 %v1752
    %1798 = vmatprep.subr.mxu0 0.0
    %1799 = vmatpush2.msra.mxu0 0.0
    %1800 = vmatprep.subr.mxu0 0.0
    %1801 = vmatpush2.msra.mxu0 0.0
    %1802 = vmatprep.subr.mxu0 0.0
    %1803 = vmatpush2.msra.mxu0 0.0
    %1804 = vmatprep.subr.mxu0 0.0
    %1805 = vmatpush2.msra.mxu0 0.0
    %1806 = vmatprep.subr.mxu0 0.0
    %1807 = vmatpush2.msra.mxu0 0.0
    %1808 = vmatprep.subr.mxu0 0.0
    %1809 = vmatpush2.msra.mxu0 0.0
    %1810 = vmatprep.subr.mxu0 0.0
    %1811 = vmatpush2.msra.mxu0 0.0
    %1812 = vmatprep.subr.mxu0 0.0
    %1813 = vmatpush2.msra.mxu0 0.0
    %1814 = vmatprep.subr.mxu0 0.0
    %1815 = vmatpush2.msra.mxu0 0.0
    %1816 = vmatprep.subr.mxu0 0.0
    %1817 = vmatpush2.msra.mxu0 0.0
    %1818 = vmatprep.subr.mxu0 0.0
    %1819 = vmatpush2.msra.mxu0 0.0
    %1820 = vmatprep.subr.mxu0 0.0
    %1821 = vmatpush2.msra.mxu0 0.0
    %1822 = vmatprep.subr.mxu0 0.0
    %1823 = vmatpush2.msra.mxu0 0.0
    %1824 = vmatprep.subr.mxu0 0.0
    %1825 = vmatpush2.msra.mxu0 0.0
    %1826 = vmatprep.subr.mxu0 0.0
    %1827 = vmatpush2.msra.mxu0 0.0
    %1828 = vmatprep.subr.mxu0 0.0
    %1829 = vmatpush2.msra.mxu0 0.0
    %1830 = vmatprep.mubr.f32.mxu0 0.0
    %1831 = vmatmul.mubr.f32.gmra.mxu0 %v1761
    %v1832 = vpop.f32.mrf.mxu0
    %v1833 = vadd.f32 0.0, %v1832
    %v1834 = vpop.f32.mrf.mxu0
    %1835 = vmatprep.mubr.f32.mxu0 0.0
    %1836 = vmatmul.mubr.f32.gmra.mxu0 %v1764
    %v1837 = vpop.f32.mrf.mxu0
    %v1838 = vadd.f32 0.0, %v1837
    %v1839 = vpop.f32.mrf.mxu0
    %1840 = vdwg.mxu0
    %v1842 = vsel %vm708, %v1589, 0
    %v1845 = vsel %vm708, %v1594, 0
    %1847 = vmatprep.subr.mxu0 0.0
    %1848 = vmatpush1.msra.mxu0 0.0
    %1849 = vmatprep.subr.mxu0 0.0
    %1850 = vmatpush1.msra.mxu0 0.0
    %1851 = vmatprep.subr.mxu0 0.0
    %1852 = vmatpush1.msra.mxu0 0.0
    %1853 = vmatprep.subr.mxu0 0.0
    %1854 = vmatpush1.msra.mxu0 0.0
    %1855 = vmatprep.subr.mxu0 0.0
    %1856 = vmatpush1.msra.mxu0 0.0
    %1857 = vmatprep.subr.mxu0 0.0
    %1858 = vmatpush1.msra.mxu0 0.0
    %1859 = vmatprep.subr.mxu0 0.0
    %1860 = vmatpush1.msra.mxu0 0.0
    %1861 = vmatprep.subr.mxu0 0.0
    %1862 = vmatpush1.msra.mxu0 0.0
    %1863 = vmatprep.subr.mxu0 0.0
    %1864 = vmatpush1.msra.mxu0 %v1750
    %1865 = vmatprep.subr.mxu0 0.0
    %1866 = vmatpush1.msra.mxu0 %v1749
    %1867 = vmatprep.subr.mxu0 0.0
    %1868 = vmatpush1.msra.mxu0 %v1748
    %1869 = vmatprep.subr.mxu0 0.0
    %1870 = vmatpush1.msra.mxu0 %v1747
    %1871 = vmatprep.subr.mxu0 0.0
    %1872 = vmatpush1.msra.mxu0 %v1746
    %1873 = vmatprep.subr.mxu0 0.0
    %1874 = vmatpush1.msra.mxu0 %v1745
    %1875 = vmatprep.subr.mxu0 0.0
    %1876 = vmatpush1.msra.mxu0 %v1744
    %1877 = vmatprep.subr.mxu0 0.0
    %1878 = vmatpush1.msra.mxu0 %v1743
    %1879 = vmatprep.subr.mxu0 0.0
    %1880 = vmatpush2.msra.mxu0 0.0
    %1881 = vmatprep.subr.mxu0 0.0
    %1882 = vmatpush2.msra.mxu0 0.0
    %1883 = vmatprep.subr.mxu0 0.0
    %1884 = vmatpush2.msra.mxu0 0.0
    %1885 = vmatprep.subr.mxu0 0.0
    %1886 = vmatpush2.msra.mxu0 0.0
    %1887 = vmatprep.subr.mxu0 0.0
    %1888 = vmatpush2.msra.mxu0 0.0
    %1889 = vmatprep.subr.mxu0 0.0
    %1890 = vmatpush2.msra.mxu0 0.0
    %1891 = vmatprep.subr.mxu0 0.0
    %1892 = vmatpush2.msra.mxu0 0.0
    %1893 = vmatprep.subr.mxu0 0.0
    %1894 = vmatpush2.msra.mxu0 0.0
    %1895 = vmatprep.subr.mxu0 0.0
    %1896 = vmatpush2.msra.mxu0 0.0
    %1897 = vmatprep.subr.mxu0 0.0
    %1898 = vmatpush2.msra.mxu0 0.0
    %1899 = vmatprep.subr.mxu0 0.0
    %1900 = vmatpush2.msra.mxu0 0.0
    %1901 = vmatprep.subr.mxu0 0.0
    %1902 = vmatpush2.msra.mxu0 0.0
    %1903 = vmatprep.subr.mxu0 0.0
    %1904 = vmatpush2.msra.mxu0 0.0
    %1905 = vmatprep.subr.mxu0 0.0
    %1906 = vmatpush2.msra.mxu0 0.0
    %1907 = vmatprep.subr.mxu0 0.0
    %1908 = vmatpush2.msra.mxu0 0.0
    %1909 = vmatprep.subr.mxu0 0.0
    %1910 = vmatpush2.msra.mxu0 0.0
    %1911 = vmatprep.mubr.f32.mxu0 0.0
    %1912 = vmatmul.mubr.f32.gmra.mxu0 %v1842
    %v1913 = vpop.f32.mrf.mxu0
    %v1914 = vadd.f32 %v1833, %v1913
    %v1915 = vpop.f32.mrf.mxu0
    %1916 = vmatprep.mubr.f32.mxu0 0.0
    %1917 = vmatmul.mubr.f32.gmra.mxu0 %v1845
    %v1918 = vpop.f32.mrf.mxu0
    %v1919 = vadd.f32 %v1838, %v1918
    %v1920 = vpop.f32.mrf.mxu0
    %1921 = vdwg.mxu0
    %s1922 = scalar_lea.vmem [#allocation2], 704
    %v1923 = vld [vmem:[%s1922] sm:$0xff]
    %v1924 = vld [vmem:[%s1922 + $0x8] sm:$0xff]
    %v1925 = vld [vmem:[%s1922 + $0x10] sm:$0xff]
    %v1926 = vld [vmem:[%s1922 + $0x18] sm:$0xff]
    %v1927 = vld [vmem:[%s1922 + $0x20] sm:$0xff]
    %v1928 = vld [vmem:[%s1922 + $0x28] sm:$0xff]
    %v1929 = vld [vmem:[%s1922 + $0x30] sm:$0xff]
    %v1930 = vld [vmem:[%s1922 + $0x38] sm:$0xff]
    %v1932 = vsel %vm708, %v1609, 0
    %v1935 = vsel %vm708, %v1614, 0
    %1937 = vmatprep.subr.mxu0 0.0
    %1938 = vmatpush1.msra.mxu0 0.0
    %1939 = vmatprep.subr.mxu0 0.0
    %1940 = vmatpush1.msra.mxu0 0.0
    %1941 = vmatprep.subr.mxu0 0.0
    %1942 = vmatpush1.msra.mxu0 0.0
    %1943 = vmatprep.subr.mxu0 0.0
    %1944 = vmatpush1.msra.mxu0 0.0
    %1945 = vmatprep.subr.mxu0 0.0
    %1946 = vmatpush1.msra.mxu0 0.0
    %1947 = vmatprep.subr.mxu0 0.0
    %1948 = vmatpush1.msra.mxu0 0.0
    %1949 = vmatprep.subr.mxu0 0.0
    %1950 = vmatpush1.msra.mxu0 0.0
    %1951 = vmatprep.subr.mxu0 0.0
    %1952 = vmatpush1.msra.mxu0 0.0
    %1953 = vmatprep.subr.mxu0 0.0
    %1954 = vmatpush1.msra.mxu0 %v1930
    %1955 = vmatprep.subr.mxu0 0.0
    %1956 = vmatpush1.msra.mxu0 %v1929
    %1957 = vmatprep.subr.mxu0 0.0
    %1958 = vmatpush1.msra.mxu0 %v1928
    %1959 = vmatprep.subr.mxu0 0.0
    %1960 = vmatpush1.msra.mxu0 %v1927
    %1961 = vmatprep.subr.mxu0 0.0
    %1962 = vmatpush1.msra.mxu0 %v1926
    %1963 = vmatprep.subr.mxu0 0.0
    %1964 = vmatpush1.msra.mxu0 %v1925
    %1965 = vmatprep.subr.mxu0 0.0
    %1966 = vmatpush1.msra.mxu0 %v1924
    %1967 = vmatprep.subr.mxu0 0.0
    %1968 = vmatpush1.msra.mxu0 %v1923
    %1969 = vmatprep.subr.mxu0 0.0
    %1970 = vmatpush2.msra.mxu0 0.0
    %1971 = vmatprep.subr.mxu0 0.0
    %1972 = vmatpush2.msra.mxu0 0.0
    %1973 = vmatprep.subr.mxu0 0.0
    %1974 = vmatpush2.msra.mxu0 0.0
    %1975 = vmatprep.subr.mxu0 0.0
    %1976 = vmatpush2.msra.mxu0 0.0
    %1977 = vmatprep.subr.mxu0 0.0
    %1978 = vmatpush2.msra.mxu0 0.0
    %1979 = vmatprep.subr.mxu0 0.0
    %1980 = vmatpush2.msra.mxu0 0.0
    %1981 = vmatprep.subr.mxu0 0.0
    %1982 = vmatpush2.msra.mxu0 0.0
    %1983 = vmatprep.subr.mxu0 0.0
    %1984 = vmatpush2.msra.mxu0 0.0
    %1985 = vmatprep.subr.mxu0 0.0
    %1986 = vmatpush2.msra.mxu0 0.0
    %1987 = vmatprep.subr.mxu0 0.0
    %1988 = vmatpush2.msra.mxu0 0.0
    %1989 = vmatprep.subr.mxu0 0.0
    %1990 = vmatpush2.msra.mxu0 0.0
    %1991 = vmatprep.subr.mxu0 0.0
    %1992 = vmatpush2.msra.mxu0 0.0
    %1993 = vmatprep.subr.mxu0 0.0
    %1994 = vmatpush2.msra.mxu0 0.0
    %1995 = vmatprep.subr.mxu0 0.0
    %1996 = vmatpush2.msra.mxu0 0.0
    %1997 = vmatprep.subr.mxu0 0.0
    %1998 = vmatpush2.msra.mxu0 0.0
    %1999 = vmatprep.subr.mxu0 0.0
    %2000 = vmatpush2.msra.mxu0 0.0
    %2001 = vmatprep.mubr.f32.mxu0 0.0
    %2002 = vmatmul.mubr.f32.gmra.mxu0 %v1932
    %v2003 = vpop.f32.mrf.mxu0
    %v2004 = vadd.f32 0.0, %v2003
    %v2005 = vpop.f32.mrf.mxu0
    %2006 = vmatprep.mubr.f32.mxu0 0.0
    %2007 = vmatmul.mubr.f32.gmra.mxu0 %v1935
    %v2008 = vpop.f32.mrf.mxu0
    %v2009 = vadd.f32 0.0, %v2008
    %v2010 = vpop.f32.mrf.mxu0
    %2011 = vdwg.mxu0
    %v2012 = vadd.f32 %v1914, %v2004
    %v2013 = vadd.f32 %v1919, %v2009
    %s2014 = scalar_lea.vmem [#allocation2], 768
    %v2015 = vld [vmem:[%s2014] sm:$0xff]
    %v2016 = vld [vmem:[%s2014 + $0x8] sm:$0xff]
    %v2017 = vld [vmem:[%s2014 + $0x10] sm:$0xff]
    %v2018 = vld [vmem:[%s2014 + $0x18] sm:$0xff]
    %v2019 = vld [vmem:[%s2014 + $0x20] sm:$0xff]
    %v2020 = vld [vmem:[%s2014 + $0x28] sm:$0xff]
    %v2021 = vld [vmem:[%s2014 + $0x30] sm:$0xff]
    %v2022 = vld [vmem:[%s2014 + $0x38] sm:$0xff]
    %v2024 = vsel %vm708, %v1619, 0
    %v2027 = vsel %vm708, %v1624, 0
    %2029 = vmatprep.subr.mxu0 0.0
    %2030 = vmatpush1.msra.mxu0 0.0
    %2031 = vmatprep.subr.mxu0 0.0
    %2032 = vmatpush1.msra.mxu0 0.0
    %2033 = vmatprep.subr.mxu0 0.0
    %2034 = vmatpush1.msra.mxu0 0.0
    %2035 = vmatprep.subr.mxu0 0.0
    %2036 = vmatpush1.msra.mxu0 0.0
    %2037 = vmatprep.subr.mxu0 0.0
    %2038 = vmatpush1.msra.mxu0 0.0
    %2039 = vmatprep.subr.mxu0 0.0
    %2040 = vmatpush1.msra.mxu0 0.0
    %2041 = vmatprep.subr.mxu0 0.0
    %2042 = vmatpush1.msra.mxu0 0.0
    %2043 = vmatprep.subr.mxu0 0.0
    %2044 = vmatpush1.msra.mxu0 0.0
    %2045 = vmatprep.subr.mxu0 0.0
    %2046 = vmatpush1.msra.mxu0 %v2022
    %2047 = vmatprep.subr.mxu0 0.0
    %2048 = vmatpush1.msra.mxu0 %v2021
    %2049 = vmatprep.subr.mxu0 0.0
    %2050 = vmatpush1.msra.mxu0 %v2020
    %2051 = vmatprep.subr.mxu0 0.0
    %2052 = vmatpush1.msra.mxu0 %v2019
    %2053 = vmatprep.subr.mxu0 0.0
    %2054 = vmatpush1.msra.mxu0 %v2018
    %2055 = vmatprep.subr.mxu0 0.0
    %2056 = vmatpush1.msra.mxu0 %v2017
    %2057 = vmatprep.subr.mxu0 0.0
    %2058 = vmatpush1.msra.mxu0 %v2016
    %2059 = vmatprep.subr.mxu0 0.0
    %2060 = vmatpush1.msra.mxu0 %v2015
    %2061 = vmatprep.subr.mxu0 0.0
    %2062 = vmatpush2.msra.mxu0 0.0
    %2063 = vmatprep.subr.mxu0 0.0
    %2064 = vmatpush2.msra.mxu0 0.0
    %2065 = vmatprep.subr.mxu0 0.0
    %2066 = vmatpush2.msra.mxu0 0.0
    %2067 = vmatprep.subr.mxu0 0.0
    %2068 = vmatpush2.msra.mxu0 0.0
    %2069 = vmatprep.subr.mxu0 0.0
    %2070 = vmatpush2.msra.mxu0 0.0
    %2071 = vmatprep.subr.mxu0 0.0
    %2072 = vmatpush2.msra.mxu0 0.0
    %2073 = vmatprep.subr.mxu0 0.0
    %2074 = vmatpush2.msra.mxu0 0.0
    %2075 = vmatprep.subr.mxu0 0.0
    %2076 = vmatpush2.msra.mxu0 0.0
    %2077 = vmatprep.subr.mxu0 0.0
    %2078 = vmatpush2.msra.mxu0 0.0
    %2079 = vmatprep.subr.mxu0 0.0
    %2080 = vmatpush2.msra.mxu0 0.0
    %2081 = vmatprep.subr.mxu0 0.0
    %2082 = vmatpush2.msra.mxu0 0.0
    %2083 = vmatprep.subr.mxu0 0.0
    %2084 = vmatpush2.msra.mxu0 0.0
    %2085 = vmatprep.subr.mxu0 0.0
    %2086 = vmatpush2.msra.mxu0 0.0
    %2087 = vmatprep.subr.mxu0 0.0
    %2088 = vmatpush2.msra.mxu0 0.0
    %2089 = vmatprep.subr.mxu0 0.0
    %2090 = vmatpush2.msra.mxu0 0.0
    %2091 = vmatprep.subr.mxu0 0.0
    %2092 = vmatpush2.msra.mxu0 0.0
    %2093 = vmatprep.mubr.f32.mxu0 0.0
    %2094 = vmatmul.mubr.f32.gmra.mxu0 %v2024
    %v2095 = vpop.f32.mrf.mxu0
    %v2096 = vadd.f32 0.0, %v2095
    %v2097 = vpop.f32.mrf.mxu0
    %2098 = vmatprep.mubr.f32.mxu0 0.0
    %2099 = vmatmul.mubr.f32.gmra.mxu0 %v2027
    %v2100 = vpop.f32.mrf.mxu0
    %v2101 = vadd.f32 0.0, %v2100
    %v2102 = vpop.f32.mrf.mxu0
    %2103 = vdwg.mxu0
    %v2104 = vadd.f32 %v2012, %v2096
    %v2105 = vadd.f32 %v2013, %v2101
    %s2106 = scalar_lea.vmem [#allocation2], 832
    %v2107 = vld [vmem:[%s2106] sm:$0xff]
    %v2108 = vld [vmem:[%s2106 + $0x8] sm:$0xff]
    %v2109 = vld [vmem:[%s2106 + $0x10] sm:$0xff]
    %v2110 = vld [vmem:[%s2106 + $0x18] sm:$0xff]
    %v2111 = vld [vmem:[%s2106 + $0x20] sm:$0xff]
    %v2112 = vld [vmem:[%s2106 + $0x28] sm:$0xff]
    %v2113 = vld [vmem:[%s2106 + $0x30] sm:$0xff]
    %v2114 = vld [vmem:[%s2106 + $0x38] sm:$0xff]
    %v2116 = vsel %vm708, %v1629, 0
    %v2119 = vsel %vm708, %v1634, 0
    %2121 = vmatprep.subr.mxu0 0.0
    %2122 = vmatpush1.msra.mxu0 0.0
    %2123 = vmatprep.subr.mxu0 0.0
    %2124 = vmatpush1.msra.mxu0 0.0
    %2125 = vmatprep.subr.mxu0 0.0
    %2126 = vmatpush1.msra.mxu0 0.0
    %2127 = vmatprep.subr.mxu0 0.0
    %2128 = vmatpush1.msra.mxu0 0.0
    %2129 = vmatprep.subr.mxu0 0.0
    %2130 = vmatpush1.msra.mxu0 0.0
    %2131 = vmatprep.subr.mxu0 0.0
    %2132 = vmatpush1.msra.mxu0 0.0
    %2133 = vmatprep.subr.mxu0 0.0
    %2134 = vmatpush1.msra.mxu0 0.0
    %2135 = vmatprep.subr.mxu0 0.0
    %2136 = vmatpush1.msra.mxu0 0.0
    %2137 = vmatprep.subr.mxu0 0.0
    %2138 = vmatpush1.msra.mxu0 %v2114
    %2139 = vmatprep.subr.mxu0 0.0
    %2140 = vmatpush1.msra.mxu0 %v2113
    %2141 = vmatprep.subr.mxu0 0.0
    %2142 = vmatpush1.msra.mxu0 %v2112
    %2143 = vmatprep.subr.mxu0 0.0
    %2144 = vmatpush1.msra.mxu0 %v2111
    %2145 = vmatprep.subr.mxu0 0.0
    %2146 = vmatpush1.msra.mxu0 %v2110
    %2147 = vmatprep.subr.mxu0 0.0
    %2148 = vmatpush1.msra.mxu0 %v2109
    %2149 = vmatprep.subr.mxu0 0.0
    %2150 = vmatpush1.msra.mxu0 %v2108
    %2151 = vmatprep.subr.mxu0 0.0
    %2152 = vmatpush1.msra.mxu0 %v2107
    %2153 = vmatprep.subr.mxu0 0.0
    %2154 = vmatpush2.msra.mxu0 0.0
    %2155 = vmatprep.subr.mxu0 0.0
    %2156 = vmatpush2.msra.mxu0 0.0
    %2157 = vmatprep.subr.mxu0 0.0
    %2158 = vmatpush2.msra.mxu0 0.0
    %2159 = vmatprep.subr.mxu0 0.0
    %2160 = vmatpush2.msra.mxu0 0.0
    %2161 = vmatprep.subr.mxu0 0.0
    %2162 = vmatpush2.msra.mxu0 0.0
    %2163 = vmatprep.subr.mxu0 0.0
    %2164 = vmatpush2.msra.mxu0 0.0
    %2165 = vmatprep.subr.mxu0 0.0
    %2166 = vmatpush2.msra.mxu0 0.0
    %2167 = vmatprep.subr.mxu0 0.0
    %2168 = vmatpush2.msra.mxu0 0.0
    %2169 = vmatprep.subr.mxu0 0.0
    %2170 = vmatpush2.msra.mxu0 0.0
    %2171 = vmatprep.subr.mxu0 0.0
    %2172 = vmatpush2.msra.mxu0 0.0
    %2173 = vmatprep.subr.mxu0 0.0
    %2174 = vmatpush2.msra.mxu0 0.0
    %2175 = vmatprep.subr.mxu0 0.0
    %2176 = vmatpush2.msra.mxu0 0.0
    %2177 = vmatprep.subr.mxu0 0.0
    %2178 = vmatpush2.msra.mxu0 0.0
    %2179 = vmatprep.subr.mxu0 0.0
    %2180 = vmatpush2.msra.mxu0 0.0
    %2181 = vmatprep.subr.mxu0 0.0
    %2182 = vmatpush2.msra.mxu0 0.0
    %2183 = vmatprep.subr.mxu0 0.0
    %2184 = vmatpush2.msra.mxu0 0.0
    %2185 = vmatprep.mubr.f32.mxu0 0.0
    %2186 = vmatmul.mubr.f32.gmra.mxu0 %v2116
    %v2187 = vpop.f32.mrf.mxu0
    %v2188 = vadd.f32 0.0, %v2187
    %v2189 = vpop.f32.mrf.mxu0
    %2190 = vmatprep.mubr.f32.mxu0 0.0
    %2191 = vmatmul.mubr.f32.gmra.mxu0 %v2119
    %v2192 = vpop.f32.mrf.mxu0
    %v2193 = vadd.f32 0.0, %v2192
    %v2194 = vpop.f32.mrf.mxu0
    %2195 = vdwg.mxu0
    %v2196 = vadd.f32 %v2104, %v2188
    %v2197 = vadd.f32 %v2105, %v2193
    %s2198 = scalar_lea.vmem [#allocation2], 896
    %v2199 = vld [vmem:[%s2198] sm:$0xff]
    %v2200 = vld [vmem:[%s2198 + $0x8] sm:$0xff]
    %v2201 = vld [vmem:[%s2198 + $0x10] sm:$0xff]
    %v2202 = vld [vmem:[%s2198 + $0x18] sm:$0xff]
    %v2203 = vld [vmem:[%s2198 + $0x20] sm:$0xff]
    %v2204 = vld [vmem:[%s2198 + $0x28] sm:$0xff]
    %v2205 = vld [vmem:[%s2198 + $0x30] sm:$0xff]
    %v2206 = vld [vmem:[%s2198 + $0x38] sm:$0xff]
    %v2208 = vsel %vm708, %v1639, 0
    %v2211 = vsel %vm708, %v1644, 0
    %2213 = vmatprep.subr.mxu0 0.0
    %2214 = vmatpush1.msra.mxu0 0.0
    %2215 = vmatprep.subr.mxu0 0.0
    %2216 = vmatpush1.msra.mxu0 0.0
    %2217 = vmatprep.subr.mxu0 0.0
    %2218 = vmatpush1.msra.mxu0 0.0
    %2219 = vmatprep.subr.mxu0 0.0
    %2220 = vmatpush1.msra.mxu0 0.0
    %2221 = vmatprep.subr.mxu0 0.0
    %2222 = vmatpush1.msra.mxu0 0.0
    %2223 = vmatprep.subr.mxu0 0.0
    %2224 = vmatpush1.msra.mxu0 0.0
    %2225 = vmatprep.subr.mxu0 0.0
    %2226 = vmatpush1.msra.mxu0 0.0
    %2227 = vmatprep.subr.mxu0 0.0
    %2228 = vmatpush1.msra.mxu0 0.0
    %2229 = vmatprep.subr.mxu0 0.0
    %2230 = vmatpush1.msra.mxu0 %v2206
    %2231 = vmatprep.subr.mxu0 0.0
    %2232 = vmatpush1.msra.mxu0 %v2205
    %2233 = vmatprep.subr.mxu0 0.0
    %2234 = vmatpush1.msra.mxu0 %v2204
    %2235 = vmatprep.subr.mxu0 0.0
    %2236 = vmatpush1.msra.mxu0 %v2203
    %2237 = vmatprep.subr.mxu0 0.0
    %2238 = vmatpush1.msra.mxu0 %v2202
    %2239 = vmatprep.subr.mxu0 0.0
    %2240 = vmatpush1.msra.mxu0 %v2201
    %2241 = vmatprep.subr.mxu0 0.0
    %2242 = vmatpush1.msra.mxu0 %v2200
    %2243 = vmatprep.subr.mxu0 0.0
    %2244 = vmatpush1.msra.mxu0 %v2199
    %2245 = vmatprep.subr.mxu0 0.0
    %2246 = vmatpush2.msra.mxu0 0.0
    %2247 = vmatprep.subr.mxu0 0.0
    %2248 = vmatpush2.msra.mxu0 0.0
    %2249 = vmatprep.subr.mxu0 0.0
    %2250 = vmatpush2.msra.mxu0 0.0
    %2251 = vmatprep.subr.mxu0 0.0
    %2252 = vmatpush2.msra.mxu0 0.0
    %2253 = vmatprep.subr.mxu0 0.0
    %2254 = vmatpush2.msra.mxu0 0.0
    %2255 = vmatprep.subr.mxu0 0.0
    %2256 = vmatpush2.msra.mxu0 0.0
    %2257 = vmatprep.subr.mxu0 0.0
    %2258 = vmatpush2.msra.mxu0 0.0
    %2259 = vmatprep.subr.mxu0 0.0
    %2260 = vmatpush2.msra.mxu0 0.0
    %2261 = vmatprep.subr.mxu0 0.0
    %2262 = vmatpush2.msra.mxu0 0.0
    %2263 = vmatprep.subr.mxu0 0.0
    %2264 = vmatpush2.msra.mxu0 0.0
    %2265 = vmatprep.subr.mxu0 0.0
    %2266 = vmatpush2.msra.mxu0 0.0
    %2267 = vmatprep.subr.mxu0 0.0
    %2268 = vmatpush2.msra.mxu0 0.0
    %2269 = vmatprep.subr.mxu0 0.0
    %2270 = vmatpush2.msra.mxu0 0.0
    %2271 = vmatprep.subr.mxu0 0.0
    %2272 = vmatpush2.msra.mxu0 0.0
    %2273 = vmatprep.subr.mxu0 0.0
    %2274 = vmatpush2.msra.mxu0 0.0
    %2275 = vmatprep.subr.mxu0 0.0
    %2276 = vmatpush2.msra.mxu0 0.0
    %2277 = vmatprep.mubr.f32.mxu0 0.0
    %2278 = vmatmul.mubr.f32.gmra.mxu0 %v2208
    %v2279 = vpop.f32.mrf.mxu0
    %v2280 = vadd.f32 0.0, %v2279
    %v2281 = vpop.f32.mrf.mxu0
    %2282 = vmatprep.mubr.f32.mxu0 0.0
    %2283 = vmatmul.mubr.f32.gmra.mxu0 %v2211
    %v2284 = vpop.f32.mrf.mxu0
    %v2285 = vadd.f32 0.0, %v2284
    %v2286 = vpop.f32.mrf.mxu0
    %2287 = vdwg.mxu0
    %v2288 = vadd.f32 %v2196, %v2280
    %v2289 = vadd.f32 %v2197, %v2285
    %s2290 = scalar_lea.vmem [#allocation2], 960
    %v2291 = vld [vmem:[%s2290] sm:$0xff]
    %v2292 = vld [vmem:[%s2290 + $0x8] sm:$0xff]
    %v2293 = vld [vmem:[%s2290 + $0x10] sm:$0xff]
    %v2294 = vld [vmem:[%s2290 + $0x18] sm:$0xff]
    %v2295 = vld [vmem:[%s2290 + $0x20] sm:$0xff]
    %v2296 = vld [vmem:[%s2290 + $0x28] sm:$0xff]
    %v2297 = vld [vmem:[%s2290 + $0x30] sm:$0xff]
    %v2298 = vld [vmem:[%s2290 + $0x38] sm:$0xff]
    %v2300 = vsel %vm708, %v1714, 0
    %v2303 = vsel %vm708, %v1719, 0
    %2305 = vmatprep.subr.mxu0 0.0
    %2306 = vmatpush1.msra.mxu0 0.0
    %2307 = vmatprep.subr.mxu0 0.0
    %2308 = vmatpush1.msra.mxu0 0.0
    %2309 = vmatprep.subr.mxu0 0.0
    %2310 = vmatpush1.msra.mxu0 0.0
    %2311 = vmatprep.subr.mxu0 0.0
    %2312 = vmatpush1.msra.mxu0 0.0
    %2313 = vmatprep.subr.mxu0 0.0
    %2314 = vmatpush1.msra.mxu0 0.0
    %2315 = vmatprep.subr.mxu0 0.0
    %2316 = vmatpush1.msra.mxu0 0.0
    %2317 = vmatprep.subr.mxu0 0.0
    %2318 = vmatpush1.msra.mxu0 0.0
    %2319 = vmatprep.subr.mxu0 0.0
    %2320 = vmatpush1.msra.mxu0 0.0
    %2321 = vmatprep.subr.mxu0 0.0
    %2322 = vmatpush1.msra.mxu0 %v2298
    %2323 = vmatprep.subr.mxu0 0.0
    %2324 = vmatpush1.msra.mxu0 %v2297
    %2325 = vmatprep.subr.mxu0 0.0
    %2326 = vmatpush1.msra.mxu0 %v2296
    %2327 = vmatprep.subr.mxu0 0.0
    %2328 = vmatpush1.msra.mxu0 %v2295
    %2329 = vmatprep.subr.mxu0 0.0
    %2330 = vmatpush1.msra.mxu0 %v2294
    %2331 = vmatprep.subr.mxu0 0.0
    %2332 = vmatpush1.msra.mxu0 %v2293
    %2333 = vmatprep.subr.mxu0 0.0
    %2334 = vmatpush1.msra.mxu0 %v2292
    %2335 = vmatprep.subr.mxu0 0.0
    %2336 = vmatpush1.msra.mxu0 %v2291
    %2337 = vmatprep.subr.mxu0 0.0
    %2338 = vmatpush2.msra.mxu0 0.0
    %2339 = vmatprep.subr.mxu0 0.0
    %2340 = vmatpush2.msra.mxu0 0.0
    %2341 = vmatprep.subr.mxu0 0.0
    %2342 = vmatpush2.msra.mxu0 0.0
    %2343 = vmatprep.subr.mxu0 0.0
    %2344 = vmatpush2.msra.mxu0 0.0
    %2345 = vmatprep.subr.mxu0 0.0
    %2346 = vmatpush2.msra.mxu0 0.0
    %2347 = vmatprep.subr.mxu0 0.0
    %2348 = vmatpush2.msra.mxu0 0.0
    %2349 = vmatprep.subr.mxu0 0.0
    %2350 = vmatpush2.msra.mxu0 0.0
    %2351 = vmatprep.subr.mxu0 0.0
    %2352 = vmatpush2.msra.mxu0 0.0
    %2353 = vmatprep.subr.mxu0 0.0
    %2354 = vmatpush2.msra.mxu0 0.0
    %2355 = vmatprep.subr.mxu0 0.0
    %2356 = vmatpush2.msra.mxu0 0.0
    %2357 = vmatprep.subr.mxu0 0.0
    %2358 = vmatpush2.msra.mxu0 0.0
    %2359 = vmatprep.subr.mxu0 0.0
    %2360 = vmatpush2.msra.mxu0 0.0
    %2361 = vmatprep.subr.mxu0 0.0
    %2362 = vmatpush2.msra.mxu0 0.0
    %2363 = vmatprep.subr.mxu0 0.0
    %2364 = vmatpush2.msra.mxu0 0.0
    %2365 = vmatprep.subr.mxu0 0.0
    %2366 = vmatpush2.msra.mxu0 0.0
    %2367 = vmatprep.subr.mxu0 0.0
    %2368 = vmatpush2.msra.mxu0 0.0
    %2369 = vmatprep.mubr.f32.mxu0 0.0
    %2370 = vmatmul.mubr.f32.gmra.mxu0 %v2300
    %v2371 = vpop.f32.mrf.mxu0
    %v2372 = vadd.f32 0.0, %v2371
    %v2373 = vpop.f32.mrf.mxu0
    %2374 = vmatprep.mubr.f32.mxu0 0.0
    %2375 = vmatmul.mubr.f32.gmra.mxu0 %v2303
    %v2376 = vpop.f32.mrf.mxu0
    %v2377 = vadd.f32 0.0, %v2376
    %v2378 = vpop.f32.mrf.mxu0
    %2379 = vdwg.mxu0
    %v2380 = vadd.f32 %v2288, %v2372
    %v2381 = vadd.f32 %v2289, %v2377
    %s2382 = scalar_lea.vmem [#allocation2], 1024
    %v2383 = vld [vmem:[%s2382] sm:$0xff]
    %v2384 = vld [vmem:[%s2382 + $0x8] sm:$0xff]
    %v2385 = vld [vmem:[%s2382 + $0x10] sm:$0xff]
    %v2386 = vld [vmem:[%s2382 + $0x18] sm:$0xff]
    %v2387 = vld [vmem:[%s2382 + $0x20] sm:$0xff]
    %v2388 = vld [vmem:[%s2382 + $0x28] sm:$0xff]
    %v2389 = vld [vmem:[%s2382 + $0x30] sm:$0xff]
    %v2390 = vld [vmem:[%s2382 + $0x38] sm:$0xff]
    %v2392 = vsel %vm708, %v1724, 0
    %v2395 = vsel %vm708, %v1729, 0
    %2397 = vmatprep.subr.mxu0 0.0
    %2398 = vmatpush1.msra.mxu0 0.0
    %2399 = vmatprep.subr.mxu0 0.0
    %2400 = vmatpush1.msra.mxu0 0.0
    %2401 = vmatprep.subr.mxu0 0.0
    %2402 = vmatpush1.msra.mxu0 0.0
    %2403 = vmatprep.subr.mxu0 0.0
    %2404 = vmatpush1.msra.mxu0 0.0
    %2405 = vmatprep.subr.mxu0 0.0
    %2406 = vmatpush1.msra.mxu0 0.0
    %2407 = vmatprep.subr.mxu0 0.0
    %2408 = vmatpush1.msra.mxu0 0.0
    %2409 = vmatprep.subr.mxu0 0.0
    %2410 = vmatpush1.msra.mxu0 0.0
    %2411 = vmatprep.subr.mxu0 0.0
    %2412 = vmatpush1.msra.mxu0 0.0
    %2413 = vmatprep.subr.mxu0 0.0
    %2414 = vmatpush1.msra.mxu0 %v2390
    %2415 = vmatprep.subr.mxu0 0.0
    %2416 = vmatpush1.msra.mxu0 %v2389
    %2417 = vmatprep.subr.mxu0 0.0
    %2418 = vmatpush1.msra.mxu0 %v2388
    %2419 = vmatprep.subr.mxu0 0.0
    %2420 = vmatpush1.msra.mxu0 %v2387
    %2421 = vmatprep.subr.mxu0 0.0
    %2422 = vmatpush1.msra.mxu0 %v2386
    %2423 = vmatprep.subr.mxu0 0.0
    %2424 = vmatpush1.msra.mxu0 %v2385
    %2425 = vmatprep.subr.mxu0 0.0
    %2426 = vmatpush1.msra.mxu0 %v2384
    %2427 = vmatprep.subr.mxu0 0.0
    %2428 = vmatpush1.msra.mxu0 %v2383
    %2429 = vmatprep.subr.mxu0 0.0
    %2430 = vmatpush2.msra.mxu0 0.0
    %2431 = vmatprep.subr.mxu0 0.0
    %2432 = vmatpush2.msra.mxu0 0.0
    %2433 = vmatprep.subr.mxu0 0.0
    %2434 = vmatpush2.msra.mxu0 0.0
    %2435 = vmatprep.subr.mxu0 0.0
    %2436 = vmatpush2.msra.mxu0 0.0
    %2437 = vmatprep.subr.mxu0 0.0
    %2438 = vmatpush2.msra.mxu0 0.0
    %2439 = vmatprep.subr.mxu0 0.0
    %2440 = vmatpush2.msra.mxu0 0.0
    %2441 = vmatprep.subr.mxu0 0.0
    %2442 = vmatpush2.msra.mxu0 0.0
    %2443 = vmatprep.subr.mxu0 0.0
    %2444 = vmatpush2.msra.mxu0 0.0
    %2445 = vmatprep.subr.mxu0 0.0
    %2446 = vmatpush2.msra.mxu0 0.0
    %2447 = vmatprep.subr.mxu0 0.0
    %2448 = vmatpush2.msra.mxu0 0.0
    %2449 = vmatprep.subr.mxu0 0.0
    %2450 = vmatpush2.msra.mxu0 0.0
    %2451 = vmatprep.subr.mxu0 0.0
    %2452 = vmatpush2.msra.mxu0 0.0
    %2453 = vmatprep.subr.mxu0 0.0
    %2454 = vmatpush2.msra.mxu0 0.0
    %2455 = vmatprep.subr.mxu0 0.0
    %2456 = vmatpush2.msra.mxu0 0.0
    %2457 = vmatprep.subr.mxu0 0.0
    %2458 = vmatpush2.msra.mxu0 0.0
    %2459 = vmatprep.subr.mxu0 0.0
    %2460 = vmatpush2.msra.mxu0 0.0
    %2461 = vmatprep.mubr.f32.mxu0 0.0
    %2462 = vmatmul.mubr.f32.gmra.mxu0 %v2392
    %v2463 = vpop.f32.mrf.mxu0
    %v2464 = vadd.f32 0.0, %v2463
    %v2465 = vpop.f32.mrf.mxu0
    %2466 = vmatprep.mubr.f32.mxu0 0.0
    %2467 = vmatmul.mubr.f32.gmra.mxu0 %v2395
    %v2468 = vpop.f32.mrf.mxu0
    %v2469 = vadd.f32 0.0, %v2468
    %v2470 = vpop.f32.mrf.mxu0
    %2471 = vdwg.mxu0
    %v2472 = vadd.f32 %v2380, %v2464
    %v2473 = vadd.f32 %v2381, %v2469
    %s2474 = scalar_lea.vmem [#allocation2], 1088
    %v2475 = vld [vmem:[%s2474] sm:$0xff]
    %v2476 = vld [vmem:[%s2474 + $0x8] sm:$0xff]
    %v2477 = vld [vmem:[%s2474 + $0x10] sm:$0xff]
    %v2478 = vld [vmem:[%s2474 + $0x18] sm:$0xff]
    %v2479 = vld [vmem:[%s2474 + $0x20] sm:$0xff]
    %v2480 = vld [vmem:[%s2474 + $0x28] sm:$0xff]
    %v2481 = vld [vmem:[%s2474 + $0x30] sm:$0xff]
    %v2482 = vld [vmem:[%s2474 + $0x38] sm:$0xff]
    %v2484 = vsel %vm708, %v1734, 0
    %v2487 = vsel %vm708, %v1739, 0
    %2489 = vmatprep.subr.mxu0 0.0
    %2490 = vmatpush1.msra.mxu0 0.0
    %2491 = vmatprep.subr.mxu0 0.0
    %2492 = vmatpush1.msra.mxu0 0.0
    %2493 = vmatprep.subr.mxu0 0.0
    %2494 = vmatpush1.msra.mxu0 0.0
    %2495 = vmatprep.subr.mxu0 0.0
    %2496 = vmatpush1.msra.mxu0 0.0
    %2497 = vmatprep.subr.mxu0 0.0
    %2498 = vmatpush1.msra.mxu0 0.0
    %2499 = vmatprep.subr.mxu0 0.0
    %2500 = vmatpush1.msra.mxu0 0.0
    %2501 = vmatprep.subr.mxu0 0.0
    %2502 = vmatpush1.msra.mxu0 0.0
    %2503 = vmatprep.subr.mxu0 0.0
    %2504 = vmatpush1.msra.mxu0 0.0
    %2505 = vmatprep.subr.mxu0 0.0
    %2506 = vmatpush1.msra.mxu0 %v2482
    %2507 = vmatprep.subr.mxu0 0.0
    %2508 = vmatpush1.msra.mxu0 %v2481
    %2509 = vmatprep.subr.mxu0 0.0
    %2510 = vmatpush1.msra.mxu0 %v2480
    %2511 = vmatprep.subr.mxu0 0.0
    %2512 = vmatpush1.msra.mxu0 %v2479
    %2513 = vmatprep.subr.mxu0 0.0
    %2514 = vmatpush1.msra.mxu0 %v2478
    %2515 = vmatprep.subr.mxu0 0.0
    %2516 = vmatpush1.msra.mxu0 %v2477
    %2517 = vmatprep.subr.mxu0 0.0
    %2518 = vmatpush1.msra.mxu0 %v2476
    %2519 = vmatprep.subr.mxu0 0.0
    %2520 = vmatpush1.msra.mxu0 %v2475
    %2521 = vmatprep.subr.mxu0 0.0
    %2522 = vmatpush2.msra.mxu0 0.0
    %2523 = vmatprep.subr.mxu0 0.0
    %2524 = vmatpush2.msra.mxu0 0.0
    %2525 = vmatprep.subr.mxu0 0.0
    %2526 = vmatpush2.msra.mxu0 0.0
    %2527 = vmatprep.subr.mxu0 0.0
    %2528 = vmatpush2.msra.mxu0 0.0
    %2529 = vmatprep.subr.mxu0 0.0
    %2530 = vmatpush2.msra.mxu0 0.0
    %2531 = vmatprep.subr.mxu0 0.0
    %2532 = vmatpush2.msra.mxu0 0.0
    %2533 = vmatprep.subr.mxu0 0.0
    %2534 = vmatpush2.msra.mxu0 0.0
    %2535 = vmatprep.subr.mxu0 0.0
    %2536 = vmatpush2.msra.mxu0 0.0
    %2537 = vmatprep.subr.mxu0 0.0
    %2538 = vmatpush2.msra.mxu0 0.0
    %2539 = vmatprep.subr.mxu0 0.0
    %2540 = vmatpush2.msra.mxu0 0.0
    %2541 = vmatprep.subr.mxu0 0.0
    %2542 = vmatpush2.msra.mxu0 0.0
    %2543 = vmatprep.subr.mxu0 0.0
    %2544 = vmatpush2.msra.mxu0 0.0
    %2545 = vmatprep.subr.mxu0 0.0
    %2546 = vmatpush2.msra.mxu0 0.0
    %2547 = vmatprep.subr.mxu0 0.0
    %2548 = vmatpush2.msra.mxu0 0.0
    %2549 = vmatprep.subr.mxu0 0.0
    %2550 = vmatpush2.msra.mxu0 0.0
    %2551 = vmatprep.subr.mxu0 0.0
    %2552 = vmatpush2.msra.mxu0 0.0
    %2553 = vmatprep.mubr.f32.mxu0 0.0
    %2554 = vmatmul.mubr.f32.gmra.mxu0 %v2484
    %v2555 = vpop.f32.mrf.mxu0
    %v2556 = vadd.f32 0.0, %v2555
    %v2557 = vpop.f32.mrf.mxu0
    %2558 = vmatprep.mubr.f32.mxu0 0.0
    %2559 = vmatmul.mubr.f32.gmra.mxu0 %v2487
    %v2560 = vpop.f32.mrf.mxu0
    %v2561 = vadd.f32 0.0, %v2560
    %v2562 = vpop.f32.mrf.mxu0
    %2563 = vdwg.mxu0
    %v2564 = vadd.f32 %v2472, %v2556
    %v2565 = vadd.f32 %v2473, %v2561
    %v2566 = vld [vmem:[%s3 + $0xa] sm:$0x1]
    %v2567 = vlaneseq
    %v2568 = vshrl.u32 %v2567, 7
    %v2569 = vsub.s32 0, %v2568
    %v2570 = vrot.slane %v2566, %v2569
    %v2571 = vadd.f32 %v2564, %v2570
    %v2572 = vadd.f32 %v2565, %v2570
    %2573 = vmatprep.subr.mxu0 0.0
    %2574 = vmatpush1.msra.mxu0 0.0
    %2575 = vmatprep.subr.mxu0 0.0
    %2576 = vmatpush1.msra.mxu0 0.0
    %2577 = vmatprep.subr.mxu0 0.0
    %2578 = vmatpush1.msra.mxu0 0.0
    %2579 = vmatprep.subr.mxu0 0.0
    %2580 = vmatpush1.msra.mxu0 0.0
    %2581 = vmatprep.subr.mxu0 0.0
    %2582 = vmatpush1.msra.mxu0 0.0
    %2583 = vmatprep.subr.mxu0 0.0
    %2584 = vmatpush1.msra.mxu0 0.0
    %2585 = vmatprep.subr.mxu0 0.0
    %2586 = vmatpush1.msra.mxu0 0.0
    %2587 = vmatprep.subr.mxu0 0.0
    %2588 = vmatpush1.msra.mxu0 0.0
    %2589 = vmatprep.subr.mxu0 0.0
    %2590 = vmatpush1.msra.mxu0 0.0
    %2591 = vmatprep.subr.mxu0 0.0
    %2592 = vmatpush1.msra.mxu0 0.0
    %2593 = vmatprep.subr.mxu0 0.0
    %2594 = vmatpush1.msra.mxu0 0.0
    %2595 = vmatprep.subr.mxu0 0.0
    %2596 = vmatpush1.msra.mxu0 0.0
    %2597 = vmatprep.subr.mxu0 0.0
    %2598 = vmatpush1.msra.mxu0 0.0
    %2599 = vmatprep.subr.mxu0 0.0
    %2600 = vmatpush1.msra.mxu0 0.0
    %2601 = vmatprep.subr.mxu0 0.0
    %2602 = vmatpush1.msra.mxu0 %v2572
    %2603 = vmatprep.subr.mxu0 0.0
    %2604 = vmatpush1.msra.mxu0 %v2571
    %2605 = vmatprep.subr.mxu0 0.0
    %2606 = vmatpush2.msra.mxu0 0.0
    %2607 = vmatprep.subr.mxu0 0.0
    %2608 = vmatpush2.msra.mxu0 0.0
    %2609 = vmatprep.subr.mxu0 0.0
    %2610 = vmatpush2.msra.mxu0 0.0
    %2611 = vmatprep.subr.mxu0 0.0
    %2612 = vmatpush2.msra.mxu0 0.0
    %2613 = vmatprep.subr.mxu0 0.0
    %2614 = vmatpush2.msra.mxu0 0.0
    %2615 = vmatprep.subr.mxu0 0.0
    %2616 = vmatpush2.msra.mxu0 0.0
    %2617 = vmatprep.subr.mxu0 0.0
    %2618 = vmatpush2.msra.mxu0 0.0
    %2619 = vmatprep.subr.mxu0 0.0
    %2620 = vmatpush2.msra.mxu0 0.0
    %2621 = vmatprep.subr.mxu0 0.0
    %2622 = vmatpush2.msra.mxu0 0.0
    %2623 = vmatprep.subr.mxu0 0.0
    %2624 = vmatpush2.msra.mxu0 0.0
    %2625 = vmatprep.subr.mxu0 0.0
    %2626 = vmatpush2.msra.mxu0 0.0
    %2627 = vmatprep.subr.mxu0 0.0
    %2628 = vmatpush2.msra.mxu0 0.0
    %2629 = vmatprep.subr.mxu0 0.0
    %2630 = vmatpush2.msra.mxu0 0.0
    %2631 = vmatprep.subr.mxu0 0.0
    %2632 = vmatpush2.msra.mxu0 0.0
    %2633 = vmatprep.subr.mxu0 0.0
    %2634 = vmatpush2.msra.mxu0 0.0
    %2635 = vmatprep.subr.mxu0 0.0
    %2636 = vmatpush2.msra.mxu0 0.0
    %2637 = vmatprep.mubr.f32.mxu0 0.0
    %2638 = vmatmul.mubr.f32.gmra.mxu0 %v430
    %v2639 = vpop.f32.mrf.mxu0
    %v2640 = vadd.f32 0.0, %v2639
    %v2641 = vpop.f32.mrf.mxu0
    %2642 = vmatprep.mubr.f32.mxu0 0.0
    %2643 = vmatmul.mubr.f32.gmra.mxu0 %v433
    %v2644 = vpop.f32.mrf.mxu0
    %v2645 = vadd.f32 0.0, %v2644
    %v2646 = vpop.f32.mrf.mxu0
    %2647 = vmatprep.mubr.f32.mxu0 0.0
    %2648 = vmatmul.mubr.f32.gmra.mxu0 %v436
    %v2649 = vpop.f32.mrf.mxu0
    %v2650 = vadd.f32 0.0, %v2649
    %v2651 = vpop.f32.mrf.mxu0
    %2652 = vmatprep.mubr.f32.mxu0 0.0
    %2653 = vmatmul.mubr.f32.gmra.mxu0 %v439
    %v2654 = vpop.f32.mrf.mxu0
    %v2655 = vadd.f32 0.0, %v2654
    %v2656 = vpop.f32.mrf.mxu0
    %2657 = vmatprep.mubr.f32.mxu0 0.0
    %2658 = vmatmul.mubr.f32.gmra.mxu0 %v442
    %v2659 = vpop.f32.mrf.mxu0
    %v2660 = vadd.f32 0.0, %v2659
    %v2661 = vpop.f32.mrf.mxu0
    %2662 = vmatprep.mubr.f32.mxu0 0.0
    %2663 = vmatmul.mubr.f32.gmra.mxu0 %v445
    %v2664 = vpop.f32.mrf.mxu0
    %v2665 = vadd.f32 0.0, %v2664
    %v2666 = vpop.f32.mrf.mxu0
    %2667 = vmatprep.mubr.f32.mxu0 0.0
    %2668 = vmatmul.mubr.f32.gmra.mxu0 %v448
    %v2669 = vpop.f32.mrf.mxu0
    %v2670 = vadd.f32 0.0, %v2669
    %v2671 = vpop.f32.mrf.mxu0
    %2672 = vmatprep.mubr.f32.mxu0 0.0
    %2673 = vmatmul.mubr.f32.gmra.mxu0 %v451
    %v2674 = vpop.f32.mrf.mxu0
    %v2675 = vadd.f32 0.0, %v2674
    %v2676 = vpop.f32.mrf.mxu0
    %2677 = vmatprep.mubr.f32.mxu0 0.0
    %2678 = vmatmul.mubr.f32.gmra.mxu0 %v454
    %v2679 = vpop.f32.mrf.mxu0
    %v2680 = vadd.f32 0.0, %v2679
    %v2681 = vpop.f32.mrf.mxu0
    %2682 = vmatprep.mubr.f32.mxu0 0.0
    %2683 = vmatmul.mubr.f32.gmra.mxu0 %v457
    %v2684 = vpop.f32.mrf.mxu0
    %v2685 = vadd.f32 0.0, %v2684
    %v2686 = vpop.f32.mrf.mxu0
    %2687 = vmatprep.mubr.f32.mxu0 0.0
    %2688 = vmatmul.mubr.f32.gmra.mxu0 %v460
    %v2689 = vpop.f32.mrf.mxu0
    %v2690 = vadd.f32 0.0, %v2689
    %v2691 = vpop.f32.mrf.mxu0
    %2692 = vmatprep.mubr.f32.mxu0 0.0
    %2693 = vmatmul.mubr.f32.gmra.mxu0 %v463
    %v2694 = vpop.f32.mrf.mxu0
    %v2695 = vadd.f32 0.0, %v2694
    %v2696 = vpop.f32.mrf.mxu0
    %2697 = vdwg.mxu0
    %2698 = vmatprep.subr.mxu0 0.0
    %2699 = vmatpush1.msra.mxu0 0.0
    %2700 = vmatprep.subr.mxu0 0.0
    %2701 = vmatpush1.msra.mxu0 0.0
    %2702 = vmatprep.subr.mxu0 0.0
    %2703 = vmatpush1.msra.mxu0 0.0
    %2704 = vmatprep.subr.mxu0 0.0
    %2705 = vmatpush1.msra.mxu0 0.0
    %2706 = vmatprep.subr.mxu0 0.0
    %2707 = vmatpush1.msra.mxu0 0.0
    %2708 = vmatprep.subr.mxu0 0.0
    %2709 = vmatpush1.msra.mxu0 0.0
    %2710 = vmatprep.subr.mxu0 0.0
    %2711 = vmatpush1.msra.mxu0 0.0
    %2712 = vmatprep.subr.mxu0 0.0
    %2713 = vmatpush1.msra.mxu0 0.0
    %2714 = vmatprep.subr.mxu0 0.0
    %2715 = vmatpush1.msra.mxu0 0.0
    %2716 = vmatprep.subr.mxu0 0.0
    %2717 = vmatpush1.msra.mxu0 0.0
    %2718 = vmatprep.subr.mxu0 0.0
    %2719 = vmatpush1.msra.mxu0 0.0
    %2720 = vmatprep.subr.mxu0 0.0
    %2721 = vmatpush1.msra.mxu0 0.0
    %2722 = vmatprep.subr.mxu0 0.0
    %2723 = vmatpush1.msra.mxu0 0.0
    %2724 = vmatprep.subr.mxu0 0.0
    %2725 = vmatpush1.msra.mxu0 0.0
    %2726 = vmatprep.subr.mxu0 0.0
    %2727 = vmatpush1.msra.mxu0 %v2572
    %2728 = vmatprep.subr.mxu0 0.0
    %2729 = vmatpush1.msra.mxu0 %v2571
    %2730 = vmatprep.subr.mxu0 0.0
    %2731 = vmatpush2.msra.mxu0 0.0
    %2732 = vmatprep.subr.mxu0 0.0
    %2733 = vmatpush2.msra.mxu0 0.0
    %2734 = vmatprep.subr.mxu0 0.0
    %2735 = vmatpush2.msra.mxu0 0.0
    %2736 = vmatprep.subr.mxu0 0.0
    %2737 = vmatpush2.msra.mxu0 0.0
    %2738 = vmatprep.subr.mxu0 0.0
    %2739 = vmatpush2.msra.mxu0 0.0
    %2740 = vmatprep.subr.mxu0 0.0
    %2741 = vmatpush2.msra.mxu0 0.0
    %2742 = vmatprep.subr.mxu0 0.0
    %2743 = vmatpush2.msra.mxu0 0.0
    %2744 = vmatprep.subr.mxu0 0.0
    %2745 = vmatpush2.msra.mxu0 0.0
    %2746 = vmatprep.subr.mxu0 0.0
    %2747 = vmatpush2.msra.mxu0 0.0
    %2748 = vmatprep.subr.mxu0 0.0
    %2749 = vmatpush2.msra.mxu0 0.0
    %2750 = vmatprep.subr.mxu0 0.0
    %2751 = vmatpush2.msra.mxu0 0.0
    %2752 = vmatprep.subr.mxu0 0.0
    %2753 = vmatpush2.msra.mxu0 0.0
    %2754 = vmatprep.subr.mxu0 0.0
    %2755 = vmatpush2.msra.mxu0 0.0
    %2756 = vmatprep.subr.mxu0 0.0
    %2757 = vmatpush2.msra.mxu0 0.0
    %2758 = vmatprep.subr.mxu0 0.0
    %2759 = vmatpush2.msra.mxu0 0.0
    %2760 = vmatprep.subr.mxu0 0.0
    %2761 = vmatpush2.msra.mxu0 0.0
    %2762 = vmatprep.mubr.f32.mxu0 0.0
    %2763 = vmatmul.mubr.f32.gmra.mxu0 %v176
    %v2764 = vpop.f32.mrf.mxu0
    %v2765 = vadd.f32 0.0, %v2764
    %v2766 = vpop.f32.mrf.mxu0
    %2767 = vmatprep.mubr.f32.mxu0 0.0
    %2768 = vmatmul.mubr.f32.gmra.mxu0 %v179
    %v2769 = vpop.f32.mrf.mxu0
    %v2770 = vadd.f32 0.0, %v2769
    %v2771 = vpop.f32.mrf.mxu0
    %2772 = vmatprep.mubr.f32.mxu0 0.0
    %2773 = vmatmul.mubr.f32.gmra.mxu0 %v257
    %v2774 = vpop.f32.mrf.mxu0
    %v2775 = vadd.f32 0.0, %v2774
    %v2776 = vpop.f32.mrf.mxu0
    %2777 = vmatprep.mubr.f32.mxu0 0.0
    %2778 = vmatmul.mubr.f32.gmra.mxu0 %v260
    %v2779 = vpop.f32.mrf.mxu0
    %v2780 = vadd.f32 0.0, %v2779
    %v2781 = vpop.f32.mrf.mxu0
    %2782 = vmatprep.mubr.f32.mxu0 0.0
    %2783 = vmatmul.mubr.f32.gmra.mxu0 %v591
    %v2784 = vpop.f32.mrf.mxu0
    %v2785 = vadd.f32 0.0, %v2784
    %v2786 = vpop.f32.mrf.mxu0
    %2787 = vmatprep.mubr.f32.mxu0 0.0
    %2788 = vmatmul.mubr.f32.gmra.mxu0 %v594
    %v2789 = vpop.f32.mrf.mxu0
    %v2790 = vadd.f32 0.0, %v2789
    %v2791 = vpop.f32.mrf.mxu0
    %2792 = vdwg.mxu0
    %s2793 = scalar_lea.vmem [#allocation2], 1152
    %v2794 = vld [vmem:[%s2793] sm:$0xff]
    %v2795 = vld [vmem:[%s2793 + $0x8] sm:$0xff]
    %v2796 = vld [vmem:[%s2793 + $0x10] sm:$0xff]
    %v2797 = vld [vmem:[%s2793 + $0x18] sm:$0xff]
    %v2798 = vld [vmem:[%s2793 + $0x20] sm:$0xff]
    %v2799 = vld [vmem:[%s2793 + $0x28] sm:$0xff]
    %v2800 = vld [vmem:[%s2793 + $0x30] sm:$0xff]
    %v2801 = vld [vmem:[%s2793 + $0x38] sm:$0xff]
    %s2802 = scalar_lea.vmem [#allocation2], 1216
    %v2803 = vld [vmem:[%s2802] sm:$0xff]
    %v2804 = vld [vmem:[%s2802 + $0x8] sm:$0xff]
    %v2805 = vld [vmem:[%s2802 + $0x10] sm:$0xff]
    %v2806 = vld [vmem:[%s2802 + $0x18] sm:$0xff]
    %v2807 = vld [vmem:[%s2802 + $0x20] sm:$0xff]
    %v2808 = vld [vmem:[%s2802 + $0x28] sm:$0xff]
    %v2809 = vld [vmem:[%s2802 + $0x30] sm:$0xff]
    %v2810 = vld [vmem:[%s2802 + $0x38] sm:$0xff]
    %v2812 = vsel %vm708, %v2650, 0
    %v2815 = vsel %vm708, %v2655, 0
    %2817 = vmatprep.subr.mxu0 0.0
    %2818 = vmatpush1.msra.mxu0 0.0
    %2819 = vmatprep.subr.mxu0 0.0
    %2820 = vmatpush1.msra.mxu0 0.0
    %2821 = vmatprep.subr.mxu0 0.0
    %2822 = vmatpush1.msra.mxu0 0.0
    %2823 = vmatprep.subr.mxu0 0.0
    %2824 = vmatpush1.msra.mxu0 0.0
    %2825 = vmatprep.subr.mxu0 0.0
    %2826 = vmatpush1.msra.mxu0 0.0
    %2827 = vmatprep.subr.mxu0 0.0
    %2828 = vmatpush1.msra.mxu0 0.0
    %2829 = vmatprep.subr.mxu0 0.0
    %2830 = vmatpush1.msra.mxu0 0.0
    %2831 = vmatprep.subr.mxu0 0.0
    %2832 = vmatpush1.msra.mxu0 0.0
    %2833 = vmatprep.subr.mxu0 0.0
    %2834 = vmatpush1.msra.mxu0 %v2810
    %2835 = vmatprep.subr.mxu0 0.0
    %2836 = vmatpush1.msra.mxu0 %v2809
    %2837 = vmatprep.subr.mxu0 0.0
    %2838 = vmatpush1.msra.mxu0 %v2808
    %2839 = vmatprep.subr.mxu0 0.0
    %2840 = vmatpush1.msra.mxu0 %v2807
    %2841 = vmatprep.subr.mxu0 0.0
    %2842 = vmatpush1.msra.mxu0 %v2806
    %2843 = vmatprep.subr.mxu0 0.0
    %2844 = vmatpush1.msra.mxu0 %v2805
    %2845 = vmatprep.subr.mxu0 0.0
    %2846 = vmatpush1.msra.mxu0 %v2804
    %2847 = vmatprep.subr.mxu0 0.0
    %2848 = vmatpush1.msra.mxu0 %v2803
    %2849 = vmatprep.subr.mxu0 0.0
    %2850 = vmatpush2.msra.mxu0 0.0
    %2851 = vmatprep.subr.mxu0 0.0
    %2852 = vmatpush2.msra.mxu0 0.0
    %2853 = vmatprep.subr.mxu0 0.0
    %2854 = vmatpush2.msra.mxu0 0.0
    %2855 = vmatprep.subr.mxu0 0.0
    %2856 = vmatpush2.msra.mxu0 0.0
    %2857 = vmatprep.subr.mxu0 0.0
    %2858 = vmatpush2.msra.mxu0 0.0
    %2859 = vmatprep.subr.mxu0 0.0
    %2860 = vmatpush2.msra.mxu0 0.0
    %2861 = vmatprep.subr.mxu0 0.0
    %2862 = vmatpush2.msra.mxu0 0.0
    %2863 = vmatprep.subr.mxu0 0.0
    %2864 = vmatpush2.msra.mxu0 0.0
    %2865 = vmatprep.subr.mxu0 0.0
    %2866 = vmatpush2.msra.mxu0 0.0
    %2867 = vmatprep.subr.mxu0 0.0
    %2868 = vmatpush2.msra.mxu0 0.0
    %2869 = vmatprep.subr.mxu0 0.0
    %2870 = vmatpush2.msra.mxu0 0.0
    %2871 = vmatprep.subr.mxu0 0.0
    %2872 = vmatpush2.msra.mxu0 0.0
    %2873 = vmatprep.subr.mxu0 0.0
    %2874 = vmatpush2.msra.mxu0 0.0
    %2875 = vmatprep.subr.mxu0 0.0
    %2876 = vmatpush2.msra.mxu0 0.0
    %2877 = vmatprep.subr.mxu0 0.0
    %2878 = vmatpush2.msra.mxu0 0.0
    %2879 = vmatprep.subr.mxu0 0.0
    %2880 = vmatpush2.msra.mxu0 0.0
    %2881 = vmatprep.mubr.f32.mxu0 0.0
    %2882 = vmatmul.mubr.f32.gmra.mxu0 %v2812
    %v2883 = vpop.f32.mrf.mxu0
    %v2884 = vadd.f32 0.0, %v2883
    %v2885 = vpop.f32.mrf.mxu0
    %2886 = vmatprep.mubr.f32.mxu0 0.0
    %2887 = vmatmul.mubr.f32.gmra.mxu0 %v2815
    %v2888 = vpop.f32.mrf.mxu0
    %v2889 = vadd.f32 0.0, %v2888
    %v2890 = vpop.f32.mrf.mxu0
    %2891 = vdwg.mxu0
    %v2893 = vsel %vm708, %v2640, 0
    %v2896 = vsel %vm708, %v2645, 0
    %2898 = vmatprep.subr.mxu0 0.0
    %2899 = vmatpush1.msra.mxu0 0.0
    %2900 = vmatprep.subr.mxu0 0.0
    %2901 = vmatpush1.msra.mxu0 0.0
    %2902 = vmatprep.subr.mxu0 0.0
    %2903 = vmatpush1.msra.mxu0 0.0
    %2904 = vmatprep.subr.mxu0 0.0
    %2905 = vmatpush1.msra.mxu0 0.0
    %2906 = vmatprep.subr.mxu0 0.0
    %2907 = vmatpush1.msra.mxu0 0.0
    %2908 = vmatprep.subr.mxu0 0.0
    %2909 = vmatpush1.msra.mxu0 0.0
    %2910 = vmatprep.subr.mxu0 0.0
    %2911 = vmatpush1.msra.mxu0 0.0
    %2912 = vmatprep.subr.mxu0 0.0
    %2913 = vmatpush1.msra.mxu0 0.0
    %2914 = vmatprep.subr.mxu0 0.0
    %2915 = vmatpush1.msra.mxu0 %v2801
    %2916 = vmatprep.subr.mxu0 0.0
    %2917 = vmatpush1.msra.mxu0 %v2800
    %2918 = vmatprep.subr.mxu0 0.0
    %2919 = vmatpush1.msra.mxu0 %v2799
    %2920 = vmatprep.subr.mxu0 0.0
    %2921 = vmatpush1.msra.mxu0 %v2798
    %2922 = vmatprep.subr.mxu0 0.0
    %2923 = vmatpush1.msra.mxu0 %v2797
    %2924 = vmatprep.subr.mxu0 0.0
    %2925 = vmatpush1.msra.mxu0 %v2796
    %2926 = vmatprep.subr.mxu0 0.0
    %2927 = vmatpush1.msra.mxu0 %v2795
    %2928 = vmatprep.subr.mxu0 0.0
    %2929 = vmatpush1.msra.mxu0 %v2794
    %2930 = vmatprep.subr.mxu0 0.0
    %2931 = vmatpush2.msra.mxu0 0.0
    %2932 = vmatprep.subr.mxu0 0.0
    %2933 = vmatpush2.msra.mxu0 0.0
    %2934 = vmatprep.subr.mxu0 0.0
    %2935 = vmatpush2.msra.mxu0 0.0
    %2936 = vmatprep.subr.mxu0 0.0
    %2937 = vmatpush2.msra.mxu0 0.0
    %2938 = vmatprep.subr.mxu0 0.0
    %2939 = vmatpush2.msra.mxu0 0.0
    %2940 = vmatprep.subr.mxu0 0.0
    %2941 = vmatpush2.msra.mxu0 0.0
    %2942 = vmatprep.subr.mxu0 0.0
    %2943 = vmatpush2.msra.mxu0 0.0
    %2944 = vmatprep.subr.mxu0 0.0
    %2945 = vmatpush2.msra.mxu0 0.0
    %2946 = vmatprep.subr.mxu0 0.0
    %2947 = vmatpush2.msra.mxu0 0.0
    %2948 = vmatprep.subr.mxu0 0.0
    %2949 = vmatpush2.msra.mxu0 0.0
    %2950 = vmatprep.subr.mxu0 0.0
    %2951 = vmatpush2.msra.mxu0 0.0
    %2952 = vmatprep.subr.mxu0 0.0
    %2953 = vmatpush2.msra.mxu0 0.0
    %2954 = vmatprep.subr.mxu0 0.0
    %2955 = vmatpush2.msra.mxu0 0.0
    %2956 = vmatprep.subr.mxu0 0.0
    %2957 = vmatpush2.msra.mxu0 0.0
    %2958 = vmatprep.subr.mxu0 0.0
    %2959 = vmatpush2.msra.mxu0 0.0
    %2960 = vmatprep.subr.mxu0 0.0
    %2961 = vmatpush2.msra.mxu0 0.0
    %2962 = vmatprep.mubr.f32.mxu0 0.0
    %2963 = vmatmul.mubr.f32.gmra.mxu0 %v2893
    %v2964 = vpop.f32.mrf.mxu0
    %v2965 = vadd.f32 %v2884, %v2964
    %v2966 = vpop.f32.mrf.mxu0
    %2967 = vmatprep.mubr.f32.mxu0 0.0
    %2968 = vmatmul.mubr.f32.gmra.mxu0 %v2896
    %v2969 = vpop.f32.mrf.mxu0
    %v2970 = vadd.f32 %v2889, %v2969
    %v2971 = vpop.f32.mrf.mxu0
    %2972 = vdwg.mxu0
    %s2973 = scalar_lea.vmem [#allocation2], 1280
    %v2974 = vld [vmem:[%s2973] sm:$0xff]
    %v2975 = vld [vmem:[%s2973 + $0x8] sm:$0xff]
    %v2976 = vld [vmem:[%s2973 + $0x10] sm:$0xff]
    %v2977 = vld [vmem:[%s2973 + $0x18] sm:$0xff]
    %v2978 = vld [vmem:[%s2973 + $0x20] sm:$0xff]
    %v2979 = vld [vmem:[%s2973 + $0x28] sm:$0xff]
    %v2980 = vld [vmem:[%s2973 + $0x30] sm:$0xff]
    %v2981 = vld [vmem:[%s2973 + $0x38] sm:$0xff]
    %v2983 = vsel %vm708, %v2660, 0
    %v2986 = vsel %vm708, %v2665, 0
    %2988 = vmatprep.subr.mxu0 0.0
    %2989 = vmatpush1.msra.mxu0 0.0
    %2990 = vmatprep.subr.mxu0 0.0
    %2991 = vmatpush1.msra.mxu0 0.0
    %2992 = vmatprep.subr.mxu0 0.0
    %2993 = vmatpush1.msra.mxu0 0.0
    %2994 = vmatprep.subr.mxu0 0.0
    %2995 = vmatpush1.msra.mxu0 0.0
    %2996 = vmatprep.subr.mxu0 0.0
    %2997 = vmatpush1.msra.mxu0 0.0
    %2998 = vmatprep.subr.mxu0 0.0
    %2999 = vmatpush1.msra.mxu0 0.0
    %3000 = vmatprep.subr.mxu0 0.0
    %3001 = vmatpush1.msra.mxu0 0.0
    %3002 = vmatprep.subr.mxu0 0.0
    %3003 = vmatpush1.msra.mxu0 0.0
    %3004 = vmatprep.subr.mxu0 0.0
    %3005 = vmatpush1.msra.mxu0 %v2981
    %3006 = vmatprep.subr.mxu0 0.0
    %3007 = vmatpush1.msra.mxu0 %v2980
    %3008 = vmatprep.subr.mxu0 0.0
    %3009 = vmatpush1.msra.mxu0 %v2979
    %3010 = vmatprep.subr.mxu0 0.0
    %3011 = vmatpush1.msra.mxu0 %v2978
    %3012 = vmatprep.subr.mxu0 0.0
    %3013 = vmatpush1.msra.mxu0 %v2977
    %3014 = vmatprep.subr.mxu0 0.0
    %3015 = vmatpush1.msra.mxu0 %v2976
    %3016 = vmatprep.subr.mxu0 0.0
    %3017 = vmatpush1.msra.mxu0 %v2975
    %3018 = vmatprep.subr.mxu0 0.0
    %3019 = vmatpush1.msra.mxu0 %v2974
    %3020 = vmatprep.subr.mxu0 0.0
    %3021 = vmatpush2.msra.mxu0 0.0
    %3022 = vmatprep.subr.mxu0 0.0
    %3023 = vmatpush2.msra.mxu0 0.0
    %3024 = vmatprep.subr.mxu0 0.0
    %3025 = vmatpush2.msra.mxu0 0.0
    %3026 = vmatprep.subr.mxu0 0.0
    %3027 = vmatpush2.msra.mxu0 0.0
    %3028 = vmatprep.subr.mxu0 0.0
    %3029 = vmatpush2.msra.mxu0 0.0
    %3030 = vmatprep.subr.mxu0 0.0
    %3031 = vmatpush2.msra.mxu0 0.0
    %3032 = vmatprep.subr.mxu0 0.0
    %3033 = vmatpush2.msra.mxu0 0.0
    %3034 = vmatprep.subr.mxu0 0.0
    %3035 = vmatpush2.msra.mxu0 0.0
    %3036 = vmatprep.subr.mxu0 0.0
    %3037 = vmatpush2.msra.mxu0 0.0
    %3038 = vmatprep.subr.mxu0 0.0
    %3039 = vmatpush2.msra.mxu0 0.0
    %3040 = vmatprep.subr.mxu0 0.0
    %3041 = vmatpush2.msra.mxu0 0.0
    %3042 = vmatprep.subr.mxu0 0.0
    %3043 = vmatpush2.msra.mxu0 0.0
    %3044 = vmatprep.subr.mxu0 0.0
    %3045 = vmatpush2.msra.mxu0 0.0
    %3046 = vmatprep.subr.mxu0 0.0
    %3047 = vmatpush2.msra.mxu0 0.0
    %3048 = vmatprep.subr.mxu0 0.0
    %3049 = vmatpush2.msra.mxu0 0.0
    %3050 = vmatprep.subr.mxu0 0.0
    %3051 = vmatpush2.msra.mxu0 0.0
    %3052 = vmatprep.mubr.f32.mxu0 0.0
    %3053 = vmatmul.mubr.f32.gmra.mxu0 %v2983
    %v3054 = vpop.f32.mrf.mxu0
    %v3055 = vadd.f32 0.0, %v3054
    %v3056 = vpop.f32.mrf.mxu0
    %3057 = vmatprep.mubr.f32.mxu0 0.0
    %3058 = vmatmul.mubr.f32.gmra.mxu0 %v2986
    %v3059 = vpop.f32.mrf.mxu0
    %v3060 = vadd.f32 0.0, %v3059
    %v3061 = vpop.f32.mrf.mxu0
    %3062 = vdwg.mxu0
    %v3063 = vadd.f32 %v2965, %v3055
    %v3064 = vadd.f32 %v2970, %v3060
    %s3065 = scalar_lea.vmem [#allocation2], 1344
    %v3066 = vld [vmem:[%s3065] sm:$0xff]
    %v3067 = vld [vmem:[%s3065 + $0x8] sm:$0xff]
    %v3068 = vld [vmem:[%s3065 + $0x10] sm:$0xff]
    %v3069 = vld [vmem:[%s3065 + $0x18] sm:$0xff]
    %v3070 = vld [vmem:[%s3065 + $0x20] sm:$0xff]
    %v3071 = vld [vmem:[%s3065 + $0x28] sm:$0xff]
    %v3072 = vld [vmem:[%s3065 + $0x30] sm:$0xff]
    %v3073 = vld [vmem:[%s3065 + $0x38] sm:$0xff]
    %v3075 = vsel %vm708, %v2670, 0
    %v3078 = vsel %vm708, %v2675, 0
    %3080 = vmatprep.subr.mxu0 0.0
    %3081 = vmatpush1.msra.mxu0 0.0
    %3082 = vmatprep.subr.mxu0 0.0
    %3083 = vmatpush1.msra.mxu0 0.0
    %3084 = vmatprep.subr.mxu0 0.0
    %3085 = vmatpush1.msra.mxu0 0.0
    %3086 = vmatprep.subr.mxu0 0.0
    %3087 = vmatpush1.msra.mxu0 0.0
    %3088 = vmatprep.subr.mxu0 0.0
    %3089 = vmatpush1.msra.mxu0 0.0
    %3090 = vmatprep.subr.mxu0 0.0
    %3091 = vmatpush1.msra.mxu0 0.0
    %3092 = vmatprep.subr.mxu0 0.0
    %3093 = vmatpush1.msra.mxu0 0.0
    %3094 = vmatprep.subr.mxu0 0.0
    %3095 = vmatpush1.msra.mxu0 0.0
    %3096 = vmatprep.subr.mxu0 0.0
    %3097 = vmatpush1.msra.mxu0 %v3073
    %3098 = vmatprep.subr.mxu0 0.0
    %3099 = vmatpush1.msra.mxu0 %v3072
    %3100 = vmatprep.subr.mxu0 0.0
    %3101 = vmatpush1.msra.mxu0 %v3071
    %3102 = vmatprep.subr.mxu0 0.0
    %3103 = vmatpush1.msra.mxu0 %v3070
    %3104 = vmatprep.subr.mxu0 0.0
    %3105 = vmatpush1.msra.mxu0 %v3069
    %3106 = vmatprep.subr.mxu0 0.0
    %3107 = vmatpush1.msra.mxu0 %v3068
    %3108 = vmatprep.subr.mxu0 0.0
    %3109 = vmatpush1.msra.mxu0 %v3067
    %3110 = vmatprep.subr.mxu0 0.0
    %3111 = vmatpush1.msra.mxu0 %v3066
    %3112 = vmatprep.subr.mxu0 0.0
    %3113 = vmatpush2.msra.mxu0 0.0
    %3114 = vmatprep.subr.mxu0 0.0
    %3115 = vmatpush2.msra.mxu0 0.0
    %3116 = vmatprep.subr.mxu0 0.0
    %3117 = vmatpush2.msra.mxu0 0.0
    %3118 = vmatprep.subr.mxu0 0.0
    %3119 = vmatpush2.msra.mxu0 0.0
    %3120 = vmatprep.subr.mxu0 0.0
    %3121 = vmatpush2.msra.mxu0 0.0
    %3122 = vmatprep.subr.mxu0 0.0
    %3123 = vmatpush2.msra.mxu0 0.0
    %3124 = vmatprep.subr.mxu0 0.0
    %3125 = vmatpush2.msra.mxu0 0.0
    %3126 = vmatprep.subr.mxu0 0.0
    %3127 = vmatpush2.msra.mxu0 0.0
    %3128 = vmatprep.subr.mxu0 0.0
    %3129 = vmatpush2.msra.mxu0 0.0
    %3130 = vmatprep.subr.mxu0 0.0
    %3131 = vmatpush2.msra.mxu0 0.0
    %3132 = vmatprep.subr.mxu0 0.0
    %3133 = vmatpush2.msra.mxu0 0.0
    %3134 = vmatprep.subr.mxu0 0.0
    %3135 = vmatpush2.msra.mxu0 0.0
    %3136 = vmatprep.subr.mxu0 0.0
    %3137 = vmatpush2.msra.mxu0 0.0
    %3138 = vmatprep.subr.mxu0 0.0
    %3139 = vmatpush2.msra.mxu0 0.0
    %3140 = vmatprep.subr.mxu0 0.0
    %3141 = vmatpush2.msra.mxu0 0.0
    %3142 = vmatprep.subr.mxu0 0.0
    %3143 = vmatpush2.msra.mxu0 0.0
    %3144 = vmatprep.mubr.f32.mxu0 0.0
    %3145 = vmatmul.mubr.f32.gmra.mxu0 %v3075
    %v3146 = vpop.f32.mrf.mxu0
    %v3147 = vadd.f32 0.0, %v3146
    %v3148 = vpop.f32.mrf.mxu0
    %3149 = vmatprep.mubr.f32.mxu0 0.0
    %3150 = vmatmul.mubr.f32.gmra.mxu0 %v3078
    %v3151 = vpop.f32.mrf.mxu0
    %v3152 = vadd.f32 0.0, %v3151
    %v3153 = vpop.f32.mrf.mxu0
    %3154 = vdwg.mxu0
    %v3155 = vadd.f32 %v3063, %v3147
    %v3156 = vadd.f32 %v3064, %v3152
    %s3157 = scalar_lea.vmem [#allocation2], 1408
    %v3158 = vld [vmem:[%s3157] sm:$0xff]
    %v3159 = vld [vmem:[%s3157 + $0x8] sm:$0xff]
    %v3160 = vld [vmem:[%s3157 + $0x10] sm:$0xff]
    %v3161 = vld [vmem:[%s3157 + $0x18] sm:$0xff]
    %v3162 = vld [vmem:[%s3157 + $0x20] sm:$0xff]
    %v3163 = vld [vmem:[%s3157 + $0x28] sm:$0xff]
    %v3164 = vld [vmem:[%s3157 + $0x30] sm:$0xff]
    %v3165 = vld [vmem:[%s3157 + $0x38] sm:$0xff]
    %v3167 = vsel %vm708, %v2680, 0
    %v3170 = vsel %vm708, %v2685, 0
    %3172 = vmatprep.subr.mxu0 0.0
    %3173 = vmatpush1.msra.mxu0 0.0
    %3174 = vmatprep.subr.mxu0 0.0
    %3175 = vmatpush1.msra.mxu0 0.0
    %3176 = vmatprep.subr.mxu0 0.0
    %3177 = vmatpush1.msra.mxu0 0.0
    %3178 = vmatprep.subr.mxu0 0.0
    %3179 = vmatpush1.msra.mxu0 0.0
    %3180 = vmatprep.subr.mxu0 0.0
    %3181 = vmatpush1.msra.mxu0 0.0
    %3182 = vmatprep.subr.mxu0 0.0
    %3183 = vmatpush1.msra.mxu0 0.0
    %3184 = vmatprep.subr.mxu0 0.0
    %3185 = vmatpush1.msra.mxu0 0.0
    %3186 = vmatprep.subr.mxu0 0.0
    %3187 = vmatpush1.msra.mxu0 0.0
    %3188 = vmatprep.subr.mxu0 0.0
    %3189 = vmatpush1.msra.mxu0 %v3165
    %3190 = vmatprep.subr.mxu0 0.0
    %3191 = vmatpush1.msra.mxu0 %v3164
    %3192 = vmatprep.subr.mxu0 0.0
    %3193 = vmatpush1.msra.mxu0 %v3163
    %3194 = vmatprep.subr.mxu0 0.0
    %3195 = vmatpush1.msra.mxu0 %v3162
    %3196 = vmatprep.subr.mxu0 0.0
    %3197 = vmatpush1.msra.mxu0 %v3161
    %3198 = vmatprep.subr.mxu0 0.0
    %3199 = vmatpush1.msra.mxu0 %v3160
    %3200 = vmatprep.subr.mxu0 0.0
    %3201 = vmatpush1.msra.mxu0 %v3159
    %3202 = vmatprep.subr.mxu0 0.0
    %3203 = vmatpush1.msra.mxu0 %v3158
    %3204 = vmatprep.subr.mxu0 0.0
    %3205 = vmatpush2.msra.mxu0 0.0
    %3206 = vmatprep.subr.mxu0 0.0
    %3207 = vmatpush2.msra.mxu0 0.0
    %3208 = vmatprep.subr.mxu0 0.0
    %3209 = vmatpush2.msra.mxu0 0.0
    %3210 = vmatprep.subr.mxu0 0.0
    %3211 = vmatpush2.msra.mxu0 0.0
    %3212 = vmatprep.subr.mxu0 0.0
    %3213 = vmatpush2.msra.mxu0 0.0
    %3214 = vmatprep.subr.mxu0 0.0
    %3215 = vmatpush2.msra.mxu0 0.0
    %3216 = vmatprep.subr.mxu0 0.0
    %3217 = vmatpush2.msra.mxu0 0.0
    %3218 = vmatprep.subr.mxu0 0.0
    %3219 = vmatpush2.msra.mxu0 0.0
    %3220 = vmatprep.subr.mxu0 0.0
    %3221 = vmatpush2.msra.mxu0 0.0
    %3222 = vmatprep.subr.mxu0 0.0
    %3223 = vmatpush2.msra.mxu0 0.0
    %3224 = vmatprep.subr.mxu0 0.0
    %3225 = vmatpush2.msra.mxu0 0.0
    %3226 = vmatprep.subr.mxu0 0.0
    %3227 = vmatpush2.msra.mxu0 0.0
    %3228 = vmatprep.subr.mxu0 0.0
    %3229 = vmatpush2.msra.mxu0 0.0
    %3230 = vmatprep.subr.mxu0 0.0
    %3231 = vmatpush2.msra.mxu0 0.0
    %3232 = vmatprep.subr.mxu0 0.0
    %3233 = vmatpush2.msra.mxu0 0.0
    %3234 = vmatprep.subr.mxu0 0.0
    %3235 = vmatpush2.msra.mxu0 0.0
    %3236 = vmatprep.mubr.f32.mxu0 0.0
    %3237 = vmatmul.mubr.f32.gmra.mxu0 %v3167
    %v3238 = vpop.f32.mrf.mxu0
    %v3239 = vadd.f32 0.0, %v3238
    %v3240 = vpop.f32.mrf.mxu0
    %3241 = vmatprep.mubr.f32.mxu0 0.0
    %3242 = vmatmul.mubr.f32.gmra.mxu0 %v3170
    %v3243 = vpop.f32.mrf.mxu0
    %v3244 = vadd.f32 0.0, %v3243
    %v3245 = vpop.f32.mrf.mxu0
    %3246 = vdwg.mxu0
    %v3247 = vadd.f32 %v3155, %v3239
    %v3248 = vadd.f32 %v3156, %v3244
    %s3249 = scalar_lea.vmem [#allocation2], 1472
    %v3250 = vld [vmem:[%s3249] sm:$0xff]
    %v3251 = vld [vmem:[%s3249 + $0x8] sm:$0xff]
    %v3252 = vld [vmem:[%s3249 + $0x10] sm:$0xff]
    %v3253 = vld [vmem:[%s3249 + $0x18] sm:$0xff]
    %v3254 = vld [vmem:[%s3249 + $0x20] sm:$0xff]
    %v3255 = vld [vmem:[%s3249 + $0x28] sm:$0xff]
    %v3256 = vld [vmem:[%s3249 + $0x30] sm:$0xff]
    %v3257 = vld [vmem:[%s3249 + $0x38] sm:$0xff]
    %v3259 = vsel %vm708, %v2690, 0
    %v3262 = vsel %vm708, %v2695, 0
    %3264 = vmatprep.subr.mxu0 0.0
    %3265 = vmatpush1.msra.mxu0 0.0
    %3266 = vmatprep.subr.mxu0 0.0
    %3267 = vmatpush1.msra.mxu0 0.0
    %3268 = vmatprep.subr.mxu0 0.0
    %3269 = vmatpush1.msra.mxu0 0.0
    %3270 = vmatprep.subr.mxu0 0.0
    %3271 = vmatpush1.msra.mxu0 0.0
    %3272 = vmatprep.subr.mxu0 0.0
    %3273 = vmatpush1.msra.mxu0 0.0
    %3274 = vmatprep.subr.mxu0 0.0
    %3275 = vmatpush1.msra.mxu0 0.0
    %3276 = vmatprep.subr.mxu0 0.0
    %3277 = vmatpush1.msra.mxu0 0.0
    %3278 = vmatprep.subr.mxu0 0.0
    %3279 = vmatpush1.msra.mxu0 0.0
    %3280 = vmatprep.subr.mxu0 0.0
    %3281 = vmatpush1.msra.mxu0 %v3257
    %3282 = vmatprep.subr.mxu0 0.0
    %3283 = vmatpush1.msra.mxu0 %v3256
    %3284 = vmatprep.subr.mxu0 0.0
    %3285 = vmatpush1.msra.mxu0 %v3255
    %3286 = vmatprep.subr.mxu0 0.0
    %3287 = vmatpush1.msra.mxu0 %v3254
    %3288 = vmatprep.subr.mxu0 0.0
    %3289 = vmatpush1.msra.mxu0 %v3253
    %3290 = vmatprep.subr.mxu0 0.0
    %3291 = vmatpush1.msra.mxu0 %v3252
    %3292 = vmatprep.subr.mxu0 0.0
    %3293 = vmatpush1.msra.mxu0 %v3251
    %3294 = vmatprep.subr.mxu0 0.0
    %3295 = vmatpush1.msra.mxu0 %v3250
    %3296 = vmatprep.subr.mxu0 0.0
    %3297 = vmatpush2.msra.mxu0 0.0
    %3298 = vmatprep.subr.mxu0 0.0
    %3299 = vmatpush2.msra.mxu0 0.0
    %3300 = vmatprep.subr.mxu0 0.0
    %3301 = vmatpush2.msra.mxu0 0.0
    %3302 = vmatprep.subr.mxu0 0.0
    %3303 = vmatpush2.msra.mxu0 0.0
    %3304 = vmatprep.subr.mxu0 0.0
    %3305 = vmatpush2.msra.mxu0 0.0
    %3306 = vmatprep.subr.mxu0 0.0
    %3307 = vmatpush2.msra.mxu0 0.0
    %3308 = vmatprep.subr.mxu0 0.0
    %3309 = vmatpush2.msra.mxu0 0.0
    %3310 = vmatprep.subr.mxu0 0.0
    %3311 = vmatpush2.msra.mxu0 0.0
    %3312 = vmatprep.subr.mxu0 0.0
    %3313 = vmatpush2.msra.mxu0 0.0
    %3314 = vmatprep.subr.mxu0 0.0
    %3315 = vmatpush2.msra.mxu0 0.0
    %3316 = vmatprep.subr.mxu0 0.0
    %3317 = vmatpush2.msra.mxu0 0.0
    %3318 = vmatprep.subr.mxu0 0.0
    %3319 = vmatpush2.msra.mxu0 0.0
    %3320 = vmatprep.subr.mxu0 0.0
    %3321 = vmatpush2.msra.mxu0 0.0
    %3322 = vmatprep.subr.mxu0 0.0
    %3323 = vmatpush2.msra.mxu0 0.0
    %3324 = vmatprep.subr.mxu0 0.0
    %3325 = vmatpush2.msra.mxu0 0.0
    %3326 = vmatprep.subr.mxu0 0.0
    %3327 = vmatpush2.msra.mxu0 0.0
    %3328 = vmatprep.mubr.f32.mxu0 0.0
    %3329 = vmatmul.mubr.f32.gmra.mxu0 %v3259
    %v3330 = vpop.f32.mrf.mxu0
    %v3331 = vadd.f32 0.0, %v3330
    %v3332 = vpop.f32.mrf.mxu0
    %3333 = vmatprep.mubr.f32.mxu0 0.0
    %3334 = vmatmul.mubr.f32.gmra.mxu0 %v3262
    %v3335 = vpop.f32.mrf.mxu0
    %v3336 = vadd.f32 0.0, %v3335
    %v3337 = vpop.f32.mrf.mxu0
    %3338 = vdwg.mxu0
    %v3339 = vadd.f32 %v3247, %v3331
    %v3340 = vadd.f32 %v3248, %v3336
    %s3341 = scalar_lea.vmem [#allocation2], 1536
    %v3342 = vld [vmem:[%s3341] sm:$0xff]
    %v3343 = vld [vmem:[%s3341 + $0x8] sm:$0xff]
    %v3344 = vld [vmem:[%s3341 + $0x10] sm:$0xff]
    %v3345 = vld [vmem:[%s3341 + $0x18] sm:$0xff]
    %v3346 = vld [vmem:[%s3341 + $0x20] sm:$0xff]
    %v3347 = vld [vmem:[%s3341 + $0x28] sm:$0xff]
    %v3348 = vld [vmem:[%s3341 + $0x30] sm:$0xff]
    %v3349 = vld [vmem:[%s3341 + $0x38] sm:$0xff]
    %v3351 = vsel %vm708, %v2765, 0
    %v3354 = vsel %vm708, %v2770, 0
    %3356 = vmatprep.subr.mxu0 0.0
    %3357 = vmatpush1.msra.mxu0 0.0
    %3358 = vmatprep.subr.mxu0 0.0
    %3359 = vmatpush1.msra.mxu0 0.0
    %3360 = vmatprep.subr.mxu0 0.0
    %3361 = vmatpush1.msra.mxu0 0.0
    %3362 = vmatprep.subr.mxu0 0.0
    %3363 = vmatpush1.msra.mxu0 0.0
    %3364 = vmatprep.subr.mxu0 0.0
    %3365 = vmatpush1.msra.mxu0 0.0
    %3366 = vmatprep.subr.mxu0 0.0
    %3367 = vmatpush1.msra.mxu0 0.0
    %3368 = vmatprep.subr.mxu0 0.0
    %3369 = vmatpush1.msra.mxu0 0.0
    %3370 = vmatprep.subr.mxu0 0.0
    %3371 = vmatpush1.msra.mxu0 0.0
    %3372 = vmatprep.subr.mxu0 0.0
    %3373 = vmatpush1.msra.mxu0 %v3349
    %3374 = vmatprep.subr.mxu0 0.0
    %3375 = vmatpush1.msra.mxu0 %v3348
    %3376 = vmatprep.subr.mxu0 0.0
    %3377 = vmatpush1.msra.mxu0 %v3347
    %3378 = vmatprep.subr.mxu0 0.0
    %3379 = vmatpush1.msra.mxu0 %v3346
    %3380 = vmatprep.subr.mxu0 0.0
    %3381 = vmatpush1.msra.mxu0 %v3345
    %3382 = vmatprep.subr.mxu0 0.0
    %3383 = vmatpush1.msra.mxu0 %v3344
    %3384 = vmatprep.subr.mxu0 0.0
    %3385 = vmatpush1.msra.mxu0 %v3343
    %3386 = vmatprep.subr.mxu0 0.0
    %3387 = vmatpush1.msra.mxu0 %v3342
    %3388 = vmatprep.subr.mxu0 0.0
    %3389 = vmatpush2.msra.mxu0 0.0
    %3390 = vmatprep.subr.mxu0 0.0
    %3391 = vmatpush2.msra.mxu0 0.0
    %3392 = vmatprep.subr.mxu0 0.0
    %3393 = vmatpush2.msra.mxu0 0.0
    %3394 = vmatprep.subr.mxu0 0.0
    %3395 = vmatpush2.msra.mxu0 0.0
    %3396 = vmatprep.subr.mxu0 0.0
    %3397 = vmatpush2.msra.mxu0 0.0
    %3398 = vmatprep.subr.mxu0 0.0
    %3399 = vmatpush2.msra.mxu0 0.0
    %3400 = vmatprep.subr.mxu0 0.0
    %3401 = vmatpush2.msra.mxu0 0.0
    %3402 = vmatprep.subr.mxu0 0.0
    %3403 = vmatpush2.msra.mxu0 0.0
    %3404 = vmatprep.subr.mxu0 0.0
    %3405 = vmatpush2.msra.mxu0 0.0
    %3406 = vmatprep.subr.mxu0 0.0
    %3407 = vmatpush2.msra.mxu0 0.0
    %3408 = vmatprep.subr.mxu0 0.0
    %3409 = vmatpush2.msra.mxu0 0.0
    %3410 = vmatprep.subr.mxu0 0.0
    %3411 = vmatpush2.msra.mxu0 0.0
    %3412 = vmatprep.subr.mxu0 0.0
    %3413 = vmatpush2.msra.mxu0 0.0
    %3414 = vmatprep.subr.mxu0 0.0
    %3415 = vmatpush2.msra.mxu0 0.0
    %3416 = vmatprep.subr.mxu0 0.0
    %3417 = vmatpush2.msra.mxu0 0.0
    %3418 = vmatprep.subr.mxu0 0.0
    %3419 = vmatpush2.msra.mxu0 0.0
    %3420 = vmatprep.mubr.f32.mxu0 0.0
    %3421 = vmatmul.mubr.f32.gmra.mxu0 %v3351
    %v3422 = vpop.f32.mrf.mxu0
    %v3423 = vadd.f32 0.0, %v3422
    %v3424 = vpop.f32.mrf.mxu0
    %3425 = vmatprep.mubr.f32.mxu0 0.0
    %3426 = vmatmul.mubr.f32.gmra.mxu0 %v3354
    %v3427 = vpop.f32.mrf.mxu0
    %v3428 = vadd.f32 0.0, %v3427
    %v3429 = vpop.f32.mrf.mxu0
    %3430 = vdwg.mxu0
    %v3431 = vadd.f32 %v3339, %v3423
    %v3432 = vadd.f32 %v3340, %v3428
    %s3433 = scalar_lea.vmem [#allocation2], 1600
    %v3434 = vld [vmem:[%s3433] sm:$0xff]
    %v3435 = vld [vmem:[%s3433 + $0x8] sm:$0xff]
    %v3436 = vld [vmem:[%s3433 + $0x10] sm:$0xff]
    %v3437 = vld [vmem:[%s3433 + $0x18] sm:$0xff]
    %v3438 = vld [vmem:[%s3433 + $0x20] sm:$0xff]
    %v3439 = vld [vmem:[%s3433 + $0x28] sm:$0xff]
    %v3440 = vld [vmem:[%s3433 + $0x30] sm:$0xff]
    %v3441 = vld [vmem:[%s3433 + $0x38] sm:$0xff]
    %v3443 = vsel %vm708, %v2775, 0
    %v3446 = vsel %vm708, %v2780, 0
    %3448 = vmatprep.subr.mxu0 0.0
    %3449 = vmatpush1.msra.mxu0 0.0
    %3450 = vmatprep.subr.mxu0 0.0
    %3451 = vmatpush1.msra.mxu0 0.0
    %3452 = vmatprep.subr.mxu0 0.0
    %3453 = vmatpush1.msra.mxu0 0.0
    %3454 = vmatprep.subr.mxu0 0.0
    %3455 = vmatpush1.msra.mxu0 0.0
    %3456 = vmatprep.subr.mxu0 0.0
    %3457 = vmatpush1.msra.mxu0 0.0
    %3458 = vmatprep.subr.mxu0 0.0
    %3459 = vmatpush1.msra.mxu0 0.0
    %3460 = vmatprep.subr.mxu0 0.0
    %3461 = vmatpush1.msra.mxu0 0.0
    %3462 = vmatprep.subr.mxu0 0.0
    %3463 = vmatpush1.msra.mxu0 0.0
    %3464 = vmatprep.subr.mxu0 0.0
    %3465 = vmatpush1.msra.mxu0 %v3441
    %3466 = vmatprep.subr.mxu0 0.0
    %3467 = vmatpush1.msra.mxu0 %v3440
    %3468 = vmatprep.subr.mxu0 0.0
    %3469 = vmatpush1.msra.mxu0 %v3439
    %3470 = vmatprep.subr.mxu0 0.0
    %3471 = vmatpush1.msra.mxu0 %v3438
    %3472 = vmatprep.subr.mxu0 0.0
    %3473 = vmatpush1.msra.mxu0 %v3437
    %3474 = vmatprep.subr.mxu0 0.0
    %3475 = vmatpush1.msra.mxu0 %v3436
    %3476 = vmatprep.subr.mxu0 0.0
    %3477 = vmatpush1.msra.mxu0 %v3435
    %3478 = vmatprep.subr.mxu0 0.0
    %3479 = vmatpush1.msra.mxu0 %v3434
    %3480 = vmatprep.subr.mxu0 0.0
    %3481 = vmatpush2.msra.mxu0 0.0
    %3482 = vmatprep.subr.mxu0 0.0
    %3483 = vmatpush2.msra.mxu0 0.0
    %3484 = vmatprep.subr.mxu0 0.0
    %3485 = vmatpush2.msra.mxu0 0.0
    %3486 = vmatprep.subr.mxu0 0.0
    %3487 = vmatpush2.msra.mxu0 0.0
    %3488 = vmatprep.subr.mxu0 0.0
    %3489 = vmatpush2.msra.mxu0 0.0
    %3490 = vmatprep.subr.mxu0 0.0
    %3491 = vmatpush2.msra.mxu0 0.0
    %3492 = vmatprep.subr.mxu0 0.0
    %3493 = vmatpush2.msra.mxu0 0.0
    %3494 = vmatprep.subr.mxu0 0.0
    %3495 = vmatpush2.msra.mxu0 0.0
    %3496 = vmatprep.subr.mxu0 0.0
    %3497 = vmatpush2.msra.mxu0 0.0
    %3498 = vmatprep.subr.mxu0 0.0
    %3499 = vmatpush2.msra.mxu0 0.0
    %3500 = vmatprep.subr.mxu0 0.0
    %3501 = vmatpush2.msra.mxu0 0.0
    %3502 = vmatprep.subr.mxu0 0.0
    %3503 = vmatpush2.msra.mxu0 0.0
    %3504 = vmatprep.subr.mxu0 0.0
    %3505 = vmatpush2.msra.mxu0 0.0
    %3506 = vmatprep.subr.mxu0 0.0
    %3507 = vmatpush2.msra.mxu0 0.0
    %3508 = vmatprep.subr.mxu0 0.0
    %3509 = vmatpush2.msra.mxu0 0.0
    %3510 = vmatprep.subr.mxu0 0.0
    %3511 = vmatpush2.msra.mxu0 0.0
    %3512 = vmatprep.mubr.f32.mxu0 0.0
    %3513 = vmatmul.mubr.f32.gmra.mxu0 %v3443
    %v3514 = vpop.f32.mrf.mxu0
    %v3515 = vadd.f32 0.0, %v3514
    %v3516 = vpop.f32.mrf.mxu0
    %3517 = vmatprep.mubr.f32.mxu0 0.0
    %3518 = vmatmul.mubr.f32.gmra.mxu0 %v3446
    %v3519 = vpop.f32.mrf.mxu0
    %v3520 = vadd.f32 0.0, %v3519
    %v3521 = vpop.f32.mrf.mxu0
    %3522 = vdwg.mxu0
    %v3523 = vadd.f32 %v3431, %v3515
    %v3524 = vadd.f32 %v3432, %v3520
    %s3525 = scalar_lea.vmem [#allocation2], 1664
    %v3526 = vld [vmem:[%s3525] sm:$0xff]
    %v3527 = vld [vmem:[%s3525 + $0x8] sm:$0xff]
    %v3528 = vld [vmem:[%s3525 + $0x10] sm:$0xff]
    %v3529 = vld [vmem:[%s3525 + $0x18] sm:$0xff]
    %v3530 = vld [vmem:[%s3525 + $0x20] sm:$0xff]
    %v3531 = vld [vmem:[%s3525 + $0x28] sm:$0xff]
    %v3532 = vld [vmem:[%s3525 + $0x30] sm:$0xff]
    %v3533 = vld [vmem:[%s3525 + $0x38] sm:$0xff]
    %v3535 = vsel %vm708, %v2785, 0
    %v3538 = vsel %vm708, %v2790, 0
    %3540 = vmatprep.subr.mxu0 0.0
    %3541 = vmatpush1.msra.mxu0 0.0
    %3542 = vmatprep.subr.mxu0 0.0
    %3543 = vmatpush1.msra.mxu0 0.0
    %3544 = vmatprep.subr.mxu0 0.0
    %3545 = vmatpush1.msra.mxu0 0.0
    %3546 = vmatprep.subr.mxu0 0.0
    %3547 = vmatpush1.msra.mxu0 0.0
    %3548 = vmatprep.subr.mxu0 0.0
    %3549 = vmatpush1.msra.mxu0 0.0
    %3550 = vmatprep.subr.mxu0 0.0
    %3551 = vmatpush1.msra.mxu0 0.0
    %3552 = vmatprep.subr.mxu0 0.0
    %3553 = vmatpush1.msra.mxu0 0.0
    %3554 = vmatprep.subr.mxu0 0.0
    %3555 = vmatpush1.msra.mxu0 0.0
    %3556 = vmatprep.subr.mxu0 0.0
    %3557 = vmatpush1.msra.mxu0 %v3533
    %3558 = vmatprep.subr.mxu0 0.0
    %3559 = vmatpush1.msra.mxu0 %v3532
    %3560 = vmatprep.subr.mxu0 0.0
    %3561 = vmatpush1.msra.mxu0 %v3531
    %3562 = vmatprep.subr.mxu0 0.0
    %3563 = vmatpush1.msra.mxu0 %v3530
    %3564 = vmatprep.subr.mxu0 0.0
    %3565 = vmatpush1.msra.mxu0 %v3529
    %3566 = vmatprep.subr.mxu0 0.0
    %3567 = vmatpush1.msra.mxu0 %v3528
    %3568 = vmatprep.subr.mxu0 0.0
    %3569 = vmatpush1.msra.mxu0 %v3527
    %3570 = vmatprep.subr.mxu0 0.0
    %3571 = vmatpush1.msra.mxu0 %v3526
    %3572 = vmatprep.subr.mxu0 0.0
    %3573 = vmatpush2.msra.mxu0 0.0
    %3574 = vmatprep.subr.mxu0 0.0
    %3575 = vmatpush2.msra.mxu0 0.0
    %3576 = vmatprep.subr.mxu0 0.0
    %3577 = vmatpush2.msra.mxu0 0.0
    %3578 = vmatprep.subr.mxu0 0.0
    %3579 = vmatpush2.msra.mxu0 0.0
    %3580 = vmatprep.subr.mxu0 0.0
    %3581 = vmatpush2.msra.mxu0 0.0
    %3582 = vmatprep.subr.mxu0 0.0
    %3583 = vmatpush2.msra.mxu0 0.0
    %3584 = vmatprep.subr.mxu0 0.0
    %3585 = vmatpush2.msra.mxu0 0.0
    %3586 = vmatprep.subr.mxu0 0.0
    %3587 = vmatpush2.msra.mxu0 0.0
    %3588 = vmatprep.subr.mxu0 0.0
    %3589 = vmatpush2.msra.mxu0 0.0
    %3590 = vmatprep.subr.mxu0 0.0
    %3591 = vmatpush2.msra.mxu0 0.0
    %3592 = vmatprep.subr.mxu0 0.0
    %3593 = vmatpush2.msra.mxu0 0.0
    %3594 = vmatprep.subr.mxu0 0.0
    %3595 = vmatpush2.msra.mxu0 0.0
    %3596 = vmatprep.subr.mxu0 0.0
    %3597 = vmatpush2.msra.mxu0 0.0
    %3598 = vmatprep.subr.mxu0 0.0
    %3599 = vmatpush2.msra.mxu0 0.0
    %3600 = vmatprep.subr.mxu0 0.0
    %3601 = vmatpush2.msra.mxu0 0.0
    %3602 = vmatprep.subr.mxu0 0.0
    %3603 = vmatpush2.msra.mxu0 0.0
    %3604 = vmatprep.mubr.f32.mxu0 0.0
    %3605 = vmatmul.mubr.f32.gmra.mxu0 %v3535
    %v3606 = vpop.f32.mrf.mxu0
    %v3607 = vadd.f32 0.0, %v3606
    %v3608 = vpop.f32.mrf.mxu0
    %3609 = vmatprep.mubr.f32.mxu0 0.0
    %3610 = vmatmul.mubr.f32.gmra.mxu0 %v3538
    %v3611 = vpop.f32.mrf.mxu0
    %v3612 = vadd.f32 0.0, %v3611
    %v3613 = vpop.f32.mrf.mxu0
    %3614 = vdwg.mxu0
    %v3615 = vadd.f32 %v3523, %v3607
    %v3616 = vadd.f32 %v3524, %v3612
    %v3617 = vld [vmem:[%s3 + $0xb] sm:$0x1]
    %v3618 = vlaneseq
    %v3619 = vshrl.u32 %v3618, 7
    %v3620 = vsub.s32 0, %v3619
    %v3621 = vrot.slane %v3617, %v3620
    %v3622 = vadd.f32 %v3615, %v3621
    %v3623 = vadd.f32 %v3616, %v3621
    %v3624 = vlaneseq
    %v3625 = vshrl.u32 %v3624, 7
    %v3626 = vsub.s32 0, %v3625
    %v3627 = vrot.slane %v57, %v3626
    %v3629 = vsel %vm708, %v3622, 0
    %v3632 = vsel %vm708, %v3623, 0
    %3634 = vmatprep.subr.mxu0 0.0
    %3635 = vmatpush1.msra.mxu0 0.0
    %3636 = vmatprep.subr.mxu0 0.0
    %3637 = vmatpush1.msra.mxu0 0.0
    %3638 = vmatprep.subr.mxu0 0.0
    %3639 = vmatpush1.msra.mxu0 0.0
    %3640 = vmatprep.subr.mxu0 0.0
    %3641 = vmatpush1.msra.mxu0 0.0
    %3642 = vmatprep.subr.mxu0 0.0
    %3643 = vmatpush1.msra.mxu0 0.0
    %3644 = vmatprep.subr.mxu0 0.0
    %3645 = vmatpush1.msra.mxu0 0.0
    %3646 = vmatprep.subr.mxu0 0.0
    %3647 = vmatpush1.msra.mxu0 0.0
    %3648 = vmatprep.subr.mxu0 0.0
    %3649 = vmatpush1.msra.mxu0 0.0
    %3650 = vmatprep.subr.mxu0 0.0
    %3651 = vmatpush1.msra.mxu0 %v56
    %3652 = vmatprep.subr.mxu0 0.0
    %3653 = vmatpush1.msra.mxu0 %v55
    %3654 = vmatprep.subr.mxu0 0.0
    %3655 = vmatpush1.msra.mxu0 %v54
    %3656 = vmatprep.subr.mxu0 0.0
    %3657 = vmatpush1.msra.mxu0 %v53
    %3658 = vmatprep.subr.mxu0 0.0
    %3659 = vmatpush1.msra.mxu0 %v52
    %3660 = vmatprep.subr.mxu0 0.0
    %3661 = vmatpush1.msra.mxu0 %v51
    %3662 = vmatprep.subr.mxu0 0.0
    %3663 = vmatpush1.msra.mxu0 %v50
    %3664 = vmatprep.subr.mxu0 0.0
    %3665 = vmatpush1.msra.mxu0 %v49
    %3666 = vmatprep.subr.mxu0 0.0
    %3667 = vmatpush2.msra.mxu0 0.0
    %3668 = vmatprep.subr.mxu0 0.0
    %3669 = vmatpush2.msra.mxu0 0.0
    %3670 = vmatprep.subr.mxu0 0.0
    %3671 = vmatpush2.msra.mxu0 0.0
    %3672 = vmatprep.subr.mxu0 0.0
    %3673 = vmatpush2.msra.mxu0 0.0
    %3674 = vmatprep.subr.mxu0 0.0
    %3675 = vmatpush2.msra.mxu0 0.0
    %3676 = vmatprep.subr.mxu0 0.0
    %3677 = vmatpush2.msra.mxu0 0.0
    %3678 = vmatprep.subr.mxu0 0.0
    %3679 = vmatpush2.msra.mxu0 0.0
    %3680 = vmatprep.subr.mxu0 0.0
    %3681 = vmatpush2.msra.mxu0 0.0
    %3682 = vmatprep.subr.mxu0 0.0
    %3683 = vmatpush2.msra.mxu0 0.0
    %3684 = vmatprep.subr.mxu0 0.0
    %3685 = vmatpush2.msra.mxu0 0.0
    %3686 = vmatprep.subr.mxu0 0.0
    %3687 = vmatpush2.msra.mxu0 0.0
    %3688 = vmatprep.subr.mxu0 0.0
    %3689 = vmatpush2.msra.mxu0 0.0
    %3690 = vmatprep.subr.mxu0 0.0
    %3691 = vmatpush2.msra.mxu0 0.0
    %3692 = vmatprep.subr.mxu0 0.0
    %3693 = vmatpush2.msra.mxu0 0.0
    %3694 = vmatprep.subr.mxu0 0.0
    %3695 = vmatpush2.msra.mxu0 0.0
    %3696 = vmatprep.subr.mxu0 0.0
    %3697 = vmatpush2.msra.mxu0 0.0
    %3698 = vmatprep.mubr.f32.mxu0 0.0
    %3699 = vmatmul.mubr.f32.gmra.mxu0 %v3629
    %v3700 = vpop.f32.mrf.mxu0
    %v3701 = vadd.f32 %v3627, %v3700
    %v3702 = vpop.f32.mrf.mxu0
    %3703 = vmatprep.mubr.f32.mxu0 0.0
    %3704 = vmatmul.mubr.f32.gmra.mxu0 %v3632
    %v3705 = vpop.f32.mrf.mxu0
    %v3706 = vadd.f32 %v3627, %v3705
    %v3707 = vpop.f32.mrf.mxu0
    %3708 = vdwg.mxu0
    %v3709 = vmax.f32 %v3701, 0.0
    %v3710 = vmax.f32 %v3706, 0.0
    %v3711 = vlaneseq
    %v3712 = vshrl.u32 %v3711, 7
    %v3713 = vsub.s32 0, %v3712
    %v3714 = vrot.slane %v62, %v3713
    %vm3715 = vcmask 261120
    %v3717 = vsel %vm3715, %v3709, 0
    %v3720 = vsel %vm3715, %v3710, 0
    %3722 = vmatprep.subr.mxu0 0.0
    %3723 = vmatpush1.msra.mxu0 0.0
    %3724 = vmatprep.subr.mxu0 0.0
    %3725 = vmatpush1.msra.mxu0 0.0
    %3726 = vmatprep.subr.mxu0 0.0
    %3727 = vmatpush1.msra.mxu0 0.0
    %3728 = vmatprep.subr.mxu0 0.0
    %3729 = vmatpush1.msra.mxu0 0.0
    %3730 = vmatprep.subr.mxu0 0.0
    %3731 = vmatpush1.msra.mxu0 0.0
    %3732 = vmatprep.subr.mxu0 0.0
    %3733 = vmatpush1.msra.mxu0 0.0
    %3734 = vmatprep.subr.mxu0 0.0
    %3735 = vmatpush1.msra.mxu0 0.0
    %3736 = vmatprep.subr.mxu0 0.0
    %3737 = vmatpush1.msra.mxu0 0.0
    %3738 = vmatprep.subr.mxu0 0.0
    %3739 = vmatpush1.msra.mxu0 0.0
    %3740 = vmatprep.subr.mxu0 0.0
    %3741 = vmatpush1.msra.mxu0 0.0
    %3742 = vmatprep.subr.mxu0 0.0
    %3743 = vmatpush1.msra.mxu0 0.0
    %3744 = vmatprep.subr.mxu0 0.0
    %3745 = vmatpush1.msra.mxu0 0.0
    %3746 = vmatprep.subr.mxu0 0.0
    %3747 = vmatpush1.msra.mxu0 %v61
    %3748 = vmatprep.subr.mxu0 0.0
    %3749 = vmatpush1.msra.mxu0 %v60
    %3750 = vmatprep.subr.mxu0 0.0
    %3751 = vmatpush1.msra.mxu0 %v59
    %3752 = vmatprep.subr.mxu0 0.0
    %3753 = vmatpush1.msra.mxu0 %v58
    %3754 = vmatprep.subr.mxu0 0.0
    %3755 = vmatpush2.msra.mxu0 0.0
    %3756 = vmatprep.subr.mxu0 0.0
    %3757 = vmatpush2.msra.mxu0 0.0
    %3758 = vmatprep.subr.mxu0 0.0
    %3759 = vmatpush2.msra.mxu0 0.0
    %3760 = vmatprep.subr.mxu0 0.0
    %3761 = vmatpush2.msra.mxu0 0.0
    %3762 = vmatprep.subr.mxu0 0.0
    %3763 = vmatpush2.msra.mxu0 0.0
    %3764 = vmatprep.subr.mxu0 0.0
    %3765 = vmatpush2.msra.mxu0 0.0
    %3766 = vmatprep.subr.mxu0 0.0
    %3767 = vmatpush2.msra.mxu0 0.0
    %3768 = vmatprep.subr.mxu0 0.0
    %3769 = vmatpush2.msra.mxu0 0.0
    %3770 = vmatprep.subr.mxu0 0.0
    %3771 = vmatpush2.msra.mxu0 0.0
    %3772 = vmatprep.subr.mxu0 0.0
    %3773 = vmatpush2.msra.mxu0 0.0
    %3774 = vmatprep.subr.mxu0 0.0
    %3775 = vmatpush2.msra.mxu0 0.0
    %3776 = vmatprep.subr.mxu0 0.0
    %3777 = vmatpush2.msra.mxu0 0.0
    %3778 = vmatprep.subr.mxu0 0.0
    %3779 = vmatpush2.msra.mxu0 0.0
    %3780 = vmatprep.subr.mxu0 0.0
    %3781 = vmatpush2.msra.mxu0 0.0
    %3782 = vmatprep.subr.mxu0 0.0
    %3783 = vmatpush2.msra.mxu0 0.0
    %3784 = vmatprep.subr.mxu0 0.0
    %3785 = vmatpush2.msra.mxu0 0.0
    %3786 = vmatprep.mubr.f32.mxu0 0.0
    %3787 = vmatmul.mubr.f32.gmra.mxu0 %v3717
    %v3788 = vpop.f32.mrf.mxu0
    %v3789 = vadd.f32 %v3714, %v3788
    %v3790 = vpop.f32.mrf.mxu0
    %3791 = vmatprep.mubr.f32.mxu0 0.0
    %3792 = vmatmul.mubr.f32.gmra.mxu0 %v3720
    %v3793 = vpop.f32.mrf.mxu0
    %v3794 = vadd.f32 %v3714, %v3793
    %v3795 = vpop.f32.mrf.mxu0
    %3796 = vdwg.mxu0
    %vm3797 = vcmask 15360
    %3798 = vst.msk [vmem:[%s4] sm:$0xff] %vm3797, %v3789
    %3799 = vst.msk [vmem:[%s4 + $0x8] sm:$0xff] %vm3797, %v3794
    // Predicated region
    $region22: #{grid_gcn_forward.1} parent=1 // pred_check
      _
    $region23: #{grid_gcn_forward.1} parent=1 // pred_check_branch
      %3801 = sbr.rel (0) target = $region25
    $region24: #{grid_gcn_forward.1} parent=1 // pred_region
      _
    $region25: #{grid_gcn_forward.1} parent=1 // pred_fallthru
      _
    // Predicated region
    $region26: #{grid_gcn_forward.1} parent=1 // pred_check
      _
    $region27: #{grid_gcn_forward.1} parent=1 // pred_check_branch
      %3803 = sbr.rel (0) target = $region29
    $region28: #{grid_gcn_forward.1} parent=1 // pred_region
      _
    $region29: #{grid_gcn_forward.1} parent=1 // pred_fallthru
      _
    %3804 = vsyncpa [#allocation3], 1

</llo_original>
